<compile_context>
chip_gen: v7x
topology: tpu7x:2x2x1
jax: 0.10.0
libtpu: 0.0.40
codegen_flags: <defaults>
</compile_context>

<pallas_src>
import jax
import jax.numpy as jnp
from jax import lax
from jax.experimental import pallas as pl
from jax.experimental.pallas import tpu as pltpu


# ----------------------------- glue helpers ---------------------------------

def _std_conv_weight(w):
    """StdConv2d weight standardization (OIHW, biased var over (I,H,W), eps=1e-5)."""
    m = jnp.mean(w, axis=(1, 2, 3), keepdims=True)
    v = jnp.mean((w - m) ** 2, axis=(1, 2, 3), keepdims=True)
    return (w - m) / jnp.sqrt(v + 1e-5)


def _onehot_masks(C, G):
    """(C,G) and (G,C) one-hot group-membership matrices (built once, outside)."""
    cg = C // G
    m_cg = (jnp.arange(C)[:, None] // cg == jnp.arange(G)[None, :]).astype(jnp.float32)
    return m_cg, m_cg.T


# ----------------------------- in-kernel ops ---------------------------------

def _group_norm(y, gamma, beta, num_groups, eps, masks=None):
    """GroupNorm over one sample laid out as (HW, C); gamma/beta are (1, C) f32.

    cg == 1 (groups == channels) degenerates to a per-channel norm with no matmuls.
    Otherwise masks = (m_cg (C,G), m_gc (G,C)) constant one-hots turn the per-group
    reduce/broadcast into tiny MXU matmuls. Stats are kept in f32.
    """
    HW, C = y.shape
    cg = C // num_groups
    s1 = jnp.sum(y, axis=0, keepdims=True)          # (1, C)
    s2 = jnp.sum(y * y, axis=0, keepdims=True)      # (1, C)
    if cg == 1:
        cnt = float(HW)
        mean_c = s1 / cnt
        inv_c = lax.rsqrt(s2 / cnt - mean_c * mean_c + eps)
    else:
        m_cg, m_gc = masks
        cnt = float(HW * cg)
        mean_g = jnp.dot(s1, m_cg, preferred_element_type=jnp.float32) / cnt   # (1, G)
        ex2_g = jnp.dot(s2, m_cg, preferred_element_type=jnp.float32) / cnt
        inv_g = lax.rsqrt(ex2_g - mean_g * mean_g + eps)
        mean_c = jnp.dot(mean_g, m_gc, preferred_element_type=jnp.float32)     # (1, C)
        inv_c = jnp.dot(inv_g, m_gc, preferred_element_type=jnp.float32)
    scale = inv_c * gamma
    shift = beta - mean_c * scale
    return y * scale + shift


def _make_kernel(H, W, cin, cmid, cout, *, has_downsample, mid_grouped, out_grouped):
    HW = H * W
    PAD_TOP = -(-(W + 1) // 8) * 8      # sublane-aligned top pad (>= W+1)
    PAD_BOT = W + 1

    def kernel(*refs):
        it = iter(refs)
        x_ref = next(it)            # (1, HW, cin) bf16
        w1_ref = next(it)           # (cin, cout+cmid) or (cin, cmid) bf16 (fused ds+conv1)
        w2_ref = next(it)           # (9*cmid, cmid) bf16 (im2col RHS)
        w3_ref = next(it)           # (cmid, cout) bf16
        gn_ref = next(it)           # (8, P) f32 packed gamma/beta
        mid_masks = out_masks = None
        if mid_grouped:
            mid_masks = (next(it)[...], next(it)[...])
        if out_grouped:
            out_masks = (next(it)[...], next(it)[...])
        o_ref = next(it)            # (1, HW, cout) f32
        ypad_ref = next(it)         # (PAD_TOP+HW+PAD_BOT, cmid) f32 scratch
        patch_ref = next(it)        # (HW, 9*cmid) bf16 scratch

        g1 = gn_ref[0:1, :cmid]; b1 = gn_ref[1:2, :cmid]
        g2 = gn_ref[2:3, :cmid]; b2 = gn_ref[3:4, :cmid]
        g3 = gn_ref[4:5, :cout]; b3 = gn_ref[5:6, :cout]

        x = x_ref[0]                                                     # (HW, cin) bf16

        # ---- fused downsample(1x1) + conv1(1x1): single MXU matmul ----
        z = jnp.dot(x, w1_ref[...], preferred_element_type=jnp.float32)
        if has_downsample:
            gp = gn_ref[6:7, :cout]; bp = gn_ref[7:8, :cout]
            res = _group_norm(z[:, :cout], gp, bp, cout, 1e-5)           # gn_proj (cg==1)
            y = z[:, cout:cout + cmid]
        else:
            res = x.astype(jnp.float32)                                  # identity skip
            y = z

        # ---- gn1 + relu ----
        y = jnp.maximum(_group_norm(y, g1, b1, 32, 1e-6, mid_masks), 0.0)

        # ---- conv2 (3x3, pad 1, stride 1) as ONE im2col matmul ----
        ypad_ref[0:PAD_TOP, :] = jnp.zeros((PAD_TOP, cmid), jnp.float32)
        ypad_ref[PAD_TOP + HW:PAD_TOP + HW + PAD_BOT, :] = jnp.zeros((PAD_BOT, cmid),
                                                                     jnp.float32)
        ypad_ref[PAD_TOP:PAD_TOP + HW, :] = y

        col = lax.broadcasted_iota(jnp.int32, (HW, 1), 0) % W
        mask_l = col >= 1            # kw==0 tap needs (w-1) >= 0
        mask_r = col <= W - 2        # kw==2 tap needs (w+1) <= W-1
        for kh in range(3):
            for kw in range(3):
                k = kh * 3 + kw
                start = PAD_TOP + (kh - 1) * W + (kw - 1)
                tap = ypad_ref[start:start + HW, :]
                if kw == 0:
                    tap = jnp.where(mask_l, tap, 0.0)
                elif kw == 2:
                    tap = jnp.where(mask_r, tap, 0.0)
                patch_ref[:, k * cmid:(k + 1) * cmid] = tap.astype(jnp.bfloat16)
        y = jnp.dot(patch_ref[...], w2_ref[...], preferred_element_type=jnp.float32)

        # ---- gn2 + relu ----
        y = jnp.maximum(_group_norm(y, g2, b2, 32, 1e-6, mid_masks), 0.0)

        # ---- conv3 (1x1) -> gn3 ----
        y = jnp.dot(y.astype(jnp.bfloat16), w3_ref[...],
                    preferred_element_type=jnp.float32)
        y = _group_norm(y, g3, b3, 32, 1e-6, out_masks)

        # ---- residual add + relu ----
        o_ref[0] = jnp.maximum(res + y, 0.0)

    return kernel


# ----------------------------- wrapper ---------------------------------------

def preact_bottleneck(x_nchw, params, *, cmid=None, stride=1):
    """Pallas forward of PreActBottleneck. NCHW f32 in, NCHW f32 out."""
    if stride != 1:
        raise NotImplementedError("TODO(synk): stride != 1 not implemented")
    N, cin, H, W = x_nchw.shape
    cout = params["conv3_w"].shape[0]
    if cmid is None:
        cmid = cout // 4
    HW = H * W
    has_downsample = (stride != 1) or (cin != cout)   # matches the PyTorch module
    mid_grouped = cmid > 32                           # gn1/gn2 channels-per-group > 1
    out_grouped = cout > 32                           # gn3 channels-per-group > 1

    # NCHW -> (N, H*W, C); bf16 MXU operands (GroupNorm stats remain f32).
    x = jnp.transpose(x_nchw, (0, 2, 3, 1)).reshape(N, HW, cin).astype(jnp.bfloat16)

    # StdConv2d weight standardization + matmul layouts.
    w1 = _std_conv_weight(params["conv1_w"])[:, :, 0, 0].T                  # (cin, cmid)
    if has_downsample:
        wds = _std_conv_weight(params["conv_ds_w"])[:, :, 0, 0].T           # (cin, cout)
        w1 = jnp.concatenate([wds, w1], axis=1)                             # (cin, cout+cmid)
    w2 = jnp.transpose(_std_conv_weight(params["conv2_w"]), (2, 3, 1, 0))   # (3,3,in,out)
    w2 = w2.reshape(9 * cmid, cmid)                                         # im2col RHS
    w3 = _std_conv_weight(params["conv3_w"])[:, :, 0, 0].T                  # (cmid, cout)
    w1 = w1.astype(jnp.bfloat16)
    w2 = w2.astype(jnp.bfloat16)
    w3 = w3.astype(jnp.bfloat16)

    # Pack all GroupNorm gammas/betas into one (8, P) f32 input.
    P = max(cmid, cout)

    def _row(v):
        v = jnp.asarray(v, jnp.float32).reshape(-1)
        return jnp.pad(v, (0, P - v.shape[0]))

    rows = [params["gn1_w"], params["gn1_b"], params["gn2_w"], params["gn2_b"],
            params["gn3_w"], params["gn3_b"]]
    if has_downsample:
        rows += [params["gnp_w"], params["gnp_b"]]
    else:
        rows += [jnp.ones((cout,), jnp.float32), jnp.zeros((cout,), jnp.float32)]
    gn_pack = jnp.stack([_row(r) for r in rows], axis=0)                    # (8, P)

    inputs = [x, w1, w2, w3, gn_pack]
    in_specs = [
        pl.BlockSpec((1, HW, cin), lambda b: (b, 0, 0)),
        pl.BlockSpec(w1.shape, lambda b: (0, 0)),
        pl.BlockSpec(w2.shape, lambda b: (0, 0)),
        pl.BlockSpec(w3.shape, lambda b: (0, 0)),
        pl.BlockSpec((8, P), lambda b: (0, 0)),
    ]
    if mid_grouped:
        for m in _onehot_masks(cmid, 32):
            inputs.append(m)
            in_specs.append(pl.BlockSpec(m.shape, lambda b: (0, 0)))
    if out_grouped:
        for m in _onehot_masks(cout, 32):
            inputs.append(m)
            in_specs.append(pl.BlockSpec(m.shape, lambda b: (0, 0)))

    pad_top = -(-(W + 1) // 8) * 8
    pad_bot = W + 1
    kernel = _make_kernel(H, W, cin, cmid, cout, has_downsample=has_downsample,
                          mid_grouped=mid_grouped, out_grouped=out_grouped)

    out = pl.pallas_call(
        kernel,
        out_shape=jax.ShapeDtypeStruct((N, HW, cout), jnp.float32),
        grid_spec=pltpu.PrefetchScalarGridSpec(
            num_scalar_prefetch=0,
            grid=(N,),
            in_specs=in_specs,
            out_specs=pl.BlockSpec((1, HW, cout), lambda b: (b, 0, 0)),
            scratch_shapes=[
                pltpu.VMEM((pad_top + HW + pad_bot, cmid), jnp.float32),  # zero-padded y
                pltpu.VMEM((HW, 9 * cmid), jnp.bfloat16),                 # im2col patches
            ],
        ),
        compiler_params=pltpu.CompilerParams(
            dimension_semantics=("parallel",),
            vmem_limit_bytes=32 * 1024 * 1024,
        ),
    )(*inputs)

    return jnp.transpose(out.reshape(N, H, W, cout), (0, 3, 1, 2))


# ----------------------------- pure-JAX reference ----------------------------

def _ref_group_norm(x, gamma, beta, groups, eps):
    N, C, H, W = x.shape
    xg = x.reshape(N, groups, (C // groups) * H * W)
    m = jnp.mean(xg, axis=2, keepdims=True)
    v = jnp.mean((xg - m) ** 2, axis=2, keepdims=True)
    xn = ((xg - m) / jnp.sqrt(v + eps)).reshape(N, C, H, W)
    return xn * gamma.reshape(1, C, 1, 1) + beta.reshape(1, C, 1, 1)


def _ref_forward(x, params):
    cin = x.shape[1]
    cout = params["conv3_w"].shape[0]

    def conv(inp, w, pad):
        return lax.conv_general_dilated(
            inp, _std_conv_weight(w), window_strides=(1, 1),
            padding=[(pad, pad), (pad, pad)],
            dimension_numbers=("NCHW", "OIHW", "NCHW"))

    if cin != cout:
        residual = conv(x, params["conv_ds_w"], 0)
        residual = _ref_group_norm(residual, params["gnp_w"], params["gnp_b"], cout, 1e-5)
    else:
        residual = x
    y = conv(x, params["conv1_w"], 0)
    y = jax.nn.relu(_ref_group_norm(y, params["gn1_w"], params["gn1_b"], 32, 1e-6))
    y = conv(y, params["conv2_w"], 1)
    y = jax.nn.relu(_ref_group_norm(y, params["gn2_w"], params["gn2_b"], 32, 1e-6))
    y = conv(y, params["conv3_w"], 0)
    y = _ref_group_norm(y, params["gn3_w"], params["gn3_b"], 32, 1e-6)
    return jax.nn.relu(residual + y)


# ----------------------------- main -------------------------------------------

if __name__ == "__main__":
    key = jax.random.PRNGKey(0)

    def make_params(k, cin, cout, cmid, with_downsample):
        ks = jax.random.split(k, 12)
        p = {
            "conv1_w": 0.1 * jax.random.normal(ks[0], (cmid, cin, 1, 1), jnp.float32),
            "conv2_w": 0.1 * jax.random.normal(ks[1], (cmid, cmid, 3, 3), jnp.float32),
            "conv3_w": 0.1 * jax.random.normal(ks[2], (cout, cmid, 1, 1), jnp.float32),
            "gn1_w": 1.0 + 0.1 * jax.random.normal(ks[3], (cmid,), jnp.float32),
            "gn1_b": 0.05 * jax.random.normal(ks[4], (cmid,), jnp.float32),
            "gn2_w": 1.0 + 0.1 * jax.random.normal(ks[5], (cmid,), jnp.float32),
            "gn2_b": 0.05 * jax.random.normal(ks[6], (cmid,), jnp.float32),
            "gn3_w": 1.0 + 0.1 * jax.random.normal(ks[7], (cout,), jnp.float32),
            "gn3_b": 0.05 * jax.random.normal(ks[8], (cout,), jnp.float32),
        }
        if with_downsample:
            p["conv_ds_w"] = 0.1 * jax.random.normal(ks[9], (cout, cin, 1, 1), jnp.float32)
            p["gnp_w"] = 1.0 + 0.1 * jax.random.normal(ks[10], (cout,), jnp.float32)
            p["gnp_b"] = 0.05 * jax.random.normal(ks[11], (cout,), jnp.float32)
        return p

    def check(name, x, params, cmid):
        out = jax.block_until_ready(preact_bottleneck(x, params, cmid=cmid))
        ref = jax.block_until_ready(_ref_forward(x, params))
        assert out.shape == ref.shape, (name, out.shape, ref.shape)
        err = jnp.abs(out - ref)
        max_abs = float(jnp.max(err))
        rms_rel = float(jnp.sqrt(jnp.mean(err ** 2)) /
                        (jnp.sqrt(jnp.mean(ref ** 2)) + 1e-12))
        # bf16 MXU operands (f32 stats/accumulation) => bf16-level tolerances.
        assert rms_rel < 3e-2 and max_abs < 2e-1, (name, max_abs, rms_rel)

    k1, k2, k3, k4 = jax.random.split(key, 4)

    # Config 1: projection block (cin != cout => downsample + gn_proj active).
    N, cin, cout, H, W = 2, 64, 128, 16, 16
    cmid = cout // 4
    params1 = make_params(k1, cin, cout, cmid, with_downsample=True)
    x1 = jax.random.normal(k2, (N, cin, H, W), jnp.float32)
    check("projection", x1, params1, cmid)

    # Config 2: identity-skip block (stride==1, cin==cout => no downsample branch).
    N, cin, cout, H, W = 2, 64, 64, 8, 8
    cmid = 32
    params2 = make_params(k3, cin, cout, cmid, with_downsample=False)
    x2 = jax.random.normal(k4, (N, cin, H, W), jnp.float32)
    check("identity", x2, params2, cmid)

    print("KERNEL_OK")
</pallas_src>

<mosaic_0001>
module attributes {stable_mosaic.version = 11 : i64} {
  func.func @kernel(%arg0: i32, %arg1: memref<1x256x64xbf16, #tpu.memory_space<vmem>>, %arg2: memref<64x160xbf16, #tpu.memory_space<vmem>>, %arg3: memref<288x32xbf16, #tpu.memory_space<vmem>>, %arg4: memref<32x128xbf16, #tpu.memory_space<vmem>>, %arg5: memref<8x128xf32, #tpu.memory_space<vmem>>, %arg6: memref<128x32xf32, #tpu.memory_space<vmem>>, %arg7: memref<32x128xf32, #tpu.memory_space<vmem>>, %arg8: memref<1x256x128xf32, #tpu.memory_space<vmem>>, %arg9: memref<297x32xf32, #tpu.memory_space<vmem>>, %arg10: memref<256x288xbf16, #tpu.memory_space<vmem>>) attributes {dimension_semantics = [#tpu.dimension_semantics<parallel>], iteration_bounds = array<i64: 2>, scalar_prefetch = 0 : i64, scratch_operands = 2 : i64, tpu.core_type = #tpu.core_type<tc>, window_params = [{transform_indices = @transform_0, window_bounds = array<i64: 1, 256, 64>}, {pipeline_mode = #tpu.pipeline_mode<synchronous>, transform_indices = @transform_1, window_bounds = array<i64: 64, 160>}, {pipeline_mode = #tpu.pipeline_mode<synchronous>, transform_indices = @transform_2, window_bounds = array<i64: 288, 32>}, {pipeline_mode = #tpu.pipeline_mode<synchronous>, transform_indices = @transform_3, window_bounds = array<i64: 32, 128>}, {pipeline_mode = #tpu.pipeline_mode<synchronous>, transform_indices = @transform_4, window_bounds = array<i64: 8, 128>}, {pipeline_mode = #tpu.pipeline_mode<synchronous>, transform_indices = @transform_5, window_bounds = array<i64: 128, 32>}, {pipeline_mode = #tpu.pipeline_mode<synchronous>, transform_indices = @transform_6, window_bounds = array<i64: 32, 128>}, {transform_indices = @transform_7, window_bounds = array<i64: 1, 256, 128>}]} {
    %c0 = arith.constant 0 : index
    %c0_0 = arith.constant 0 : index
    %0 = vector.load %arg6[%c0, %c0_0] : memref<128x32xf32, #tpu.memory_space<vmem>>, vector<128x32xf32>
    %c0_1 = arith.constant 0 : index
    %c0_2 = arith.constant 0 : index
    %1 = vector.load %arg7[%c0_1, %c0_2] : memref<32x128xf32, #tpu.memory_space<vmem>>, vector<32x128xf32>
    %c0_3 = arith.constant 0 : index
    %c0_4 = arith.constant 0 : index
    %2 = vector.load %arg5[%c0_3, %c0_4] : memref<8x128xf32, #tpu.memory_space<vmem>>, vector<1x32xf32>
    %c1 = arith.constant 1 : index
    %c0_5 = arith.constant 0 : index
    %3 = vector.load %arg5[%c1, %c0_5] : memref<8x128xf32, #tpu.memory_space<vmem>>, vector<1x32xf32>
    %c2 = arith.constant 2 : index
    %c0_6 = arith.constant 0 : index
    %4 = vector.load %arg5[%c2, %c0_6] : memref<8x128xf32, #tpu.memory_space<vmem>>, vector<1x32xf32>
    %c3 = arith.constant 3 : index
    %c0_7 = arith.constant 0 : index
    %5 = vector.load %arg5[%c3, %c0_7] : memref<8x128xf32, #tpu.memory_space<vmem>>, vector<1x32xf32>
    %c4 = arith.constant 4 : index
    %c0_8 = arith.constant 0 : index
    %6 = vector.load %arg5[%c4, %c0_8] : memref<8x128xf32, #tpu.memory_space<vmem>>, vector<1x128xf32>
    %c5 = arith.constant 5 : index
    %c0_9 = arith.constant 0 : index
    %7 = vector.load %arg5[%c5, %c0_9] : memref<8x128xf32, #tpu.memory_space<vmem>>, vector<1x128xf32>
    %c0_10 = arith.constant 0 : index
    %c0_11 = arith.constant 0 : index
    %c0_12 = arith.constant 0 : index
    %8 = vector.load %arg1[%c0_10, %c0_11, %c0_12] : memref<1x256x64xbf16, #tpu.memory_space<vmem>>, vector<1x256x64xbf16>
    %9 = vector.shape_cast %8 : vector<1x256x64xbf16> to vector<256x64xbf16>
    %c0_13 = arith.constant 0 : index
    %c0_14 = arith.constant 0 : index
    %10 = vector.load %arg2[%c0_13, %c0_14] : memref<64x160xbf16, #tpu.memory_space<vmem>>, vector<64x160xbf16>
    %cst = arith.constant dense<0.000000e+00> : vector<256x160xf32>
    %11 = tpu.matmul %9, %10, %cst {dimension_numbers = #tpu.dot_dimension_numbers<[1], [0], [0], [1], [0, 0, 1, 1], [], []>} : vector<256x64xbf16>, vector<64x160xbf16>, vector<256x160xf32> -> vector<256x160xf32>
    %c6 = arith.constant 6 : index
    %c0_15 = arith.constant 0 : index
    %12 = vector.load %arg5[%c6, %c0_15] : memref<8x128xf32, #tpu.memory_space<vmem>>, vector<1x128xf32>
    %c7 = arith.constant 7 : index
    %c0_16 = arith.constant 0 : index
    %13 = vector.load %arg5[%c7, %c0_16] : memref<8x128xf32, #tpu.memory_space<vmem>>, vector<1x128xf32>
    %14 = vector.extract_strided_slice %11 {offsets = [0, 0], sizes = [256, 128], strides = [1, 1]} : vector<256x160xf32> to vector<256x128xf32>
    %cst_17 = arith.constant dense<0.000000e+00> : vector<128xf32>
    %15 = vector.multi_reduction <add>, %14, %cst_17 [0] : vector<256x128xf32> to vector<128xf32>
    %16 = vector.shape_cast %15 : vector<128xf32> to vector<1x128xf32>
    %17 = arith.mulf %14, %14 : vector<256x128xf32>
    %cst_18 = arith.constant dense<0.000000e+00> : vector<128xf32>
    %18 = vector.multi_reduction <add>, %17, %cst_18 [0] : vector<256x128xf32> to vector<128xf32>
    %19 = vector.shape_cast %18 : vector<128xf32> to vector<1x128xf32>
    %cst_19 = arith.constant 2.560000e+02 : f32
    %20 = vector.broadcast %cst_19 : f32 to vector<1x128xf32>
    %21 = arith.divf %16, %20 : vector<1x128xf32>
    %cst_20 = arith.constant 2.560000e+02 : f32
    %22 = vector.broadcast %cst_20 : f32 to vector<1x128xf32>
    %23 = arith.divf %19, %22 : vector<1x128xf32>
    %24 = arith.mulf %21, %21 : vector<1x128xf32>
    %25 = arith.subf %23, %24 : vector<1x128xf32>
    %cst_21 = arith.constant 9.99999974E-6 : f32
    %26 = vector.broadcast %cst_21 : f32 to vector<1x128xf32>
    %27 = arith.addf %25, %26 : vector<1x128xf32>
    %28 = math.rsqrt %27 : vector<1x128xf32>
    %29 = arith.mulf %28, %12 : vector<1x128xf32>
    %30 = arith.mulf %21, %29 : vector<1x128xf32>
    %31 = arith.subf %13, %30 : vector<1x128xf32>
    %32 = vector.broadcast %29 : vector<1x128xf32> to vector<256x128xf32>
    %33 = arith.mulf %14, %32 : vector<256x128xf32>
    %34 = vector.broadcast %31 : vector<1x128xf32> to vector<256x128xf32>
    %35 = arith.addf %33, %34 : vector<256x128xf32>
    %36 = vector.extract_strided_slice %11 {offsets = [0, 128], sizes = [256, 32], strides = [1, 1]} : vector<256x160xf32> to vector<256x32xf32>
    %cst_22 = arith.constant dense<0.000000e+00> : vector<32xf32>
    %37 = vector.multi_reduction <add>, %36, %cst_22 [0] : vector<256x32xf32> to vector<32xf32>
    %38 = vector.shape_cast %37 : vector<32xf32> to vector<1x32xf32>
    %39 = arith.mulf %36, %36 : vector<256x32xf32>
    %cst_23 = arith.constant dense<0.000000e+00> : vector<32xf32>
    %40 = vector.multi_reduction <add>, %39, %cst_23 [0] : vector<256x32xf32> to vector<32xf32>
    %41 = vector.shape_cast %40 : vector<32xf32> to vector<1x32xf32>
    %cst_24 = arith.constant 2.560000e+02 : f32
    %42 = vector.broadcast %cst_24 : f32 to vector<1x32xf32>
    %43 = arith.divf %38, %42 : vector<1x32xf32>
    %cst_25 = arith.constant 2.560000e+02 : f32
    %44 = vector.broadcast %cst_25 : f32 to vector<1x32xf32>
    %45 = arith.divf %41, %44 : vector<1x32xf32>
    %46 = arith.mulf %43, %43 : vector<1x32xf32>
    %47 = arith.subf %45, %46 : vector<1x32xf32>
    %cst_26 = arith.constant 9.99999997E-7 : f32
    %48 = vector.broadcast %cst_26 : f32 to vector<1x32xf32>
    %49 = arith.addf %47, %48 : vector<1x32xf32>
    %50 = math.rsqrt %49 : vector<1x32xf32>
    %51 = arith.mulf %50, %2 : vector<1x32xf32>
    %52 = arith.mulf %43, %51 : vector<1x32xf32>
    %53 = arith.subf %3, %52 : vector<1x32xf32>
    %54 = vector.broadcast %51 : vector<1x32xf32> to vector<256x32xf32>
    %55 = arith.mulf %36, %54 : vector<256x32xf32>
    %56 = vector.broadcast %53 : vector<1x32xf32> to vector<256x32xf32>
    %57 = arith.addf %55, %56 : vector<256x32xf32>
    %cst_27 = arith.constant 0.000000e+00 : f32
    %58 = vector.broadcast %cst_27 : f32 to vector<256x32xf32>
    %59 = arith.maximumf %57, %58 : vector<256x32xf32>
    %cst_28 = arith.constant 0.000000e+00 : f32
    %60 = vector.broadcast %cst_28 : f32 to vector<24x32xf32>
    %c0_29 = arith.constant 0 : index
    %c0_30 = arith.constant 0 : index
    %61 = vector.load %arg9[%c0_29, %c0_30] : memref<297x32xf32, #tpu.memory_space<vmem>>, vector<24x32xf32>
    tpu.vector_store %arg9[%c0_29, %c0_30], %60 {strides = array<i32>} : memref<297x32xf32, #tpu.memory_space<vmem>>, vector<24x32xf32>,
    %cst_31 = arith.constant 0.000000e+00 : f32
    %62 = vector.broadcast %cst_31 : f32 to vector<17x32xf32>
    %c280 = arith.constant 280 : index
    %c0_32 = arith.constant 0 : index
    %63 = vector.load %arg9[%c280, %c0_32] : memref<297x32xf32, #tpu.memory_space<vmem>>, vector<17x32xf32>
    tpu.vector_store %arg9[%c280, %c0_32], %62 {strides = array<i32>} : memref<297x32xf32, #tpu.memory_space<vmem>>, vector<17x32xf32>,
    %c24 = arith.constant 24 : index
    %c0_33 = arith.constant 0 : index
    %64 = vector.load %arg9[%c24, %c0_33] : memref<297x32xf32, #tpu.memory_space<vmem>>, vector<256x32xf32>
    tpu.vector_store %arg9[%c24, %c0_33], %59 {strides = array<i32>} : memref<297x32xf32, #tpu.memory_space<vmem>>, vector<256x32xf32>,
    %65 = tpu.iota {dimensions = array<i32: 0>} : vector<256x1xi32>
    %c16_i32 = arith.constant 16 : i32
    %c0_i32 = arith.constant 0 : i32
    %66 = arith.cmpi eq, %c16_i32, %c0_i32 : i32
    %c1_i32 = arith.constant 1 : i32
    %67 = arith.select %66, %c1_i32, %c16_i32 : i32
    %68 = vector.broadcast %67 : i32 to vector<256x1xi32>
    %69 = arith.remsi %65, %68 : vector<256x1xi32>
    %c0_i32_34 = arith.constant 0 : i32
    %70 = vector.broadcast %c0_i32_34 : i32 to vector<256x1xi32>
    %71 = arith.cmpi ne, %69, %70 : vector<256x1xi32>
    %c0_i32_35 = arith.constant 0 : i32
    %72 = vector.broadcast %c0_i32_35 : i32 to vector<256x1xi32>
    %73 = arith.cmpi slt, %69, %72 : vector<256x1xi32>
    %c0_i32_36 = arith.constant 0 : i32
    %74 = arith.cmpi slt, %67, %c0_i32_36 : i32
    %75 = vector.broadcast %74 : i1 to vector<256x1xi1>
    %76 = vector.broadcast %75 : vector<256x1xi1> to vector<256x1xi1>
    %77 = arith.xori %73, %76 : vector<256x1xi1>
    %78 = arith.andi %77, %71 : vector<256x1xi1>
    %79 = vector.broadcast %67 : i32 to vector<256x1xi32>
    %80 = arith.addi %69, %79 : vector<256x1xi32>
    %81 = arith.select %78, %80, %69 : vector<256x1xi1>, vector<256x1xi32>
    %c1_i32_37 = arith.constant 1 : i32
    %82 = vector.broadcast %c1_i32_37 : i32 to vector<256x1xi32>
    %83 = arith.cmpi sge, %81, %82 : vector<256x1xi32>
    %c14_i32 = arith.constant 14 : i32
    %84 = vector.broadcast %c14_i32 : i32 to vector<256x1xi32>
    %85 = arith.cmpi sle, %81, %84 : vector<256x1xi32>
    %c7_38 = arith.constant 7 : index
    %c0_39 = arith.constant 0 : index
    %86 = vector.load %arg9[%c7_38, %c0_39] : memref<297x32xf32, #tpu.memory_space<vmem>>, vector<256x32xf32>
    %cst_40 = arith.constant 0.000000e+00 : f32
    %87 = vector.shape_cast %83 : vector<256x1xi1> to vector<256x1xi1>
    %88 = vector.broadcast %87 : vector<256x1xi1> to vector<256x32xi1>
    %89 = vector.broadcast %cst_40 : f32 to vector<256x32xf32>
    %90 = arith.select %88, %86, %89 : vector<256x32xi1>, vector<256x32xf32>
    %91 = arith.truncf %90 : vector<256x32xf32> to vector<256x32xbf16>
    %c0_41 = arith.constant 0 : index
    %c0_42 = arith.constant 0 : index
    %92 = vector.load %arg10[%c0_41, %c0_42] : memref<256x288xbf16, #tpu.memory_space<vmem>>, vector<256x32xbf16>
    tpu.vector_store %arg10[%c0_41, %c0_42], %91 {strides = array<i32>} : memref<256x288xbf16, #tpu.memory_space<vmem>>, vector<256x32xbf16>,
    %c8 = arith.constant 8 : index
    %c0_43 = arith.constant 0 : index
    %93 = vector.load %arg9[%c8, %c0_43] : memref<297x32xf32, #tpu.memory_space<vmem>>, vector<256x32xf32>
    %94 = arith.truncf %93 : vector<256x32xf32> to vector<256x32xbf16>
    %c0_44 = arith.constant 0 : index
    %c32 = arith.constant 32 : index
    %95 = vector.load %arg10[%c0_44, %c32] : memref<256x288xbf16, #tpu.memory_space<vmem>>, vector<256x32xbf16>
    tpu.vector_store %arg10[%c0_44, %c32], %94 {strides = array<i32>} : memref<256x288xbf16, #tpu.memory_space<vmem>>, vector<256x32xbf16>,
    %c9 = arith.constant 9 : index
    %c0_45 = arith.constant 0 : index
    %96 = vector.load %arg9[%c9, %c0_45] : memref<297x32xf32, #tpu.memory_space<vmem>>, vector<256x32xf32>
    %cst_46 = arith.constant 0.000000e+00 : f32
    %97 = vector.shape_cast %85 : vector<256x1xi1> to vector<256x1xi1>
    %98 = vector.broadcast %97 : vector<256x1xi1> to vector<256x32xi1>
    %99 = vector.broadcast %cst_46 : f32 to vector<256x32xf32>
    %100 = arith.select %98, %96, %99 : vector<256x32xi1>, vector<256x32xf32>
    %101 = arith.truncf %100 : vector<256x32xf32> to vector<256x32xbf16>
    %c0_47 = arith.constant 0 : index
    %c64 = arith.constant 64 : index
    %102 = vector.load %arg10[%c0_47, %c64] : memref<256x288xbf16, #tpu.memory_space<vmem>>, vector<256x32xbf16>
    tpu.vector_store %arg10[%c0_47, %c64], %101 {strides = array<i32>} : memref<256x288xbf16, #tpu.memory_space<vmem>>, vector<256x32xbf16>,
    %c23 = arith.constant 23 : index
    %c0_48 = arith.constant 0 : index
    %103 = vector.load %arg9[%c23, %c0_48] : memref<297x32xf32, #tpu.memory_space<vmem>>, vector<256x32xf32>
    %cst_49 = arith.constant 0.000000e+00 : f32
    %104 = vector.shape_cast %83 : vector<256x1xi1> to vector<256x1xi1>
    %105 = vector.broadcast %104 : vector<256x1xi1> to vector<256x32xi1>
    %106 = vector.broadcast %cst_49 : f32 to vector<256x32xf32>
    %107 = arith.select %105, %103, %106 : vector<256x32xi1>, vector<256x32xf32>
    %108 = arith.truncf %107 : vector<256x32xf32> to vector<256x32xbf16>
    %c0_50 = arith.constant 0 : index
    %c96 = arith.constant 96 : index
    %109 = vector.load %arg10[%c0_50, %c96] : memref<256x288xbf16, #tpu.memory_space<vmem>>, vector<256x32xbf16>
    tpu.vector_store %arg10[%c0_50, %c96], %108 {strides = array<i32>} : memref<256x288xbf16, #tpu.memory_space<vmem>>, vector<256x32xbf16>,
    %c24_51 = arith.constant 24 : index
    %c0_52 = arith.constant 0 : index
    %110 = vector.load %arg9[%c24_51, %c0_52] : memref<297x32xf32, #tpu.memory_space<vmem>>, vector<256x32xf32>
    %111 = arith.truncf %110 : vector<256x32xf32> to vector<256x32xbf16>
    %c0_53 = arith.constant 0 : index
    %c128 = arith.constant 128 : index
    %112 = vector.load %arg10[%c0_53, %c128] : memref<256x288xbf16, #tpu.memory_space<vmem>>, vector<256x32xbf16>
    tpu.vector_store %arg10[%c0_53, %c128], %111 {strides = array<i32>} : memref<256x288xbf16, #tpu.memory_space<vmem>>, vector<256x32xbf16>,
    %c25 = arith.constant 25 : index
    %c0_54 = arith.constant 0 : index
    %113 = vector.load %arg9[%c25, %c0_54] : memref<297x32xf32, #tpu.memory_space<vmem>>, vector<256x32xf32>
    %cst_55 = arith.constant 0.000000e+00 : f32
    %114 = vector.shape_cast %85 : vector<256x1xi1> to vector<256x1xi1>
    %115 = vector.broadcast %114 : vector<256x1xi1> to vector<256x32xi1>
    %116 = vector.broadcast %cst_55 : f32 to vector<256x32xf32>
    %117 = arith.select %115, %113, %116 : vector<256x32xi1>, vector<256x32xf32>
    %118 = arith.truncf %117 : vector<256x32xf32> to vector<256x32xbf16>
    %c0_56 = arith.constant 0 : index
    %c160 = arith.constant 160 : index
    %119 = vector.load %arg10[%c0_56, %c160] : memref<256x288xbf16, #tpu.memory_space<vmem>>, vector<256x32xbf16>
    tpu.vector_store %arg10[%c0_56, %c160], %118 {strides = array<i32>} : memref<256x288xbf16, #tpu.memory_space<vmem>>, vector<256x32xbf16>,
    %c39 = arith.constant 39 : index
    %c0_57 = arith.constant 0 : index
    %120 = vector.load %arg9[%c39, %c0_57] : memref<297x32xf32, #tpu.memory_space<vmem>>, vector<256x32xf32>
    %cst_58 = arith.constant 0.000000e+00 : f32
    %121 = vector.shape_cast %83 : vector<256x1xi1> to vector<256x1xi1>
    %122 = vector.broadcast %121 : vector<256x1xi1> to vector<256x32xi1>
    %123 = vector.broadcast %cst_58 : f32 to vector<256x32xf32>
    %124 = arith.select %122, %120, %123 : vector<256x32xi1>, vector<256x32xf32>
    %125 = arith.truncf %124 : vector<256x32xf32> to vector<256x32xbf16>
    %c0_59 = arith.constant 0 : index
    %c192 = arith.constant 192 : index
    %126 = vector.load %arg10[%c0_59, %c192] : memref<256x288xbf16, #tpu.memory_space<vmem>>, vector<256x32xbf16>
    tpu.vector_store %arg10[%c0_59, %c192], %125 {strides = array<i32>} : memref<256x288xbf16, #tpu.memory_space<vmem>>, vector<256x32xbf16>,
    %c40 = arith.constant 40 : index
    %c0_60 = arith.constant 0 : index
    %127 = vector.load %arg9[%c40, %c0_60] : memref<297x32xf32, #tpu.memory_space<vmem>>, vector<256x32xf32>
    %128 = arith.truncf %127 : vector<256x32xf32> to vector<256x32xbf16>
    %c0_61 = arith.constant 0 : index
    %c224 = arith.constant 224 : index
    %129 = vector.load %arg10[%c0_61, %c224] : memref<256x288xbf16, #tpu.memory_space<vmem>>, vector<256x32xbf16>
    tpu.vector_store %arg10[%c0_61, %c224], %128 {strides = array<i32>} : memref<256x288xbf16, #tpu.memory_space<vmem>>, vector<256x32xbf16>,
    %c41 = arith.constant 41 : index
    %c0_62 = arith.constant 0 : index
    %130 = vector.load %arg9[%c41, %c0_62] : memref<297x32xf32, #tpu.memory_space<vmem>>, vector<256x32xf32>
    %cst_63 = arith.constant 0.000000e+00 : f32
    %131 = vector.shape_cast %85 : vector<256x1xi1> to vector<256x1xi1>
    %132 = vector.broadcast %131 : vector<256x1xi1> to vector<256x32xi1>
    %133 = vector.broadcast %cst_63 : f32 to vector<256x32xf32>
    %134 = arith.select %132, %130, %133 : vector<256x32xi1>, vector<256x32xf32>
    %135 = arith.truncf %134 : vector<256x32xf32> to vector<256x32xbf16>
    %c0_64 = arith.constant 0 : index
    %c256 = arith.constant 256 : index
    %136 = vector.load %arg10[%c0_64, %c256] : memref<256x288xbf16, #tpu.memory_space<vmem>>, vector<256x32xbf16>
    tpu.vector_store %arg10[%c0_64, %c256], %135 {strides = array<i32>} : memref<256x288xbf16, #tpu.memory_space<vmem>>, vector<256x32xbf16>,
    %c0_65 = arith.constant 0 : index
    %c0_66 = arith.constant 0 : index
    %137 = vector.load %arg10[%c0_65, %c0_66] : memref<256x288xbf16, #tpu.memory_space<vmem>>, vector<256x288xbf16>
    %c0_67 = arith.constant 0 : index
    %c0_68 = arith.constant 0 : index
    %138 = vector.load %arg3[%c0_67, %c0_68] : memref<288x32xbf16, #tpu.memory_space<vmem>>, vector<288x32xbf16>
    %cst_69 = arith.constant dense<0.000000e+00> : vector<256x32xf32>
    %139 = tpu.matmul %137, %138, %cst_69 {dimension_numbers = #tpu.dot_dimension_numbers<[1], [0], [0], [1], [0, 0, 1, 1], [], []>} : vector<256x288xbf16>, vector<288x32xbf16>, vector<256x32xf32> -> vector<256x32xf32>
    %cst_70 = arith.constant dense<0.000000e+00> : vector<32xf32>
    %140 = vector.multi_reduction <add>, %139, %cst_70 [0] : vector<256x32xf32> to vector<32xf32>
    %141 = vector.shape_cast %140 : vector<32xf32> to vector<1x32xf32>
    %142 = arith.mulf %139, %139 : vector<256x32xf32>
    %cst_71 = arith.constant dense<0.000000e+00> : vector<32xf32>
    %143 = vector.multi_reduction <add>, %142, %cst_71 [0] : vector<256x32xf32> to vector<32xf32>
    %144 = vector.shape_cast %143 : vector<32xf32> to vector<1x32xf32>
    %cst_72 = arith.constant 2.560000e+02 : f32
    %145 = vector.broadcast %cst_72 : f32 to vector<1x32xf32>
    %146 = arith.divf %141, %145 : vector<1x32xf32>
    %cst_73 = arith.constant 2.560000e+02 : f32
    %147 = vector.broadcast %cst_73 : f32 to vector<1x32xf32>
    %148 = arith.divf %144, %147 : vector<1x32xf32>
    %149 = arith.mulf %146, %146 : vector<1x32xf32>
    %150 = arith.subf %148, %149 : vector<1x32xf32>
    %cst_74 = arith.constant 9.99999997E-7 : f32
    %151 = vector.broadcast %cst_74 : f32 to vector<1x32xf32>
    %152 = arith.addf %150, %151 : vector<1x32xf32>
    %153 = math.rsqrt %152 : vector<1x32xf32>
    %154 = arith.mulf %153, %4 : vector<1x32xf32>
    %155 = arith.mulf %146, %154 : vector<1x32xf32>
    %156 = arith.subf %5, %155 : vector<1x32xf32>
    %157 = vector.broadcast %154 : vector<1x32xf32> to vector<256x32xf32>
    %158 = arith.mulf %139, %157 : vector<256x32xf32>
    %159 = vector.broadcast %156 : vector<1x32xf32> to vector<256x32xf32>
    %160 = arith.addf %158, %159 : vector<256x32xf32>
    %cst_75 = arith.constant 0.000000e+00 : f32
    %161 = vector.broadcast %cst_75 : f32 to vector<256x32xf32>
    %162 = arith.maximumf %160, %161 : vector<256x32xf32>
    %163 = arith.truncf %162 : vector<256x32xf32> to vector<256x32xbf16>
    %c0_76 = arith.constant 0 : index
    %c0_77 = arith.constant 0 : index
    %164 = vector.load %arg4[%c0_76, %c0_77] : memref<32x128xbf16, #tpu.memory_space<vmem>>, vector<32x128xbf16>
    %cst_78 = arith.constant dense<0.000000e+00> : vector<256x128xf32>
    %165 = tpu.matmul %163, %164, %cst_78 {dimension_numbers = #tpu.dot_dimension_numbers<[1], [0], [0], [1], [0, 0, 1, 1], [], []>} : vector<256x32xbf16>, vector<32x128xbf16>, vector<256x128xf32> -> vector<256x128xf32>
    %cst_79 = arith.constant dense<0.000000e+00> : vector<128xf32>
    %166 = vector.multi_reduction <add>, %165, %cst_79 [0] : vector<256x128xf32> to vector<128xf32>
    %167 = vector.shape_cast %166 : vector<128xf32> to vector<1x128xf32>
    %168 = arith.mulf %165, %165 : vector<256x128xf32>
    %cst_80 = arith.constant dense<0.000000e+00> : vector<128xf32>
    %169 = vector.multi_reduction <add>, %168, %cst_80 [0] : vector<256x128xf32> to vector<128xf32>
    %170 = vector.shape_cast %169 : vector<128xf32> to vector<1x128xf32>
    %cst_81 = arith.constant dense<0.000000e+00> : vector<1x32xf32>
    %171 = tpu.matmul %167, %0, %cst_81 {dimension_numbers = #tpu.dot_dimension_numbers<[1], [0], [0], [1], [0, 0, 1, 1], [], []>} : vector<1x128xf32>, vector<128x32xf32>, vector<1x32xf32> -> vector<1x32xf32>
    %cst_82 = arith.constant 1.024000e+03 : f32
    %172 = vector.broadcast %cst_82 : f32 to vector<1x32xf32>
    %173 = arith.divf %171, %172 : vector<1x32xf32>
    %cst_83 = arith.constant dense<0.000000e+00> : vector<1x32xf32>
    %174 = tpu.matmul %170, %0, %cst_83 {dimension_numbers = #tpu.dot_dimension_numbers<[1], [0], [0], [1], [0, 0, 1, 1], [], []>} : vector<1x128xf32>, vector<128x32xf32>, vector<1x32xf32> -> vector<1x32xf32>
    %cst_84 = arith.constant 1.024000e+03 : f32
    %175 = vector.broadcast %cst_84 : f32 to vector<1x32xf32>
    %176 = arith.divf %174, %175 : vector<1x32xf32>
    %177 = arith.mulf %173, %173 : vector<1x32xf32>
    %178 = arith.subf %176, %177 : vector<1x32xf32>
    %cst_85 = arith.constant 9.99999997E-7 : f32
    %179 = vector.broadcast %cst_85 : f32 to vector<1x32xf32>
    %180 = arith.addf %178, %179 : vector<1x32xf32>
    %181 = math.rsqrt %180 : vector<1x32xf32>
    %cst_86 = arith.constant dense<0.000000e+00> : vector<1x128xf32>
    %182 = tpu.matmul %173, %1, %cst_86 {dimension_numbers = #tpu.dot_dimension_numbers<[1], [0], [0], [1], [0, 0, 1, 1], [], []>} : vector<1x32xf32>, vector<32x128xf32>, vector<1x128xf32> -> vector<1x128xf32>
    %cst_87 = arith.constant dense<0.000000e+00> : vector<1x128xf32>
    %183 = tpu.matmul %181, %1, %cst_87 {dimension_numbers = #tpu.dot_dimension_numbers<[1], [0], [0], [1], [0, 0, 1, 1], [], []>} : vector<1x32xf32>, vector<32x128xf32>, vector<1x128xf32> -> vector<1x128xf32>
    %184 = arith.mulf %183, %6 : vector<1x128xf32>
    %185 = arith.mulf %182, %184 : vector<1x128xf32>
    %186 = arith.subf %7, %185 : vector<1x128xf32>
    %187 = vector.broadcast %184 : vector<1x128xf32> to vector<256x128xf32>
    %188 = arith.mulf %165, %187 : vector<256x128xf32>
    %189 = vector.broadcast %186 : vector<1x128xf32> to vector<256x128xf32>
    %190 = arith.addf %188, %189 : vector<256x128xf32>
    %191 = arith.addf %35, %190 : vector<256x128xf32>
    %cst_88 = arith.constant 0.000000e+00 : f32
    %192 = vector.broadcast %cst_88 : f32 to vector<256x128xf32>
    %193 = arith.maximumf %191, %192 : vector<256x128xf32>
    %c0_89 = arith.constant 0 : index
    %c0_90 = arith.constant 0 : index
    %c0_91 = arith.constant 0 : index
    %194 = vector.load %arg8[%c0_89, %c0_90, %c0_91] : memref<1x256x128xf32, #tpu.memory_space<vmem>>, vector<1x256x128xf32>
    %195 = vector.shape_cast %194 : vector<1x256x128xf32> to vector<256x128xf32>
    %196 = vector.shape_cast %193 : vector<256x128xf32> to vector<1x256x128xf32>
    tpu.vector_store %arg8[%c0_89, %c0_90, %c0_91], %196 {strides = array<i32>} : memref<1x256x128xf32, #tpu.memory_space<vmem>>, vector<1x256x128xf32>,
    return
  }
  func.func @transform_0(%arg0: i32) -> (i32, i32, i32) {
    %c0_i32 = arith.constant 0 : i32
    %c0_i32_0 = arith.constant 0 : i32
    %c0_i32_1 = arith.constant 0 : i32
    return %arg0, %c0_i32, %c0_i32_0 : i32, i32, i32
  }
  func.func @transform_1(%arg0: i32) -> (i32, i32) {
    %c0_i32 = arith.constant 0 : i32
    %c0_i32_0 = arith.constant 0 : i32
    %c0_i32_1 = arith.constant 0 : i32
    return %c0_i32, %c0_i32_0 : i32, i32
  }
  func.func @transform_2(%arg0: i32) -> (i32, i32) {
    %c0_i32 = arith.constant 0 : i32
    %c0_i32_0 = arith.constant 0 : i32
    %c0_i32_1 = arith.constant 0 : i32
    return %c0_i32, %c0_i32_0 : i32, i32
  }
  func.func @transform_3(%arg0: i32) -> (i32, i32) {
    %c0_i32 = arith.constant 0 : i32
    %c0_i32_0 = arith.constant 0 : i32
    %c0_i32_1 = arith.constant 0 : i32
    return %c0_i32, %c0_i32_0 : i32, i32
  }
  func.func @transform_4(%arg0: i32) -> (i32, i32) {
    %c0_i32 = arith.constant 0 : i32
    %c0_i32_0 = arith.constant 0 : i32
    %c0_i32_1 = arith.constant 0 : i32
    return %c0_i32, %c0_i32_0 : i32, i32
  }
  func.func @transform_5(%arg0: i32) -> (i32, i32) {
    %c0_i32 = arith.constant 0 : i32
    %c0_i32_0 = arith.constant 0 : i32
    %c0_i32_1 = arith.constant 0 : i32
    return %c0_i32, %c0_i32_0 : i32, i32
  }
  func.func @transform_6(%arg0: i32) -> (i32, i32) {
    %c0_i32 = arith.constant 0 : i32
    %c0_i32_0 = arith.constant 0 : i32
    %c0_i32_1 = arith.constant 0 : i32
    return %c0_i32, %c0_i32_0 : i32, i32
  }
  func.func @transform_7(%arg0: i32) -> (i32, i32, i32) {
    %c0_i32 = arith.constant 0 : i32
    %c0_i32_0 = arith.constant 0 : i32
    %c0_i32_1 = arith.constant 0 : i32
    return %arg0, %c0_i32, %c0_i32_0 : i32, i32, i32
  }
}

</mosaic_0001>

<llo_original>
// kernel: tpu_custom_call.1
$region0: #{tpu_custom_call.1}
  #allocation0 [shape = 'u32[]', space=smem, size = 0x4, offset = 0x4, fixed_abs, tag = 'smem constant byte address 0x4 - core index']
  #allocation1 [shape = 'u32[144,128]{1,0:T(1,128)}', space=vmem, size = 0x12000, scoped, tag = 'internal scratch']
  #allocation2 [shape = 'f32[297,32]{1,0:T(8,128)}', space=vmem, size = 0x26000, scoped, tag = 'scratch operand']
  #allocation3 [shape = 'bf16[256,288]{1,0:T(16,128)(2,1)}', space=vmem, size = 0x30000, scoped, tag = 'scratch operand']
  %s0 = inlined_call_operand.vmem [shape: bf16[2,256,64], index: 0, kind: input, shape index: {}]
  %s1 = inlined_call_operand.vmem [shape: bf16[64,160], index: 1, kind: input, shape index: {}]
  %s2 = inlined_call_operand.vmem [shape: bf16[288,32], index: 2, kind: input, shape index: {}]
  %s3 = inlined_call_operand.vmem [shape: bf16[32,128], index: 3, kind: input, shape index: {}]
  %s4 = inlined_call_operand.vmem [shape: f32[8,128], index: 4, kind: input, shape index: {}]
  %s5 = inlined_call_operand.vmem [shape: f32[128,32], index: 5, kind: input, shape index: {}]
  %s6 = inlined_call_operand.vmem [shape: f32[32,128], index: 6, kind: input, shape index: {}]
  %s7 = inlined_call_operand.hbm [shape: f32[2,256,128], index: 7, kind: output, shape index: {}]
  %s8 = sld [smem:[#allocation0]]
  $region61: #{tpu_custom_call.1} parent=0
    _
  %s10 = ssub.s32 1, %s8
  %s11 = scalar_select 0, %s10, %s8
  $region1: #{tpu_custom_call.1} parent=0
    #allocation4 [shape = 'u8[262144]{0}', space=vmem, size = 0x40000, scoped, tag = 'output window, operand 0']
    #allocation5 [shape = 's32[2]{0}', space=sflag, size = 0x8, scoped, tag = 'scoped memory for tpu_custom_call.1']
    %12 = vsyncpa [#allocation5], 0
    %s13 = scalar_lea.sflag [#allocation5], 1
    %14 = vsyncpa %s13, 0
    loop: start=0, step=1, limit=4
    $region2: #{tpu_custom_call.1} parent=1 // loop_pre_header
      _
    $region3: #{tpu_custom_call.1} parent=1 // loop_header
      %s16 = sphi 0, %s20
      %p17 = scmp.ge.s32.totalorder %s16, 4
      %s26 = sphi 0, %s28
      %s29 = sphi 0, %s26
      %s30 = sphi 0, %s29
      %s46 = sphi 0, %s30
      %s50 = sphi 0, %s50
      %s52 = sphi 0, %s50
      %s53 = sphi 0, %s52
      %s67 = sphi 0, %s53
      %s71 = sphi 0, %s71
      %s73 = sphi 0, %s71
      %s74 = sphi 0, %s73
      %s88 = sphi 0, %s74
      %s92 = sphi 0, %s92
      %s94 = sphi 0, %s92
      %s95 = sphi 0, %s94
      %s109 = sphi 0, %s95
      %s113 = sphi 0, %s113
      %s115 = sphi 0, %s113
      %s116 = sphi 0, %s115
      %s130 = sphi 0, %s116
      %s134 = sphi 0, %s134
      %s136 = sphi 0, %s134
      %s137 = sphi 0, %s136
      %s151 = sphi 0, %s137
      %s155 = sphi 0, %s155
      %s157 = sphi 0, %s155
      %s158 = sphi 0, %s157
      %s172 = sphi 0, %s158
      %s178 = sphi 0, %s180
      %s181 = sphi 0, %s178
      %s182 = sphi 0, %s181
      %s198 = sphi 0, %s182
    $region4: #{tpu_custom_call.1} parent=1 // loop_header_branch
      %19 = sbr.rel (%p17) target = $region8
    $region5: #{tpu_custom_call.1} parent=1 // loop_body
      %s21 = ssub.s32 %s16, 1
      %s22 = ssub.s32 %s16, 2
      %s23 = sadd.s32 %s16, 1
      %s24 = ssub.s32 %s16, %s23
      %p25 = scmp.eq.s32.totalorder %s24, 0
      %s27 = sadd.s32 %s26, 1
      %s28 = scalar_select %p25, %s26, %s27
      %p31 = pneg %p25
      %p32 = scmp.eq.s32.totalorder %s16, 1
      %p33 = por %p31, %p32
      %p34 = scmp.ne.s32.totalorder %s26, %s29
      %p35 = scmp.eq.s32.totalorder %s16, 0
      %p36 = por %p34, %p35
      %p37 = scmp.ne.s32.totalorder %s26, %s29
      %p38 = scmp.eq.s32.totalorder %s21, 1
      %p39 = por %p37, %p38
      %p40 = scmp.ne.s32.totalorder %s29, %s30
      %p41 = scmp.eq.s32.totalorder %s21, 0
      %p42 = por %p40, %p41
      %p43 = scmp.ne.s32.totalorder %s29, %s30
      %p44 = scmp.eq.s32.totalorder %s22, 1
      %p45 = por %p43, %p44
      %p47 = scmp.ne.s32.totalorder %s30, %s46
      %p48 = scmp.eq.s32.totalorder %s22, 0
      %p49 = por %p47, %p48
      %s51 = sadd.s32 %s50, 1
      %p54 = scmp.eq.s32.totalorder %s16, 1
      %p55 = scmp.ne.s32.totalorder %s50, %s52
      %p56 = scmp.eq.s32.totalorder %s16, 0
      %p57 = por %p55, %p56
      %p58 = scmp.ne.s32.totalorder %s50, %s52
      %p59 = scmp.eq.s32.totalorder %s21, 1
      %p60 = por %p58, %p59
      %p61 = scmp.ne.s32.totalorder %s52, %s53
      %p62 = scmp.eq.s32.totalorder %s21, 0
      %p63 = por %p61, %p62
      %p64 = scmp.ne.s32.totalorder %s52, %s53
      %p65 = scmp.eq.s32.totalorder %s22, 1
      %p66 = por %p64, %p65
      %p68 = scmp.ne.s32.totalorder %s53, %s67
      %p69 = scmp.eq.s32.totalorder %s22, 0
      %p70 = por %p68, %p69
      %s72 = sadd.s32 %s71, 1
      %p75 = scmp.eq.s32.totalorder %s16, 1
      %p76 = scmp.ne.s32.totalorder %s71, %s73
      %p77 = scmp.eq.s32.totalorder %s16, 0
      %p78 = por %p76, %p77
      %p79 = scmp.ne.s32.totalorder %s71, %s73
      %p80 = scmp.eq.s32.totalorder %s21, 1
      %p81 = por %p79, %p80
      %p82 = scmp.ne.s32.totalorder %s73, %s74
      %p83 = scmp.eq.s32.totalorder %s21, 0
      %p84 = por %p82, %p83
      %p85 = scmp.ne.s32.totalorder %s73, %s74
      %p86 = scmp.eq.s32.totalorder %s22, 1
      %p87 = por %p85, %p86
      %p89 = scmp.ne.s32.totalorder %s74, %s88
      %p90 = scmp.eq.s32.totalorder %s22, 0
      %p91 = por %p89, %p90
      %s93 = sadd.s32 %s92, 1
      %p96 = scmp.eq.s32.totalorder %s16, 1
      %p97 = scmp.ne.s32.totalorder %s92, %s94
      %p98 = scmp.eq.s32.totalorder %s16, 0
      %p99 = por %p97, %p98
      %p100 = scmp.ne.s32.totalorder %s92, %s94
      %p101 = scmp.eq.s32.totalorder %s21, 1
      %p102 = por %p100, %p101
      %p103 = scmp.ne.s32.totalorder %s94, %s95
      %p104 = scmp.eq.s32.totalorder %s21, 0
      %p105 = por %p103, %p104
      %p106 = scmp.ne.s32.totalorder %s94, %s95
      %p107 = scmp.eq.s32.totalorder %s22, 1
      %p108 = por %p106, %p107
      %p110 = scmp.ne.s32.totalorder %s95, %s109
      %p111 = scmp.eq.s32.totalorder %s22, 0
      %p112 = por %p110, %p111
      %s114 = sadd.s32 %s113, 1
      %p117 = scmp.eq.s32.totalorder %s16, 1
      %p118 = scmp.ne.s32.totalorder %s113, %s115
      %p119 = scmp.eq.s32.totalorder %s16, 0
      %p120 = por %p118, %p119
      %p121 = scmp.ne.s32.totalorder %s113, %s115
      %p122 = scmp.eq.s32.totalorder %s21, 1
      %p123 = por %p121, %p122
      %p124 = scmp.ne.s32.totalorder %s115, %s116
      %p125 = scmp.eq.s32.totalorder %s21, 0
      %p126 = por %p124, %p125
      %p127 = scmp.ne.s32.totalorder %s115, %s116
      %p128 = scmp.eq.s32.totalorder %s22, 1
      %p129 = por %p127, %p128
      %p131 = scmp.ne.s32.totalorder %s116, %s130
      %p132 = scmp.eq.s32.totalorder %s22, 0
      %p133 = por %p131, %p132
      %s135 = sadd.s32 %s134, 1
      %p138 = scmp.eq.s32.totalorder %s16, 1
      %p139 = scmp.ne.s32.totalorder %s134, %s136
      %p140 = scmp.eq.s32.totalorder %s16, 0
      %p141 = por %p139, %p140
      %p142 = scmp.ne.s32.totalorder %s134, %s136
      %p143 = scmp.eq.s32.totalorder %s21, 1
      %p144 = por %p142, %p143
      %p145 = scmp.ne.s32.totalorder %s136, %s137
      %p146 = scmp.eq.s32.totalorder %s21, 0
      %p147 = por %p145, %p146
      %p148 = scmp.ne.s32.totalorder %s136, %s137
      %p149 = scmp.eq.s32.totalorder %s22, 1
      %p150 = por %p148, %p149
      %p152 = scmp.ne.s32.totalorder %s137, %s151
      %p153 = scmp.eq.s32.totalorder %s22, 0
      %p154 = por %p152, %p153
      %s156 = sadd.s32 %s155, 1
      %p159 = scmp.eq.s32.totalorder %s16, 1
      %p160 = scmp.ne.s32.totalorder %s155, %s157
      %p161 = scmp.eq.s32.totalorder %s16, 0
      %p162 = por %p160, %p161
      %p163 = scmp.ne.s32.totalorder %s155, %s157
      %p164 = scmp.eq.s32.totalorder %s21, 1
      %p165 = por %p163, %p164
      %p166 = scmp.ne.s32.totalorder %s157, %s158
      %p167 = scmp.eq.s32.totalorder %s21, 0
      %p168 = por %p166, %p167
      %p169 = scmp.ne.s32.totalorder %s157, %s158
      %p170 = scmp.eq.s32.totalorder %s22, 1
      %p171 = por %p169, %p170
      %p173 = scmp.ne.s32.totalorder %s158, %s172
      %p174 = scmp.eq.s32.totalorder %s22, 0
      %p175 = por %p173, %p174
      %s176 = ssub.s32 %s16, %s23
      %p177 = scmp.eq.s32.totalorder %s176, 0
      %s179 = sadd.s32 %s178, 1
      %s180 = scalar_select %p177, %s178, %s179
      %p183 = pneg %p177
      %p184 = scmp.eq.s32.totalorder %s16, 1
      %p185 = por %p183, %p184
      %p186 = scmp.ne.s32.totalorder %s178, %s181
      %p187 = scmp.eq.s32.totalorder %s16, 0
      %p188 = por %p186, %p187
      %p189 = scmp.ne.s32.totalorder %s178, %s181
      %p190 = scmp.eq.s32.totalorder %s21, 1
      %p191 = por %p189, %p190
      %p192 = scmp.ne.s32.totalorder %s181, %s182
      %p193 = scmp.eq.s32.totalorder %s21, 0
      %p194 = por %p192, %p193
      %p195 = scmp.ne.s32.totalorder %s181, %s182
      %p196 = scmp.eq.s32.totalorder %s22, 1
      %p197 = por %p195, %p196
      %p199 = scmp.ne.s32.totalorder %s182, %s198
      %p200 = scmp.eq.s32.totalorder %s22, 0
      %p201 = por %p199, %p200
      %p202 = scmp.le.s32.totalorder 1, %s16
      %p203 = scmp.lt.s32.totalorder %s16, 3
      %p204 = pnand %p202, %p203
      %p205 = pneg %p204
      // Predicated region
      $region9: #{tpu_custom_call.1} parent=5 // pred_check
        _
      $region10: #{tpu_custom_call.1} parent=5 // pred_check_branch
        %207 = sbr.rel (%p204) target = $region12
      $region11: #{tpu_custom_call.1} parent=5 // pred_region
        %s208 = ssub.s32 %s16, 1
        // Predicated region
        $region13: #{tpu_custom_call.1} parent=11 // pred_check
          %p209 = pneg %p63
        $region14: #{tpu_custom_call.1} parent=11 // pred_check_branch
          %211 = sbr.rel (%p209) target = $region16
        $region15: #{tpu_custom_call.1} parent=11 // pred_region
          _
        $region16: #{tpu_custom_call.1} parent=11 // pred_fallthru
          _
        // Predicated region
        $region17: #{tpu_custom_call.1} parent=11 // pred_check
          %p212 = pneg %p84
        $region18: #{tpu_custom_call.1} parent=11 // pred_check_branch
          %214 = sbr.rel (%p212) target = $region20
        $region19: #{tpu_custom_call.1} parent=11 // pred_region
          _
        $region20: #{tpu_custom_call.1} parent=11 // pred_fallthru
          _
        // Predicated region
        $region21: #{tpu_custom_call.1} parent=11 // pred_check
          %p215 = pneg %p105
        $region22: #{tpu_custom_call.1} parent=11 // pred_check_branch
          %217 = sbr.rel (%p215) target = $region24
        $region23: #{tpu_custom_call.1} parent=11 // pred_region
          _
        $region24: #{tpu_custom_call.1} parent=11 // pred_fallthru
          _
        // Predicated region
        $region25: #{tpu_custom_call.1} parent=11 // pred_check
          %p218 = pneg %p126
        $region26: #{tpu_custom_call.1} parent=11 // pred_check_branch
          %220 = sbr.rel (%p218) target = $region28
        $region27: #{tpu_custom_call.1} parent=11 // pred_region
          _
        $region28: #{tpu_custom_call.1} parent=11 // pred_fallthru
          _
        // Predicated region
        $region29: #{tpu_custom_call.1} parent=11 // pred_check
          %p221 = pneg %p147
        $region30: #{tpu_custom_call.1} parent=11 // pred_check_branch
          %223 = sbr.rel (%p221) target = $region32
        $region31: #{tpu_custom_call.1} parent=11 // pred_region
          _
        $region32: #{tpu_custom_call.1} parent=11 // pred_fallthru
          _
        // Predicated region
        $region33: #{tpu_custom_call.1} parent=11 // pred_check
          %p224 = pneg %p168
        $region34: #{tpu_custom_call.1} parent=11 // pred_check_branch
          %226 = sbr.rel (%p224) target = $region36
        $region35: #{tpu_custom_call.1} parent=11 // pred_region
          _
        $region36: #{tpu_custom_call.1} parent=11 // pred_fallthru
          _
      $region12: #{tpu_custom_call.1} parent=5 // pred_fallthru
        _
      %p227 = scmp.lt.s32.totalorder %s16, 2
      // Predicated region
      $region37: #{tpu_custom_call.1} parent=5 // pred_check
        %p228 = pneg %p227
      $region38: #{tpu_custom_call.1} parent=5 // pred_check_branch
        %230 = sbr.rel (%p228) target = $region40
      $region39: #{tpu_custom_call.1} parent=5 // pred_region
        // Predicated region
        $region41: #{tpu_custom_call.1} parent=39 // pred_check
          %p231 = pneg %p36
        $region42: #{tpu_custom_call.1} parent=39 // pred_check_branch
          %233 = sbr.rel (%p231) target = $region44
        $region43: #{tpu_custom_call.1} parent=39 // pred_region
          %p234 = scmp.lt.s32.totalorder %s16, 1
          %s235 = scalar_select %p234, %s16, 1
          %s236 = smul.addr %s235, 32
          %s237 = smul.addr %s236, 4
          %s238 = scalar_lea.vmem %s0, %s237
        $region44: #{tpu_custom_call.1} parent=39 // pred_fallthru
          _
      $region40: #{tpu_custom_call.1} parent=5 // pred_fallthru
        _
      %p239 = scmp.le.s32.totalorder 1, %s16
      %p240 = scmp.lt.s32.totalorder %s16, 3
      %p241 = pnand %p239, %p240
      %p242 = pneg %p241
      // Predicated region
      $region45: #{tpu_custom_call.1} parent=5 // pred_check
        _
      $region46: #{tpu_custom_call.1} parent=5 // pred_check_branch
        %244 = sbr.rel (%p241) target = $region48
      $region47: #{tpu_custom_call.1} parent=5 // pred_region
        %s245 = ssub.s32 %s16, 1
        %p246 = scmp.lt.s32.totalorder %s21, 1
        %s247 = scalar_select %p246, %s21, 1
        %s248 = smul.addr %s247, 32
        %s249 = smul.addr %s248, 4
        %s250 = scalar_lea.vmem %s0, %s249
        %p251 = pneg %p42
        %p252 = pneg %p39
        %p253 = pneg %p63
        %p254 = pneg %p60
        %p255 = pneg %p84
        %p256 = pneg %p81
        %p257 = pneg %p105
        %p258 = pneg %p102
        %p259 = pneg %p126
        %p260 = pneg %p123
        %p261 = pneg %p147
        %p262 = pneg %p144
        %p263 = pneg %p168
        %p264 = pneg %p165
        %p265 = pneg %p194
        %p266 = pneg %p191
        %s267 = sand.u32 %s181, 1
        %s268 = scalar_lea.sflag [#allocation5], %s267
        %s269 = sand.u32 %s181, 1
        %s270 = smul.addr %s269, 256
        %s271 = scalar_lea.vmem [#allocation4], %s270
        %p272 = scmp.lt.s32.totalorder %s21, 1
        %s273 = scalar_select %p272, %s21, 1
        %s274 = smul.addr %s273, 32
        %s275 = smul.addr %s274, 4
        %s276 = scalar_lea.vmem %s0, %s275
        %v278 = vld [vmem:[%s5] sm:$0xff]
        %v279 = vld [vmem:[%s5 + $0x8] sm:$0xff]
        %v280 = vld [vmem:[%s5 + $0x10] sm:$0xff]
        %v281 = vld [vmem:[%s5 + $0x18] sm:$0xff]
        %v282 = vld [vmem:[%s5 + $0x20] sm:$0xff]
        %v283 = vld [vmem:[%s5 + $0x28] sm:$0xff]
        %v284 = vld [vmem:[%s5 + $0x30] sm:$0xff]
        %v285 = vld [vmem:[%s5 + $0x38] sm:$0xff]
        %v286 = vld [vmem:[%s5 + $0x40] sm:$0xff]
        %v287 = vld [vmem:[%s5 + $0x48] sm:$0xff]
        %v288 = vld [vmem:[%s5 + $0x50] sm:$0xff]
        %v289 = vld [vmem:[%s5 + $0x58] sm:$0xff]
        %v290 = vld [vmem:[%s5 + $0x60] sm:$0xff]
        %v291 = vld [vmem:[%s5 + $0x68] sm:$0xff]
        %v292 = vld [vmem:[%s5 + $0x70] sm:$0xff]
        %v293 = vld [vmem:[%s5 + $0x78] sm:$0xff]
        %v294 = vld [vmem:[%s6] sm:$0xff]
        %v295 = vld [vmem:[%s6 + $0x8] sm:$0xff]
        %v296 = vld [vmem:[%s6 + $0x10] sm:$0xff]
        %v297 = vld [vmem:[%s6 + $0x18] sm:$0xff]
        %v298 = vld [vmem:[%s4] sm:$0x1]
        %v299 = vld [vmem:[%s4 + $0x1] sm:$0x1]
        %v300 = vld [vmem:[%s4 + $0x2] sm:$0x1]
        %v301 = vld [vmem:[%s4 + $0x3] sm:$0x1]
        %v302 = vld [vmem:[%s4 + $0x4] sm:$0x1]
        %v303 = vld [vmem:[%s4 + $0x5] sm:$0x1]
        %v304 = vld [vmem:[%s276] sm:$0xf]
        %v305 = vld [vmem:[%s276 + $0x4] sm:$0xf]
        %v306 = vld [vmem:[%s276 + $0x8] sm:$0xf]
        %v307 = vld [vmem:[%s276 + $0xc] sm:$0xf]
        %v308 = vld [vmem:[%s276 + $0x10] sm:$0xf]
        %v309 = vld [vmem:[%s276 + $0x14] sm:$0xf]
        %v310 = vld [vmem:[%s276 + $0x18] sm:$0xf]
        %v311 = vld [vmem:[%s276 + $0x1c] sm:$0xf]
        %v312 = vld [vmem:[%s276 + $0x20] sm:$0xf]
        %v313 = vld [vmem:[%s276 + $0x24] sm:$0xf]
        %v314 = vld [vmem:[%s276 + $0x28] sm:$0xf]
        %v315 = vld [vmem:[%s276 + $0x2c] sm:$0xf]
        %v316 = vld [vmem:[%s276 + $0x30] sm:$0xf]
        %v317 = vld [vmem:[%s276 + $0x34] sm:$0xf]
        %v318 = vld [vmem:[%s276 + $0x38] sm:$0xf]
        %v319 = vld [vmem:[%s276 + $0x3c] sm:$0xf]
        %v320 = vld [vmem:[%s276 + $0x40] sm:$0xf]
        %v321 = vld [vmem:[%s276 + $0x44] sm:$0xf]
        %v322 = vld [vmem:[%s276 + $0x48] sm:$0xf]
        %v323 = vld [vmem:[%s276 + $0x4c] sm:$0xf]
        %v324 = vld [vmem:[%s276 + $0x50] sm:$0xf]
        %v325 = vld [vmem:[%s276 + $0x54] sm:$0xf]
        %v326 = vld [vmem:[%s276 + $0x58] sm:$0xf]
        %v327 = vld [vmem:[%s276 + $0x5c] sm:$0xf]
        %v328 = vld [vmem:[%s276 + $0x60] sm:$0xf]
        %v329 = vld [vmem:[%s276 + $0x64] sm:$0xf]
        %v330 = vld [vmem:[%s276 + $0x68] sm:$0xf]
        %v331 = vld [vmem:[%s276 + $0x6c] sm:$0xf]
        %v332 = vld [vmem:[%s276 + $0x70] sm:$0xf]
        %v333 = vld [vmem:[%s276 + $0x74] sm:$0xf]
        %v334 = vld [vmem:[%s276 + $0x78] sm:$0xf]
        %v335 = vld [vmem:[%s276 + $0x7c] sm:$0xf]
        %v336 = vld [vmem:[%s1] sm:$0xff]
        %v337 = vld [vmem:[%s1 + $0x8] sm:$0xff]
        %v338 = vld [vmem:[%s1 + $0x10] sm:$0xff]
        %v339 = vld [vmem:[%s1 + $0x18] sm:$0xff]
        %v340 = vld [vmem:[%s1 + $0x20] sm:$0xff]
        %v341 = vld [vmem:[%s1 + $0x28] sm:$0xff]
        %v342 = vld [vmem:[%s1 + $0x30] sm:$0xff]
        %v343 = vld [vmem:[%s1 + $0x38] sm:$0xff]
        %v376 = vunpack.c.l.b16 %v304
        %v377 = vunpack.c.l.b16 %v305
        %v378 = vunpack.c.l.b16 %v306
        %v379 = vunpack.c.l.b16 %v307
        %v380 = vunpack.c.l.b16 %v308
        %v381 = vunpack.c.l.b16 %v309
        %v382 = vunpack.c.l.b16 %v310
        %v383 = vunpack.c.l.b16 %v311
        %v384 = vunpack.c.l.b16 %v312
        %v385 = vunpack.c.l.b16 %v313
        %v386 = vunpack.c.l.b16 %v314
        %v387 = vunpack.c.l.b16 %v315
        %v388 = vunpack.c.l.b16 %v316
        %v389 = vunpack.c.l.b16 %v317
        %v390 = vunpack.c.l.b16 %v318
        %v391 = vunpack.c.l.b16 %v319
        %v392 = vunpack.c.l.b16 %v320
        %v393 = vunpack.c.l.b16 %v321
        %v394 = vunpack.c.l.b16 %v322
        %v395 = vunpack.c.l.b16 %v323
        %v396 = vunpack.c.l.b16 %v324
        %v397 = vunpack.c.l.b16 %v325
        %v398 = vunpack.c.l.b16 %v326
        %v399 = vunpack.c.l.b16 %v327
        %v400 = vunpack.c.l.b16 %v328
        %v401 = vunpack.c.l.b16 %v329
        %v402 = vunpack.c.l.b16 %v330
        %v403 = vunpack.c.l.b16 %v331
        %v404 = vunpack.c.l.b16 %v332
        %v405 = vunpack.c.l.b16 %v333
        %v406 = vunpack.c.l.b16 %v334
        %v407 = vunpack.c.l.b16 %v335
        %v408 = vpack.c.b16 %v377, %v376
        %v409 = vpack.c.b16 %v379, %v378
        %v410 = vpack.c.b16 %v381, %v380
        %v411 = vpack.c.b16 %v383, %v382
        %v412 = vpack.c.b16 %v385, %v384
        %v413 = vpack.c.b16 %v387, %v386
        %v414 = vpack.c.b16 %v389, %v388
        %v415 = vpack.c.b16 %v391, %v390
        %v416 = vpack.c.b16 %v393, %v392
        %v417 = vpack.c.b16 %v395, %v394
        %v418 = vpack.c.b16 %v397, %v396
        %v419 = vpack.c.b16 %v399, %v398
        %v420 = vpack.c.b16 %v401, %v400
        %v421 = vpack.c.b16 %v403, %v402
        %v422 = vpack.c.b16 %v405, %v404
        %v423 = vpack.c.b16 %v407, %v406
        %v432 = vunpack.c.l.b16 %v336
        %v433 = vunpack.c.h.b16 %v336
        %v434 = vunpack.c.l.b16 %v337
        %v435 = vunpack.c.h.b16 %v337
        %v436 = vunpack.c.l.b16 %v338
        %v437 = vunpack.c.h.b16 %v338
        %v438 = vunpack.c.l.b16 %v339
        %v439 = vunpack.c.h.b16 %v339
        %v440 = vunpack.c.l.b16 %v340
        %v441 = vunpack.c.h.b16 %v340
        %v442 = vunpack.c.l.b16 %v341
        %v443 = vunpack.c.h.b16 %v341
        %v444 = vunpack.c.l.b16 %v342
        %v445 = vunpack.c.h.b16 %v342
        %v446 = vunpack.c.l.b16 %v343
        %v447 = vunpack.c.h.b16 %v343
        %v448 = vpack.c.b16 %v434, %v432
        %v449 = vpack.c.b16 %v435, %v433
        %v450 = vpack.c.b16 %v438, %v436
        %v451 = vpack.c.b16 %v439, %v437
        %v452 = vpack.c.b16 %v442, %v440
        %v453 = vpack.c.b16 %v443, %v441
        %v454 = vpack.c.b16 %v446, %v444
        %v455 = vpack.c.b16 %v447, %v445
        %vm464 = vcmask 523264
        %v466 = vsel %vm464, %v408, 0
        %v469 = vsel %vm464, %v409, 0
        %v472 = vsel %vm464, %v410, 0
        %v475 = vsel %vm464, %v411, 0
        %v478 = vsel %vm464, %v412, 0
        %v481 = vsel %vm464, %v413, 0
        %v484 = vsel %vm464, %v414, 0
        %v487 = vsel %vm464, %v415, 0
        %v490 = vsel %vm464, %v416, 0
        %v493 = vsel %vm464, %v417, 0
        %v496 = vsel %vm464, %v418, 0
        %v499 = vsel %vm464, %v419, 0
        %v502 = vsel %vm464, %v420, 0
        %v505 = vsel %vm464, %v421, 0
        %v508 = vsel %vm464, %v422, 0
        %v511 = vsel %vm464, %v423, 0
        %513 = vmatprep.subr.bf16.mxu0 %v449
        %514 = vmatpush1.bf16.msra.mxu0 %v448
        %515 = vmatprep.subr.bf16.mxu0 %v451
        %516 = vmatpush1.bf16.msra.mxu0 %v450
        %517 = vmatprep.subr.bf16.mxu0 %v453
        %518 = vmatpush1.bf16.msra.mxu0 %v452
        %519 = vmatprep.subr.bf16.mxu0 %v455
        %520 = vmatpush1.bf16.msra.mxu0 %v454
        %521 = vmatprep.subr.bf16.mxu0 0
        %522 = vmatpush1.bf16.msra.mxu0 0
        %523 = vmatprep.subr.bf16.mxu0 0
        %524 = vmatpush1.bf16.msra.mxu0 0
        %525 = vmatprep.subr.bf16.mxu0 0
        %526 = vmatpush1.bf16.msra.mxu0 0
        %527 = vmatprep.subr.bf16.mxu0 0
        %528 = vmatpush1.bf16.msra.mxu0 0
        %529 = vmatprep.subr.bf16.mxu0 0
        %530 = vmatpush1.bf16.msra.mxu0 0
        %531 = vmatprep.subr.bf16.mxu0 0
        %532 = vmatpush1.bf16.msra.mxu0 0
        %533 = vmatprep.subr.bf16.mxu0 0
        %534 = vmatpush1.bf16.msra.mxu0 0
        %535 = vmatprep.subr.bf16.mxu0 0
        %536 = vmatpush1.bf16.msra.mxu0 0
        %537 = vmatprep.subr.bf16.mxu0 0
        %538 = vmatpush1.bf16.msra.mxu0 0
        %539 = vmatprep.subr.bf16.mxu0 0
        %540 = vmatpush1.bf16.msra.mxu0 0
        %541 = vmatprep.subr.bf16.mxu0 0
        %542 = vmatpush1.bf16.msra.mxu0 0
        %543 = vmatprep.subr.bf16.mxu0 0
        %544 = vmatpush1.bf16.msra.mxu0 0
        %545 = vmatprep.mubr.bf16.mxu0 0
        %546 = vmatmul.mubr.bf16.gmra.mrb[0].mxu0 %v466
        %v547 = vpop.f32.mrb[0].mxu0
        %v548 = vadd.f32 0.0, %v547
        %v549 = vpop.f32.mrb[0].mxu0
        %v550 = vadd.f32 0.0, %v549
        %v551 = vpop.f32.mrb[0].mxu0
        %v552 = vadd.f32 0.0, %v551
        %v553 = vpop.f32.mrb[0].mxu0
        %v554 = vadd.f32 0.0, %v553
        %555 = vmatprep.mubr.bf16.mxu0 0
        %556 = vmatmul.mubr.bf16.gmra.mrb[0].mxu0 %v469
        %v557 = vpop.f32.mrb[0].mxu0
        %v558 = vadd.f32 0.0, %v557
        %v559 = vpop.f32.mrb[0].mxu0
        %v560 = vadd.f32 0.0, %v559
        %v561 = vpop.f32.mrb[0].mxu0
        %v562 = vadd.f32 0.0, %v561
        %v563 = vpop.f32.mrb[0].mxu0
        %v564 = vadd.f32 0.0, %v563
        %565 = vmatprep.mubr.bf16.mxu0 0
        %566 = vmatmul.mubr.bf16.gmra.mrb[0].mxu0 %v472
        %v567 = vpop.f32.mrb[0].mxu0
        %v568 = vadd.f32 0.0, %v567
        %v569 = vpop.f32.mrb[0].mxu0
        %v570 = vadd.f32 0.0, %v569
        %v571 = vpop.f32.mrb[0].mxu0
        %v572 = vadd.f32 0.0, %v571
        %v573 = vpop.f32.mrb[0].mxu0
        %v574 = vadd.f32 0.0, %v573
        %575 = vmatprep.mubr.bf16.mxu0 0
        %576 = vmatmul.mubr.bf16.gmra.mrb[0].mxu0 %v475
        %v577 = vpop.f32.mrb[0].mxu0
        %v578 = vadd.f32 0.0, %v577
        %v579 = vpop.f32.mrb[0].mxu0
        %v580 = vadd.f32 0.0, %v579
        %v581 = vpop.f32.mrb[0].mxu0
        %v582 = vadd.f32 0.0, %v581
        %v583 = vpop.f32.mrb[0].mxu0
        %v584 = vadd.f32 0.0, %v583
        %585 = vmatprep.mubr.bf16.mxu0 0
        %586 = vmatmul.mubr.bf16.gmra.mrb[0].mxu0 %v478
        %v587 = vpop.f32.mrb[0].mxu0
        %v588 = vadd.f32 0.0, %v587
        %v589 = vpop.f32.mrb[0].mxu0
        %v590 = vadd.f32 0.0, %v589
        %v591 = vpop.f32.mrb[0].mxu0
        %v592 = vadd.f32 0.0, %v591
        %v593 = vpop.f32.mrb[0].mxu0
        %v594 = vadd.f32 0.0, %v593
        %595 = vmatprep.mubr.bf16.mxu0 0
        %596 = vmatmul.mubr.bf16.gmra.mrb[0].mxu0 %v481
        %v597 = vpop.f32.mrb[0].mxu0
        %v598 = vadd.f32 0.0, %v597
        %v599 = vpop.f32.mrb[0].mxu0
        %v600 = vadd.f32 0.0, %v599
        %v601 = vpop.f32.mrb[0].mxu0
        %v602 = vadd.f32 0.0, %v601
        %v603 = vpop.f32.mrb[0].mxu0
        %v604 = vadd.f32 0.0, %v603
        %605 = vmatprep.mubr.bf16.mxu0 0
        %606 = vmatmul.mubr.bf16.gmra.mrb[0].mxu0 %v484
        %v607 = vpop.f32.mrb[0].mxu0
        %v608 = vadd.f32 0.0, %v607
        %v609 = vpop.f32.mrb[0].mxu0
        %v610 = vadd.f32 0.0, %v609
        %v611 = vpop.f32.mrb[0].mxu0
        %v612 = vadd.f32 0.0, %v611
        %v613 = vpop.f32.mrb[0].mxu0
        %v614 = vadd.f32 0.0, %v613
        %615 = vmatprep.mubr.bf16.mxu0 0
        %616 = vmatmul.mubr.bf16.gmra.mrb[0].mxu0 %v487
        %v617 = vpop.f32.mrb[0].mxu0
        %v618 = vadd.f32 0.0, %v617
        %v619 = vpop.f32.mrb[0].mxu0
        %v620 = vadd.f32 0.0, %v619
        %v621 = vpop.f32.mrb[0].mxu0
        %v622 = vadd.f32 0.0, %v621
        %v623 = vpop.f32.mrb[0].mxu0
        %v624 = vadd.f32 0.0, %v623
        %625 = vmatprep.mubr.bf16.mxu0 0
        %626 = vmatmul.mubr.bf16.gmra.mrb[0].mxu0 %v490
        %v627 = vpop.f32.mrb[0].mxu0
        %v628 = vadd.f32 0.0, %v627
        %v629 = vpop.f32.mrb[0].mxu0
        %v630 = vadd.f32 0.0, %v629
        %v631 = vpop.f32.mrb[0].mxu0
        %v632 = vadd.f32 0.0, %v631
        %v633 = vpop.f32.mrb[0].mxu0
        %v634 = vadd.f32 0.0, %v633
        %635 = vmatprep.mubr.bf16.mxu0 0
        %636 = vmatmul.mubr.bf16.gmra.mrb[0].mxu0 %v493
        %v637 = vpop.f32.mrb[0].mxu0
        %v638 = vadd.f32 0.0, %v637
        %v639 = vpop.f32.mrb[0].mxu0
        %v640 = vadd.f32 0.0, %v639
        %v641 = vpop.f32.mrb[0].mxu0
        %v642 = vadd.f32 0.0, %v641
        %v643 = vpop.f32.mrb[0].mxu0
        %v644 = vadd.f32 0.0, %v643
        %645 = vmatprep.mubr.bf16.mxu0 0
        %646 = vmatmul.mubr.bf16.gmra.mrb[0].mxu0 %v496
        %v647 = vpop.f32.mrb[0].mxu0
        %v648 = vadd.f32 0.0, %v647
        %v649 = vpop.f32.mrb[0].mxu0
        %v650 = vadd.f32 0.0, %v649
        %v651 = vpop.f32.mrb[0].mxu0
        %v652 = vadd.f32 0.0, %v651
        %v653 = vpop.f32.mrb[0].mxu0
        %v654 = vadd.f32 0.0, %v653
        %655 = vmatprep.mubr.bf16.mxu0 0
        %656 = vmatmul.mubr.bf16.gmra.mrb[0].mxu0 %v499
        %v657 = vpop.f32.mrb[0].mxu0
        %v658 = vadd.f32 0.0, %v657
        %v659 = vpop.f32.mrb[0].mxu0
        %v660 = vadd.f32 0.0, %v659
        %v661 = vpop.f32.mrb[0].mxu0
        %v662 = vadd.f32 0.0, %v661
        %v663 = vpop.f32.mrb[0].mxu0
        %v664 = vadd.f32 0.0, %v663
        %665 = vmatprep.mubr.bf16.mxu0 0
        %666 = vmatmul.mubr.bf16.gmra.mrb[0].mxu0 %v502
        %v667 = vpop.f32.mrb[0].mxu0
        %v668 = vadd.f32 0.0, %v667
        %v669 = vpop.f32.mrb[0].mxu0
        %v670 = vadd.f32 0.0, %v669
        %v671 = vpop.f32.mrb[0].mxu0
        %v672 = vadd.f32 0.0, %v671
        %v673 = vpop.f32.mrb[0].mxu0
        %v674 = vadd.f32 0.0, %v673
        %675 = vmatprep.mubr.bf16.mxu0 0
        %676 = vmatmul.mubr.bf16.gmra.mrb[0].mxu0 %v505
        %v677 = vpop.f32.mrb[0].mxu0
        %v678 = vadd.f32 0.0, %v677
        %v679 = vpop.f32.mrb[0].mxu0
        %v680 = vadd.f32 0.0, %v679
        %v681 = vpop.f32.mrb[0].mxu0
        %v682 = vadd.f32 0.0, %v681
        %v683 = vpop.f32.mrb[0].mxu0
        %v684 = vadd.f32 0.0, %v683
        %685 = vmatprep.mubr.bf16.mxu0 0
        %686 = vmatmul.mubr.bf16.gmra.mrb[0].mxu0 %v508
        %v687 = vpop.f32.mrb[0].mxu0
        %v688 = vadd.f32 0.0, %v687
        %v689 = vpop.f32.mrb[0].mxu0
        %v690 = vadd.f32 0.0, %v689
        %v691 = vpop.f32.mrb[0].mxu0
        %v692 = vadd.f32 0.0, %v691
        %v693 = vpop.f32.mrb[0].mxu0
        %v694 = vadd.f32 0.0, %v693
        %695 = vmatprep.mubr.bf16.mxu0 0
        %696 = vmatmul.mubr.bf16.gmra.mrb[0].mxu0 %v511
        %v697 = vpop.f32.mrb[0].mxu0
        %v698 = vadd.f32 0.0, %v697
        %v699 = vpop.f32.mrb[0].mxu0
        %v700 = vadd.f32 0.0, %v699
        %v701 = vpop.f32.mrb[0].mxu0
        %v702 = vadd.f32 0.0, %v701
        %v703 = vpop.f32.mrb[0].mxu0
        %v704 = vadd.f32 0.0, %v703
        %705 = vdwg.mxu0
        %v706 = vld [vmem:[%s4 + $0x6] sm:$0x1]
        %v707 = vld [vmem:[%s4 + $0x7] sm:$0x1]
        %v708 = vadd.f32 %v548, %v552
        %v709 = vadd.f32 %v708, %v558
        %v710 = vadd.f32 %v709, %v562
        %v711 = vadd.f32 %v710, %v568
        %v712 = vadd.f32 %v711, %v572
        %v713 = vadd.f32 %v712, %v578
        %v714 = vadd.f32 %v713, %v582
        %v715 = vadd.f32 %v714, %v588
        %v716 = vadd.f32 %v715, %v592
        %v717 = vadd.f32 %v716, %v598
        %v718 = vadd.f32 %v717, %v602
        %v719 = vadd.f32 %v718, %v608
        %v720 = vadd.f32 %v719, %v612
        %v721 = vadd.f32 %v720, %v618
        %v722 = vadd.f32 %v721, %v622
        %v723 = vadd.f32 %v722, %v628
        %v724 = vadd.f32 %v723, %v632
        %v725 = vadd.f32 %v724, %v638
        %v726 = vadd.f32 %v725, %v642
        %v727 = vadd.f32 %v726, %v648
        %v728 = vadd.f32 %v727, %v652
        %v729 = vadd.f32 %v728, %v658
        %v730 = vadd.f32 %v729, %v662
        %v731 = vadd.f32 %v730, %v668
        %v732 = vadd.f32 %v731, %v672
        %v733 = vadd.f32 %v732, %v678
        %v734 = vadd.f32 %v733, %v682
        %v735 = vadd.f32 %v734, %v688
        %v736 = vadd.f32 %v735, %v692
        %v737 = vadd.f32 %v736, %v698
        %v738 = vadd.f32 %v737, %v702
        %v739 = vrot.slane %v738, 4
        %v740 = vadd.f32 %v738, %v739
        %v741 = vrot.slane %v740, 2
        %v742 = vadd.f32 %v740, %v741
        %v743 = vrot.slane %v742, 1
        %v744 = vadd.f32 %v742, %v743
        %v745 = vmul.f32 %v548, %v548
        %v746 = vmul.f32 %v552, %v552
        %v747 = vmul.f32 %v558, %v558
        %v748 = vmul.f32 %v562, %v562
        %v749 = vmul.f32 %v568, %v568
        %v750 = vmul.f32 %v572, %v572
        %v751 = vmul.f32 %v578, %v578
        %v752 = vmul.f32 %v582, %v582
        %v753 = vmul.f32 %v588, %v588
        %v754 = vmul.f32 %v592, %v592
        %v755 = vmul.f32 %v598, %v598
        %v756 = vmul.f32 %v602, %v602
        %v757 = vmul.f32 %v608, %v608
        %v758 = vmul.f32 %v612, %v612
        %v759 = vmul.f32 %v618, %v618
        %v760 = vmul.f32 %v622, %v622
        %v761 = vmul.f32 %v628, %v628
        %v762 = vmul.f32 %v632, %v632
        %v763 = vmul.f32 %v638, %v638
        %v764 = vmul.f32 %v642, %v642
        %v765 = vmul.f32 %v648, %v648
        %v766 = vmul.f32 %v652, %v652
        %v767 = vmul.f32 %v658, %v658
        %v768 = vmul.f32 %v662, %v662
        %v769 = vmul.f32 %v668, %v668
        %v770 = vmul.f32 %v672, %v672
        %v771 = vmul.f32 %v678, %v678
        %v772 = vmul.f32 %v682, %v682
        %v773 = vmul.f32 %v688, %v688
        %v774 = vmul.f32 %v692, %v692
        %v775 = vmul.f32 %v698, %v698
        %v776 = vmul.f32 %v702, %v702
        %v777 = vadd.f32 %v745, %v746
        %v778 = vadd.f32 %v777, %v747
        %v779 = vadd.f32 %v778, %v748
        %v780 = vadd.f32 %v779, %v749
        %v781 = vadd.f32 %v780, %v750
        %v782 = vadd.f32 %v781, %v751
        %v783 = vadd.f32 %v782, %v752
        %v784 = vadd.f32 %v783, %v753
        %v785 = vadd.f32 %v784, %v754
        %v786 = vadd.f32 %v785, %v755
        %v787 = vadd.f32 %v786, %v756
        %v788 = vadd.f32 %v787, %v757
        %v789 = vadd.f32 %v788, %v758
        %v790 = vadd.f32 %v789, %v759
        %v791 = vadd.f32 %v790, %v760
        %v792 = vadd.f32 %v791, %v761
        %v793 = vadd.f32 %v792, %v762
        %v794 = vadd.f32 %v793, %v763
        %v795 = vadd.f32 %v794, %v764
        %v796 = vadd.f32 %v795, %v765
        %v797 = vadd.f32 %v796, %v766
        %v798 = vadd.f32 %v797, %v767
        %v799 = vadd.f32 %v798, %v768
        %v800 = vadd.f32 %v799, %v769
        %v801 = vadd.f32 %v800, %v770
        %v802 = vadd.f32 %v801, %v771
        %v803 = vadd.f32 %v802, %v772
        %v804 = vadd.f32 %v803, %v773
        %v805 = vadd.f32 %v804, %v774
        %v806 = vadd.f32 %v805, %v775
        %v807 = vadd.f32 %v806, %v776
        %v808 = vrot.slane %v807, 4
        %v809 = vadd.f32 %v807, %v808
        %v810 = vrot.slane %v809, 2
        %v811 = vadd.f32 %v809, %v810
        %v812 = vrot.slane %v811, 1
        %v813 = vadd.f32 %v811, %v812
        %v814 = vrcp.pop 256.0
        %v815 = vmul.f32 %v744, %v814
        %v816 = vmul.f32 %v813, %v814
        %v817 = vmul.f32 %v815, %v815
        %v818 = vsub.f32 %v816, %v817
        %v819 = vadd.f32 %v818, 1e-05
        %v820 = vrsqrt.pop %v819
        %v821 = vmul.f32 %v820, %v706
        %v822 = vmul.f32 %v815, %v821
        %v823 = vsub.f32 %v707, %v822
        %v824 = vlaneseq
        %v825 = vshrl.u32 %v824, 7
        %v826 = vsub.s32 0, %v825
        %v827 = vrot.slane %v821, %v826
        %v828 = vmul.f32 %v548, %v827
        %v829 = vmul.f32 %v552, %v827
        %v830 = vmul.f32 %v558, %v827
        %v831 = vmul.f32 %v562, %v827
        %v832 = vmul.f32 %v568, %v827
        %v833 = vmul.f32 %v572, %v827
        %v834 = vmul.f32 %v578, %v827
        %v835 = vmul.f32 %v582, %v827
        %v836 = vmul.f32 %v588, %v827
        %v837 = vmul.f32 %v592, %v827
        %v838 = vmul.f32 %v598, %v827
        %v839 = vmul.f32 %v602, %v827
        %v840 = vmul.f32 %v608, %v827
        %v841 = vmul.f32 %v612, %v827
        %v842 = vmul.f32 %v618, %v827
        %v843 = vmul.f32 %v622, %v827
        %v844 = vmul.f32 %v628, %v827
        %v845 = vmul.f32 %v632, %v827
        %v846 = vmul.f32 %v638, %v827
        %v847 = vmul.f32 %v642, %v827
        %v848 = vmul.f32 %v648, %v827
        %v849 = vmul.f32 %v652, %v827
        %v850 = vmul.f32 %v658, %v827
        %v851 = vmul.f32 %v662, %v827
        %v852 = vmul.f32 %v668, %v827
        %v853 = vmul.f32 %v672, %v827
        %v854 = vmul.f32 %v678, %v827
        %v855 = vmul.f32 %v682, %v827
        %v856 = vmul.f32 %v688, %v827
        %v857 = vmul.f32 %v692, %v827
        %v858 = vmul.f32 %v698, %v827
        %v859 = vmul.f32 %v702, %v827
        %v860 = vlaneseq
        %v861 = vshrl.u32 %v860, 7
        %v862 = vsub.s32 0, %v861
        %v863 = vrot.slane %v823, %v862
        %v864 = vadd.f32 %v828, %v863
        %v865 = vadd.f32 %v829, %v863
        %v866 = vadd.f32 %v830, %v863
        %v867 = vadd.f32 %v831, %v863
        %v868 = vadd.f32 %v832, %v863
        %v869 = vadd.f32 %v833, %v863
        %v870 = vadd.f32 %v834, %v863
        %v871 = vadd.f32 %v835, %v863
        %v872 = vadd.f32 %v836, %v863
        %v873 = vadd.f32 %v837, %v863
        %v874 = vadd.f32 %v838, %v863
        %v875 = vadd.f32 %v839, %v863
        %v876 = vadd.f32 %v840, %v863
        %v877 = vadd.f32 %v841, %v863
        %v878 = vadd.f32 %v842, %v863
        %v879 = vadd.f32 %v843, %v863
        %v880 = vadd.f32 %v844, %v863
        %v881 = vadd.f32 %v845, %v863
        %v882 = vadd.f32 %v846, %v863
        %v883 = vadd.f32 %v847, %v863
        %v884 = vadd.f32 %v848, %v863
        %v885 = vadd.f32 %v849, %v863
        %v886 = vadd.f32 %v850, %v863
        %v887 = vadd.f32 %v851, %v863
        %v888 = vadd.f32 %v852, %v863
        %v889 = vadd.f32 %v853, %v863
        %v890 = vadd.f32 %v854, %v863
        %v891 = vadd.f32 %v855, %v863
        %v892 = vadd.f32 %v856, %v863
        %v893 = vadd.f32 %v857, %v863
        %v894 = vadd.f32 %v858, %v863
        %v895 = vadd.f32 %v859, %v863
        %vm896 = vcmask 261120
        %v897 = vsel %vm896, %v550, 0.0
        %v898 = vsel %vm896, %v554, 0.0
        %v899 = vadd.f32 %v897, %v898
        %v900 = vsel %vm896, %v560, 0.0
        %v901 = vadd.f32 %v899, %v900
        %v902 = vsel %vm896, %v564, 0.0
        %v903 = vadd.f32 %v901, %v902
        %v904 = vsel %vm896, %v570, 0.0
        %v905 = vadd.f32 %v903, %v904
        %v906 = vsel %vm896, %v574, 0.0
        %v907 = vadd.f32 %v905, %v906
        %v908 = vsel %vm896, %v580, 0.0
        %v909 = vadd.f32 %v907, %v908
        %v910 = vsel %vm896, %v584, 0.0
        %v911 = vadd.f32 %v909, %v910
        %v912 = vsel %vm896, %v590, 0.0
        %v913 = vadd.f32 %v911, %v912
        %v914 = vsel %vm896, %v594, 0.0
        %v915 = vadd.f32 %v913, %v914
        %v916 = vsel %vm896, %v600, 0.0
        %v917 = vadd.f32 %v915, %v916
        %v918 = vsel %vm896, %v604, 0.0
        %v919 = vadd.f32 %v917, %v918
        %v920 = vsel %vm896, %v610, 0.0
        %v921 = vadd.f32 %v919, %v920
        %v922 = vsel %vm896, %v614, 0.0
        %v923 = vadd.f32 %v921, %v922
        %v924 = vsel %vm896, %v620, 0.0
        %v925 = vadd.f32 %v923, %v924
        %v926 = vsel %vm896, %v624, 0.0
        %v927 = vadd.f32 %v925, %v926
        %v928 = vsel %vm896, %v630, 0.0
        %v929 = vadd.f32 %v927, %v928
        %v930 = vsel %vm896, %v634, 0.0
        %v931 = vadd.f32 %v929, %v930
        %v932 = vsel %vm896, %v640, 0.0
        %v933 = vadd.f32 %v931, %v932
        %v934 = vsel %vm896, %v644, 0.0
        %v935 = vadd.f32 %v933, %v934
        %v936 = vsel %vm896, %v650, 0.0
        %v937 = vadd.f32 %v935, %v936
        %v938 = vsel %vm896, %v654, 0.0
        %v939 = vadd.f32 %v937, %v938
        %v940 = vsel %vm896, %v660, 0.0
        %v941 = vadd.f32 %v939, %v940
        %v942 = vsel %vm896, %v664, 0.0
        %v943 = vadd.f32 %v941, %v942
        %v944 = vsel %vm896, %v670, 0.0
        %v945 = vadd.f32 %v943, %v944
        %v946 = vsel %vm896, %v674, 0.0
        %v947 = vadd.f32 %v945, %v946
        %v948 = vsel %vm896, %v680, 0.0
        %v949 = vadd.f32 %v947, %v948
        %v950 = vsel %vm896, %v684, 0.0
        %v951 = vadd.f32 %v949, %v950
        %v952 = vsel %vm896, %v690, 0.0
        %v953 = vadd.f32 %v951, %v952
        %v954 = vsel %vm896, %v694, 0.0
        %v955 = vadd.f32 %v953, %v954
        %v956 = vsel %vm896, %v700, 0.0
        %v957 = vadd.f32 %v955, %v956
        %v958 = vsel %vm896, %v704, 0.0
        %v959 = vadd.f32 %v957, %v958
        %v960 = vrot.slane %v959, 4
        %v961 = vadd.f32 %v959, %v960
        %v962 = vrot.slane %v961, 2
        %v963 = vadd.f32 %v961, %v962
        %v964 = vrot.slane %v963, 1
        %v965 = vadd.f32 %v963, %v964
        %v966 = vmul.f32 %v550, %v550
        %v967 = vmul.f32 %v554, %v554
        %v968 = vmul.f32 %v560, %v560
        %v969 = vmul.f32 %v564, %v564
        %v970 = vmul.f32 %v570, %v570
        %v971 = vmul.f32 %v574, %v574
        %v972 = vmul.f32 %v580, %v580
        %v973 = vmul.f32 %v584, %v584
        %v974 = vmul.f32 %v590, %v590
        %v975 = vmul.f32 %v594, %v594
        %v976 = vmul.f32 %v600, %v600
        %v977 = vmul.f32 %v604, %v604
        %v978 = vmul.f32 %v610, %v610
        %v979 = vmul.f32 %v614, %v614
        %v980 = vmul.f32 %v620, %v620
        %v981 = vmul.f32 %v624, %v624
        %v982 = vmul.f32 %v630, %v630
        %v983 = vmul.f32 %v634, %v634
        %v984 = vmul.f32 %v640, %v640
        %v985 = vmul.f32 %v644, %v644
        %v986 = vmul.f32 %v650, %v650
        %v987 = vmul.f32 %v654, %v654
        %v988 = vmul.f32 %v660, %v660
        %v989 = vmul.f32 %v664, %v664
        %v990 = vmul.f32 %v670, %v670
        %v991 = vmul.f32 %v674, %v674
        %v992 = vmul.f32 %v680, %v680
        %v993 = vmul.f32 %v684, %v684
        %v994 = vmul.f32 %v690, %v690
        %v995 = vmul.f32 %v694, %v694
        %v996 = vmul.f32 %v700, %v700
        %v997 = vmul.f32 %v704, %v704
        %v998 = vsel %vm896, %v966, 0.0
        %v999 = vsel %vm896, %v967, 0.0
        %v1000 = vadd.f32 %v998, %v999
        %v1001 = vsel %vm896, %v968, 0.0
        %v1002 = vadd.f32 %v1000, %v1001
        %v1003 = vsel %vm896, %v969, 0.0
        %v1004 = vadd.f32 %v1002, %v1003
        %v1005 = vsel %vm896, %v970, 0.0
        %v1006 = vadd.f32 %v1004, %v1005
        %v1007 = vsel %vm896, %v971, 0.0
        %v1008 = vadd.f32 %v1006, %v1007
        %v1009 = vsel %vm896, %v972, 0.0
        %v1010 = vadd.f32 %v1008, %v1009
        %v1011 = vsel %vm896, %v973, 0.0
        %v1012 = vadd.f32 %v1010, %v1011
        %v1013 = vsel %vm896, %v974, 0.0
        %v1014 = vadd.f32 %v1012, %v1013
        %v1015 = vsel %vm896, %v975, 0.0
        %v1016 = vadd.f32 %v1014, %v1015
        %v1017 = vsel %vm896, %v976, 0.0
        %v1018 = vadd.f32 %v1016, %v1017
        %v1019 = vsel %vm896, %v977, 0.0
        %v1020 = vadd.f32 %v1018, %v1019
        %v1021 = vsel %vm896, %v978, 0.0
        %v1022 = vadd.f32 %v1020, %v1021
        %v1023 = vsel %vm896, %v979, 0.0
        %v1024 = vadd.f32 %v1022, %v1023
        %v1025 = vsel %vm896, %v980, 0.0
        %v1026 = vadd.f32 %v1024, %v1025
        %v1027 = vsel %vm896, %v981, 0.0
        %v1028 = vadd.f32 %v1026, %v1027
        %v1029 = vsel %vm896, %v982, 0.0
        %v1030 = vadd.f32 %v1028, %v1029
        %v1031 = vsel %vm896, %v983, 0.0
        %v1032 = vadd.f32 %v1030, %v1031
        %v1033 = vsel %vm896, %v984, 0.0
        %v1034 = vadd.f32 %v1032, %v1033
        %v1035 = vsel %vm896, %v985, 0.0
        %v1036 = vadd.f32 %v1034, %v1035
        %v1037 = vsel %vm896, %v986, 0.0
        %v1038 = vadd.f32 %v1036, %v1037
        %v1039 = vsel %vm896, %v987, 0.0
        %v1040 = vadd.f32 %v1038, %v1039
        %v1041 = vsel %vm896, %v988, 0.0
        %v1042 = vadd.f32 %v1040, %v1041
        %v1043 = vsel %vm896, %v989, 0.0
        %v1044 = vadd.f32 %v1042, %v1043
        %v1045 = vsel %vm896, %v990, 0.0
        %v1046 = vadd.f32 %v1044, %v1045
        %v1047 = vsel %vm896, %v991, 0.0
        %v1048 = vadd.f32 %v1046, %v1047
        %v1049 = vsel %vm896, %v992, 0.0
        %v1050 = vadd.f32 %v1048, %v1049
        %v1051 = vsel %vm896, %v993, 0.0
        %v1052 = vadd.f32 %v1050, %v1051
        %v1053 = vsel %vm896, %v994, 0.0
        %v1054 = vadd.f32 %v1052, %v1053
        %v1055 = vsel %vm896, %v995, 0.0
        %v1056 = vadd.f32 %v1054, %v1055
        %v1057 = vsel %vm896, %v996, 0.0
        %v1058 = vadd.f32 %v1056, %v1057
        %v1059 = vsel %vm896, %v997, 0.0
        %v1060 = vadd.f32 %v1058, %v1059
        %v1061 = vrot.slane %v1060, 4
        %v1062 = vadd.f32 %v1060, %v1061
        %v1063 = vrot.slane %v1062, 2
        %v1064 = vadd.f32 %v1062, %v1063
        %v1065 = vrot.slane %v1064, 1
        %v1066 = vadd.f32 %v1064, %v1065
        %v1067 = vmul.f32 %v965, %v814
        %v1068 = vmul.f32 %v1066, %v814
        %v1069 = vmul.f32 %v1067, %v1067
        %v1070 = vsub.f32 %v1068, %v1069
        %v1071 = vadd.f32 %v1070, 1e-06
        %v1072 = vrsqrt.pop %v1071
        %v1073 = vmul.f32 %v1072, %v298
        %v1074 = vmul.f32 %v1067, %v1073
        %v1075 = vsub.f32 %v299, %v1074
        %v1076 = vlaneseq
        %v1077 = vshrl.u32 %v1076, 7
        %v1078 = vsub.s32 0, %v1077
        %v1079 = vrot.slane %v1073, %v1078
        %v1080 = vmul.f32 %v550, %v1079
        %v1081 = vmul.f32 %v554, %v1079
        %v1082 = vmul.f32 %v560, %v1079
        %v1083 = vmul.f32 %v564, %v1079
        %v1084 = vmul.f32 %v570, %v1079
        %v1085 = vmul.f32 %v574, %v1079
        %v1086 = vmul.f32 %v580, %v1079
        %v1087 = vmul.f32 %v584, %v1079
        %v1088 = vmul.f32 %v590, %v1079
        %v1089 = vmul.f32 %v594, %v1079
        %v1090 = vmul.f32 %v600, %v1079
        %v1091 = vmul.f32 %v604, %v1079
        %v1092 = vmul.f32 %v610, %v1079
        %v1093 = vmul.f32 %v614, %v1079
        %v1094 = vmul.f32 %v620, %v1079
        %v1095 = vmul.f32 %v624, %v1079
        %v1096 = vmul.f32 %v630, %v1079
        %v1097 = vmul.f32 %v634, %v1079
        %v1098 = vmul.f32 %v640, %v1079
        %v1099 = vmul.f32 %v644, %v1079
        %v1100 = vmul.f32 %v650, %v1079
        %v1101 = vmul.f32 %v654, %v1079
        %v1102 = vmul.f32 %v660, %v1079
        %v1103 = vmul.f32 %v664, %v1079
        %v1104 = vmul.f32 %v670, %v1079
        %v1105 = vmul.f32 %v674, %v1079
        %v1106 = vmul.f32 %v680, %v1079
        %v1107 = vmul.f32 %v684, %v1079
        %v1108 = vmul.f32 %v690, %v1079
        %v1109 = vmul.f32 %v694, %v1079
        %v1110 = vmul.f32 %v700, %v1079
        %v1111 = vmul.f32 %v704, %v1079
        %v1112 = vlaneseq
        %v1113 = vshrl.u32 %v1112, 7
        %v1114 = vsub.s32 0, %v1113
        %v1115 = vrot.slane %v1075, %v1114
        %v1116 = vadd.f32 %v1080, %v1115
        %v1117 = vadd.f32 %v1081, %v1115
        %v1118 = vadd.f32 %v1082, %v1115
        %v1119 = vadd.f32 %v1083, %v1115
        %v1120 = vadd.f32 %v1084, %v1115
        %v1121 = vadd.f32 %v1085, %v1115
        %v1122 = vadd.f32 %v1086, %v1115
        %v1123 = vadd.f32 %v1087, %v1115
        %v1124 = vadd.f32 %v1088, %v1115
        %v1125 = vadd.f32 %v1089, %v1115
        %v1126 = vadd.f32 %v1090, %v1115
        %v1127 = vadd.f32 %v1091, %v1115
        %v1128 = vadd.f32 %v1092, %v1115
        %v1129 = vadd.f32 %v1093, %v1115
        %v1130 = vadd.f32 %v1094, %v1115
        %v1131 = vadd.f32 %v1095, %v1115
        %v1132 = vadd.f32 %v1096, %v1115
        %v1133 = vadd.f32 %v1097, %v1115
        %v1134 = vadd.f32 %v1098, %v1115
        %v1135 = vadd.f32 %v1099, %v1115
        %v1136 = vadd.f32 %v1100, %v1115
        %v1137 = vadd.f32 %v1101, %v1115
        %v1138 = vadd.f32 %v1102, %v1115
        %v1139 = vadd.f32 %v1103, %v1115
        %v1140 = vadd.f32 %v1104, %v1115
        %v1141 = vadd.f32 %v1105, %v1115
        %v1142 = vadd.f32 %v1106, %v1115
        %v1143 = vadd.f32 %v1107, %v1115
        %v1144 = vadd.f32 %v1108, %v1115
        %v1145 = vadd.f32 %v1109, %v1115
        %v1146 = vadd.f32 %v1110, %v1115
        %v1147 = vadd.f32 %v1111, %v1115
        %v1148 = vmax.f32 %v1116, 0.0
        %v1149 = vmax.f32 %v1117, 0.0
        %v1150 = vmax.f32 %v1118, 0.0
        %v1151 = vmax.f32 %v1119, 0.0
        %v1152 = vmax.f32 %v1120, 0.0
        %v1153 = vmax.f32 %v1121, 0.0
        %v1154 = vmax.f32 %v1122, 0.0
        %v1155 = vmax.f32 %v1123, 0.0
        %v1156 = vmax.f32 %v1124, 0.0
        %v1157 = vmax.f32 %v1125, 0.0
        %v1158 = vmax.f32 %v1126, 0.0
        %v1159 = vmax.f32 %v1127, 0.0
        %v1160 = vmax.f32 %v1128, 0.0
        %v1161 = vmax.f32 %v1129, 0.0
        %v1162 = vmax.f32 %v1130, 0.0
        %v1163 = vmax.f32 %v1131, 0.0
        %v1164 = vmax.f32 %v1132, 0.0
        %v1165 = vmax.f32 %v1133, 0.0
        %v1166 = vmax.f32 %v1134, 0.0
        %v1167 = vmax.f32 %v1135, 0.0
        %v1168 = vmax.f32 %v1136, 0.0
        %v1169 = vmax.f32 %v1137, 0.0
        %v1170 = vmax.f32 %v1138, 0.0
        %v1171 = vmax.f32 %v1139, 0.0
        %v1172 = vmax.f32 %v1140, 0.0
        %v1173 = vmax.f32 %v1141, 0.0
        %v1174 = vmax.f32 %v1142, 0.0
        %v1175 = vmax.f32 %v1143, 0.0
        %v1176 = vmax.f32 %v1144, 0.0
        %v1177 = vmax.f32 %v1145, 0.0
        %v1178 = vmax.f32 %v1146, 0.0
        %v1179 = vmax.f32 %v1147, 0.0
        %1180 = vst.msk [vmem:[#allocation2] sm:$0xff] %vm896, 0.0
        %1181 = vst.msk [vmem:[#allocation2 + $0x8] sm:$0xff] %vm896, 0.0
        %1182 = vst.msk [vmem:[#allocation2 + $0x10] sm:$0xff] %vm896, 0.0
        %1183 = vst.msk [vmem:[#allocation2 + $0x118] sm:$0xff] %vm896, 0.0
        %1184 = vst.msk [vmem:[#allocation2 + $0x120] sm:$0xff] %vm896, 0.0
        %vm1185 = vcmask 253952
        %1186 = vst.msk [vmem:[#allocation2 + $0x128] sm:$0x1] %vm1185, 0.0
        %1187 = vst.msk [vmem:[#allocation2 + $0x18] sm:$0xff] %vm896, %v1148
        %1188 = vst.msk [vmem:[#allocation2 + $0x20] sm:$0xff] %vm896, %v1149
        %1189 = vst.msk [vmem:[#allocation2 + $0x28] sm:$0xff] %vm896, %v1150
        %1190 = vst.msk [vmem:[#allocation2 + $0x30] sm:$0xff] %vm896, %v1151
        %1191 = vst.msk [vmem:[#allocation2 + $0x38] sm:$0xff] %vm896, %v1152
        %1192 = vst.msk [vmem:[#allocation2 + $0x40] sm:$0xff] %vm896, %v1153
        %1193 = vst.msk [vmem:[#allocation2 + $0x48] sm:$0xff] %vm896, %v1154
        %1194 = vst.msk [vmem:[#allocation2 + $0x50] sm:$0xff] %vm896, %v1155
        %1195 = vst.msk [vmem:[#allocation2 + $0x58] sm:$0xff] %vm896, %v1156
        %1196 = vst.msk [vmem:[#allocation2 + $0x60] sm:$0xff] %vm896, %v1157
        %1197 = vst.msk [vmem:[#allocation2 + $0x68] sm:$0xff] %vm896, %v1158
        %1198 = vst.msk [vmem:[#allocation2 + $0x70] sm:$0xff] %vm896, %v1159
        %1199 = vst.msk [vmem:[#allocation2 + $0x78] sm:$0xff] %vm896, %v1160
        %1200 = vst.msk [vmem:[#allocation2 + $0x80] sm:$0xff] %vm896, %v1161
        %1201 = vst.msk [vmem:[#allocation2 + $0x88] sm:$0xff] %vm896, %v1162
        %1202 = vst.msk [vmem:[#allocation2 + $0x90] sm:$0xff] %vm896, %v1163
        %1203 = vst.msk [vmem:[#allocation2 + $0x98] sm:$0xff] %vm896, %v1164
        %1204 = vst.msk [vmem:[#allocation2 + $0xa0] sm:$0xff] %vm896, %v1165
        %1205 = vst.msk [vmem:[#allocation2 + $0xa8] sm:$0xff] %vm896, %v1166
        %1206 = vst.msk [vmem:[#allocation2 + $0xb0] sm:$0xff] %vm896, %v1167
        %1207 = vst.msk [vmem:[#allocation2 + $0xb8] sm:$0xff] %vm896, %v1168
        %1208 = vst.msk [vmem:[#allocation2 + $0xc0] sm:$0xff] %vm896, %v1169
        %1209 = vst.msk [vmem:[#allocation2 + $0xc8] sm:$0xff] %vm896, %v1170
        %1210 = vst.msk [vmem:[#allocation2 + $0xd0] sm:$0xff] %vm896, %v1171
        %1211 = vst.msk [vmem:[#allocation2 + $0xd8] sm:$0xff] %vm896, %v1172
        %1212 = vst.msk [vmem:[#allocation2 + $0xe0] sm:$0xff] %vm896, %v1173
        %1213 = vst.msk [vmem:[#allocation2 + $0xe8] sm:$0xff] %vm896, %v1174
        %1214 = vst.msk [vmem:[#allocation2 + $0xf0] sm:$0xff] %vm896, %v1175
        %1215 = vst.msk [vmem:[#allocation2 + $0xf8] sm:$0xff] %vm896, %v1176
        %1216 = vst.msk [vmem:[#allocation2 + $0x100] sm:$0xff] %vm896, %v1177
        %1217 = vst.msk [vmem:[#allocation2 + $0x108] sm:$0xff] %vm896, %v1178
        %1218 = vst.msk [vmem:[#allocation2 + $0x110] sm:$0xff] %vm896, %v1179
        %v1219 = vlaneseq
        %v1220 = vshrl.u32 %v1219, 7
        %v1221 = vadd.s32 %v1220, 8
        %v1222 = vadd.s32 %v1220, 16
        %v1223 = vadd.s32 %v1220, 24
        %v1224 = vadd.s32 %v1220, 32
        %v1225 = vadd.s32 %v1220, 40
        %v1226 = vadd.s32 %v1220, 48
        %v1227 = vadd.s32 %v1220, 56
        %v1228 = vadd.s32 %v1220, 64
        %v1229 = vadd.s32 %v1220, 72
        %v1230 = vadd.s32 %v1220, 80
        %v1231 = vadd.s32 %v1220, 88
        %v1232 = vadd.s32 %v1220, 96
        %v1233 = vadd.s32 %v1220, 104
        %v1234 = vadd.s32 %v1220, 112
        %v1235 = vadd.s32 %v1220, 120
        %v1236 = vadd.s32 %v1220, 128
        %v1237 = vadd.s32 %v1220, 136
        %v1238 = vadd.s32 %v1220, 144
        %v1239 = vadd.s32 %v1220, 152
        %v1240 = vadd.s32 %v1220, 160
        %v1241 = vadd.s32 %v1220, 168
        %v1242 = vadd.s32 %v1220, 176
        %v1243 = vadd.s32 %v1220, 184
        %v1244 = vadd.s32 %v1220, 192
        %v1245 = vadd.s32 %v1220, 200
        %v1246 = vadd.s32 %v1220, 208
        %v1247 = vadd.s32 %v1220, 216
        %v1248 = vadd.s32 %v1220, 224
        %v1249 = vadd.s32 %v1220, 232
        %v1250 = vadd.s32 %v1220, 240
        %v1251 = vadd.s32 %v1220, 248
        %vm1252 = vcmp.lt.s32.totalorder %v1220, 0
        %v1253 = vsub.s32 0, %v1220
        %v1254 = vsel %vm1252, %v1253, %v1220
        %v1255 = vshrl.u32 %v1254, 4
        %v1256 = vand.u32 %v1254, 15
        %v1257 = vsub.s32 0, %v1256
        %v1258 = vsel %vm1252, %v1257, %v1256
        %vm1259 = vcmp.lt.s32.totalorder %v1221, 0
        %v1260 = vsub.s32 0, %v1221
        %v1261 = vsel %vm1259, %v1260, %v1221
        %v1262 = vshrl.u32 %v1261, 4
        %v1263 = vand.u32 %v1261, 15
        %v1264 = vsub.s32 0, %v1263
        %v1265 = vsel %vm1259, %v1264, %v1263
        %vm1266 = vcmp.lt.s32.totalorder %v1222, 0
        %v1267 = vsub.s32 0, %v1222
        %v1268 = vsel %vm1266, %v1267, %v1222
        %v1269 = vshrl.u32 %v1268, 4
        %v1270 = vand.u32 %v1268, 15
        %v1271 = vsub.s32 0, %v1270
        %v1272 = vsel %vm1266, %v1271, %v1270
        %vm1273 = vcmp.lt.s32.totalorder %v1223, 0
        %v1274 = vsub.s32 0, %v1223
        %v1275 = vsel %vm1273, %v1274, %v1223
        %v1276 = vshrl.u32 %v1275, 4
        %v1277 = vand.u32 %v1275, 15
        %v1278 = vsub.s32 0, %v1277
        %v1279 = vsel %vm1273, %v1278, %v1277
        %vm1280 = vcmp.lt.s32.totalorder %v1224, 0
        %v1281 = vsub.s32 0, %v1224
        %v1282 = vsel %vm1280, %v1281, %v1224
        %v1283 = vshrl.u32 %v1282, 4
        %v1284 = vand.u32 %v1282, 15
        %v1285 = vsub.s32 0, %v1284
        %v1286 = vsel %vm1280, %v1285, %v1284
        %vm1287 = vcmp.lt.s32.totalorder %v1225, 0
        %v1288 = vsub.s32 0, %v1225
        %v1289 = vsel %vm1287, %v1288, %v1225
        %v1290 = vshrl.u32 %v1289, 4
        %v1291 = vand.u32 %v1289, 15
        %v1292 = vsub.s32 0, %v1291
        %v1293 = vsel %vm1287, %v1292, %v1291
        %vm1294 = vcmp.lt.s32.totalorder %v1226, 0
        %v1295 = vsub.s32 0, %v1226
        %v1296 = vsel %vm1294, %v1295, %v1226
        %v1297 = vshrl.u32 %v1296, 4
        %v1298 = vand.u32 %v1296, 15
        %v1299 = vsub.s32 0, %v1298
        %v1300 = vsel %vm1294, %v1299, %v1298
        %vm1301 = vcmp.lt.s32.totalorder %v1227, 0
        %v1302 = vsub.s32 0, %v1227
        %v1303 = vsel %vm1301, %v1302, %v1227
        %v1304 = vshrl.u32 %v1303, 4
        %v1305 = vand.u32 %v1303, 15
        %v1306 = vsub.s32 0, %v1305
        %v1307 = vsel %vm1301, %v1306, %v1305
        %vm1308 = vcmp.lt.s32.totalorder %v1228, 0
        %v1309 = vsub.s32 0, %v1228
        %v1310 = vsel %vm1308, %v1309, %v1228
        %v1311 = vshrl.u32 %v1310, 4
        %v1312 = vand.u32 %v1310, 15
        %v1313 = vsub.s32 0, %v1312
        %v1314 = vsel %vm1308, %v1313, %v1312
        %vm1315 = vcmp.lt.s32.totalorder %v1229, 0
        %v1316 = vsub.s32 0, %v1229
        %v1317 = vsel %vm1315, %v1316, %v1229
        %v1318 = vshrl.u32 %v1317, 4
        %v1319 = vand.u32 %v1317, 15
        %v1320 = vsub.s32 0, %v1319
        %v1321 = vsel %vm1315, %v1320, %v1319
        %vm1322 = vcmp.lt.s32.totalorder %v1230, 0
        %v1323 = vsub.s32 0, %v1230
        %v1324 = vsel %vm1322, %v1323, %v1230
        %v1325 = vshrl.u32 %v1324, 4
        %v1326 = vand.u32 %v1324, 15
        %v1327 = vsub.s32 0, %v1326
        %v1328 = vsel %vm1322, %v1327, %v1326
        %vm1329 = vcmp.lt.s32.totalorder %v1231, 0
        %v1330 = vsub.s32 0, %v1231
        %v1331 = vsel %vm1329, %v1330, %v1231
        %v1332 = vshrl.u32 %v1331, 4
        %v1333 = vand.u32 %v1331, 15
        %v1334 = vsub.s32 0, %v1333
        %v1335 = vsel %vm1329, %v1334, %v1333
        %vm1336 = vcmp.lt.s32.totalorder %v1232, 0
        %v1337 = vsub.s32 0, %v1232
        %v1338 = vsel %vm1336, %v1337, %v1232
        %v1339 = vshrl.u32 %v1338, 4
        %v1340 = vand.u32 %v1338, 15
        %v1341 = vsub.s32 0, %v1340
        %v1342 = vsel %vm1336, %v1341, %v1340
        %vm1343 = vcmp.lt.s32.totalorder %v1233, 0
        %v1344 = vsub.s32 0, %v1233
        %v1345 = vsel %vm1343, %v1344, %v1233
        %v1346 = vshrl.u32 %v1345, 4
        %v1347 = vand.u32 %v1345, 15
        %v1348 = vsub.s32 0, %v1347
        %v1349 = vsel %vm1343, %v1348, %v1347
        %vm1350 = vcmp.lt.s32.totalorder %v1234, 0
        %v1351 = vsub.s32 0, %v1234
        %v1352 = vsel %vm1350, %v1351, %v1234
        %v1353 = vshrl.u32 %v1352, 4
        %v1354 = vand.u32 %v1352, 15
        %v1355 = vsub.s32 0, %v1354
        %v1356 = vsel %vm1350, %v1355, %v1354
        %vm1357 = vcmp.lt.s32.totalorder %v1235, 0
        %v1358 = vsub.s32 0, %v1235
        %v1359 = vsel %vm1357, %v1358, %v1235
        %v1360 = vshrl.u32 %v1359, 4
        %v1361 = vand.u32 %v1359, 15
        %v1362 = vsub.s32 0, %v1361
        %v1363 = vsel %vm1357, %v1362, %v1361
        %vm1364 = vcmp.lt.s32.totalorder %v1236, 0
        %v1365 = vsub.s32 0, %v1236
        %v1366 = vsel %vm1364, %v1365, %v1236
        %v1367 = vshrl.u32 %v1366, 4
        %v1368 = vand.u32 %v1366, 15
        %v1369 = vsub.s32 0, %v1368
        %v1370 = vsel %vm1364, %v1369, %v1368
        %vm1371 = vcmp.lt.s32.totalorder %v1237, 0
        %v1372 = vsub.s32 0, %v1237
        %v1373 = vsel %vm1371, %v1372, %v1237
        %v1374 = vshrl.u32 %v1373, 4
        %v1375 = vand.u32 %v1373, 15
        %v1376 = vsub.s32 0, %v1375
        %v1377 = vsel %vm1371, %v1376, %v1375
        %vm1378 = vcmp.lt.s32.totalorder %v1238, 0
        %v1379 = vsub.s32 0, %v1238
        %v1380 = vsel %vm1378, %v1379, %v1238
        %v1381 = vshrl.u32 %v1380, 4
        %v1382 = vand.u32 %v1380, 15
        %v1383 = vsub.s32 0, %v1382
        %v1384 = vsel %vm1378, %v1383, %v1382
        %vm1385 = vcmp.lt.s32.totalorder %v1239, 0
        %v1386 = vsub.s32 0, %v1239
        %v1387 = vsel %vm1385, %v1386, %v1239
        %v1388 = vshrl.u32 %v1387, 4
        %v1389 = vand.u32 %v1387, 15
        %v1390 = vsub.s32 0, %v1389
        %v1391 = vsel %vm1385, %v1390, %v1389
        %vm1392 = vcmp.lt.s32.totalorder %v1240, 0
        %v1393 = vsub.s32 0, %v1240
        %v1394 = vsel %vm1392, %v1393, %v1240
        %v1395 = vshrl.u32 %v1394, 4
        %v1396 = vand.u32 %v1394, 15
        %v1397 = vsub.s32 0, %v1396
        %v1398 = vsel %vm1392, %v1397, %v1396
        %vm1399 = vcmp.lt.s32.totalorder %v1241, 0
        %v1400 = vsub.s32 0, %v1241
        %v1401 = vsel %vm1399, %v1400, %v1241
        %v1402 = vshrl.u32 %v1401, 4
        %v1403 = vand.u32 %v1401, 15
        %v1404 = vsub.s32 0, %v1403
        %v1405 = vsel %vm1399, %v1404, %v1403
        %vm1406 = vcmp.lt.s32.totalorder %v1242, 0
        %v1407 = vsub.s32 0, %v1242
        %v1408 = vsel %vm1406, %v1407, %v1242
        %v1409 = vshrl.u32 %v1408, 4
        %v1410 = vand.u32 %v1408, 15
        %v1411 = vsub.s32 0, %v1410
        %v1412 = vsel %vm1406, %v1411, %v1410
        %vm1413 = vcmp.lt.s32.totalorder %v1243, 0
        %v1414 = vsub.s32 0, %v1243
        %v1415 = vsel %vm1413, %v1414, %v1243
        %v1416 = vshrl.u32 %v1415, 4
        %v1417 = vand.u32 %v1415, 15
        %v1418 = vsub.s32 0, %v1417
        %v1419 = vsel %vm1413, %v1418, %v1417
        %vm1420 = vcmp.lt.s32.totalorder %v1244, 0
        %v1421 = vsub.s32 0, %v1244
        %v1422 = vsel %vm1420, %v1421, %v1244
        %v1423 = vshrl.u32 %v1422, 4
        %v1424 = vand.u32 %v1422, 15
        %v1425 = vsub.s32 0, %v1424
        %v1426 = vsel %vm1420, %v1425, %v1424
        %vm1427 = vcmp.lt.s32.totalorder %v1245, 0
        %v1428 = vsub.s32 0, %v1245
        %v1429 = vsel %vm1427, %v1428, %v1245
        %v1430 = vshrl.u32 %v1429, 4
        %v1431 = vand.u32 %v1429, 15
        %v1432 = vsub.s32 0, %v1431
        %v1433 = vsel %vm1427, %v1432, %v1431
        %vm1434 = vcmp.lt.s32.totalorder %v1246, 0
        %v1435 = vsub.s32 0, %v1246
        %v1436 = vsel %vm1434, %v1435, %v1246
        %v1437 = vshrl.u32 %v1436, 4
        %v1438 = vand.u32 %v1436, 15
        %v1439 = vsub.s32 0, %v1438
        %v1440 = vsel %vm1434, %v1439, %v1438
        %vm1441 = vcmp.lt.s32.totalorder %v1247, 0
        %v1442 = vsub.s32 0, %v1247
        %v1443 = vsel %vm1441, %v1442, %v1247
        %v1444 = vshrl.u32 %v1443, 4
        %v1445 = vand.u32 %v1443, 15
        %v1446 = vsub.s32 0, %v1445
        %v1447 = vsel %vm1441, %v1446, %v1445
        %vm1448 = vcmp.lt.s32.totalorder %v1248, 0
        %v1449 = vsub.s32 0, %v1248
        %v1450 = vsel %vm1448, %v1449, %v1248
        %v1451 = vshrl.u32 %v1450, 4
        %v1452 = vand.u32 %v1450, 15
        %v1453 = vsub.s32 0, %v1452
        %v1454 = vsel %vm1448, %v1453, %v1452
        %vm1455 = vcmp.lt.s32.totalorder %v1249, 0
        %v1456 = vsub.s32 0, %v1249
        %v1457 = vsel %vm1455, %v1456, %v1249
        %v1458 = vshrl.u32 %v1457, 4
        %v1459 = vand.u32 %v1457, 15
        %v1460 = vsub.s32 0, %v1459
        %v1461 = vsel %vm1455, %v1460, %v1459
        %vm1462 = vcmp.lt.s32.totalorder %v1250, 0
        %v1463 = vsub.s32 0, %v1250
        %v1464 = vsel %vm1462, %v1463, %v1250
        %v1465 = vshrl.u32 %v1464, 4
        %v1466 = vand.u32 %v1464, 15
        %v1467 = vsub.s32 0, %v1466
        %v1468 = vsel %vm1462, %v1467, %v1466
        %vm1469 = vcmp.lt.s32.totalorder %v1251, 0
        %v1470 = vsub.s32 0, %v1251
        %v1471 = vsel %vm1469, %v1470, %v1251
        %v1472 = vshrl.u32 %v1471, 4
        %v1473 = vand.u32 %v1471, 15
        %v1474 = vsub.s32 0, %v1473
        %v1475 = vsel %vm1469, %v1474, %v1473
        %vm1476 = vcmp.ne.s32.totalorder %v1258, 0
        %vm1477 = vcmp.ne.s32.totalorder %v1265, 0
        %vm1478 = vcmp.ne.s32.totalorder %v1272, 0
        %vm1479 = vcmp.ne.s32.totalorder %v1279, 0
        %vm1480 = vcmp.ne.s32.totalorder %v1286, 0
        %vm1481 = vcmp.ne.s32.totalorder %v1293, 0
        %vm1482 = vcmp.ne.s32.totalorder %v1300, 0
        %vm1483 = vcmp.ne.s32.totalorder %v1307, 0
        %vm1484 = vcmp.ne.s32.totalorder %v1314, 0
        %vm1485 = vcmp.ne.s32.totalorder %v1321, 0
        %vm1486 = vcmp.ne.s32.totalorder %v1328, 0
        %vm1487 = vcmp.ne.s32.totalorder %v1335, 0
        %vm1488 = vcmp.ne.s32.totalorder %v1342, 0
        %vm1489 = vcmp.ne.s32.totalorder %v1349, 0
        %vm1490 = vcmp.ne.s32.totalorder %v1356, 0
        %vm1491 = vcmp.ne.s32.totalorder %v1363, 0
        %vm1492 = vcmp.ne.s32.totalorder %v1370, 0
        %vm1493 = vcmp.ne.s32.totalorder %v1377, 0
        %vm1494 = vcmp.ne.s32.totalorder %v1384, 0
        %vm1495 = vcmp.ne.s32.totalorder %v1391, 0
        %vm1496 = vcmp.ne.s32.totalorder %v1398, 0
        %vm1497 = vcmp.ne.s32.totalorder %v1405, 0
        %vm1498 = vcmp.ne.s32.totalorder %v1412, 0
        %vm1499 = vcmp.ne.s32.totalorder %v1419, 0
        %vm1500 = vcmp.ne.s32.totalorder %v1426, 0
        %vm1501 = vcmp.ne.s32.totalorder %v1433, 0
        %vm1502 = vcmp.ne.s32.totalorder %v1440, 0
        %vm1503 = vcmp.ne.s32.totalorder %v1447, 0
        %vm1504 = vcmp.ne.s32.totalorder %v1454, 0
        %vm1505 = vcmp.ne.s32.totalorder %v1461, 0
        %vm1506 = vcmp.ne.s32.totalorder %v1468, 0
        %vm1507 = vcmp.ne.s32.totalorder %v1475, 0
        %vm1508 = vcmp.lt.s32.totalorder %v1258, 0
        %vm1509 = vcmp.lt.s32.totalorder %v1265, 0
        %vm1510 = vcmp.lt.s32.totalorder %v1272, 0
        %vm1511 = vcmp.lt.s32.totalorder %v1279, 0
        %vm1512 = vcmp.lt.s32.totalorder %v1286, 0
        %vm1513 = vcmp.lt.s32.totalorder %v1293, 0
        %vm1514 = vcmp.lt.s32.totalorder %v1300, 0
        %vm1515 = vcmp.lt.s32.totalorder %v1307, 0
        %vm1516 = vcmp.lt.s32.totalorder %v1314, 0
        %vm1517 = vcmp.lt.s32.totalorder %v1321, 0
        %vm1518 = vcmp.lt.s32.totalorder %v1328, 0
        %vm1519 = vcmp.lt.s32.totalorder %v1335, 0
        %vm1520 = vcmp.lt.s32.totalorder %v1342, 0
        %vm1521 = vcmp.lt.s32.totalorder %v1349, 0
        %vm1522 = vcmp.lt.s32.totalorder %v1356, 0
        %vm1523 = vcmp.lt.s32.totalorder %v1363, 0
        %vm1524 = vcmp.lt.s32.totalorder %v1370, 0
        %vm1525 = vcmp.lt.s32.totalorder %v1377, 0
        %vm1526 = vcmp.lt.s32.totalorder %v1384, 0
        %vm1527 = vcmp.lt.s32.totalorder %v1391, 0
        %vm1528 = vcmp.lt.s32.totalorder %v1398, 0
        %vm1529 = vcmp.lt.s32.totalorder %v1405, 0
        %vm1530 = vcmp.lt.s32.totalorder %v1412, 0
        %vm1531 = vcmp.lt.s32.totalorder %v1419, 0
        %vm1532 = vcmp.lt.s32.totalorder %v1426, 0
        %vm1533 = vcmp.lt.s32.totalorder %v1433, 0
        %vm1534 = vcmp.lt.s32.totalorder %v1440, 0
        %vm1535 = vcmp.lt.s32.totalorder %v1447, 0
        %vm1536 = vcmp.lt.s32.totalorder %v1454, 0
        %vm1537 = vcmp.lt.s32.totalorder %v1461, 0
        %vm1538 = vcmp.lt.s32.totalorder %v1468, 0
        %vm1539 = vcmp.lt.s32.totalorder %v1475, 0
        %vm1540 = vmand %vm1508, %vm1476
        %vm1541 = vmand %vm1509, %vm1477
        %vm1542 = vmand %vm1510, %vm1478
        %vm1543 = vmand %vm1511, %vm1479
        %vm1544 = vmand %vm1512, %vm1480
        %vm1545 = vmand %vm1513, %vm1481
        %vm1546 = vmand %vm1514, %vm1482
        %vm1547 = vmand %vm1515, %vm1483
        %vm1548 = vmand %vm1516, %vm1484
        %vm1549 = vmand %vm1517, %vm1485
        %vm1550 = vmand %vm1518, %vm1486
        %vm1551 = vmand %vm1519, %vm1487
        %vm1552 = vmand %vm1520, %vm1488
        %vm1553 = vmand %vm1521, %vm1489
        %vm1554 = vmand %vm1522, %vm1490
        %vm1555 = vmand %vm1523, %vm1491
        %vm1556 = vmand %vm1524, %vm1492
        %vm1557 = vmand %vm1525, %vm1493
        %vm1558 = vmand %vm1526, %vm1494
        %vm1559 = vmand %vm1527, %vm1495
        %vm1560 = vmand %vm1528, %vm1496
        %vm1561 = vmand %vm1529, %vm1497
        %vm1562 = vmand %vm1530, %vm1498
        %vm1563 = vmand %vm1531, %vm1499
        %vm1564 = vmand %vm1532, %vm1500
        %vm1565 = vmand %vm1533, %vm1501
        %vm1566 = vmand %vm1534, %vm1502
        %vm1567 = vmand %vm1535, %vm1503
        %vm1568 = vmand %vm1536, %vm1504
        %vm1569 = vmand %vm1537, %vm1505
        %vm1570 = vmand %vm1538, %vm1506
        %vm1571 = vmand %vm1539, %vm1507
        %v1572 = vadd.s32 %v1258, 16
        %v1573 = vadd.s32 %v1265, 16
        %v1574 = vadd.s32 %v1272, 16
        %v1575 = vadd.s32 %v1279, 16
        %v1576 = vadd.s32 %v1286, 16
        %v1577 = vadd.s32 %v1293, 16
        %v1578 = vadd.s32 %v1300, 16
        %v1579 = vadd.s32 %v1307, 16
        %v1580 = vadd.s32 %v1314, 16
        %v1581 = vadd.s32 %v1321, 16
        %v1582 = vadd.s32 %v1328, 16
        %v1583 = vadd.s32 %v1335, 16
        %v1584 = vadd.s32 %v1342, 16
        %v1585 = vadd.s32 %v1349, 16
        %v1586 = vadd.s32 %v1356, 16
        %v1587 = vadd.s32 %v1363, 16
        %v1588 = vadd.s32 %v1370, 16
        %v1589 = vadd.s32 %v1377, 16
        %v1590 = vadd.s32 %v1384, 16
        %v1591 = vadd.s32 %v1391, 16
        %v1592 = vadd.s32 %v1398, 16
        %v1593 = vadd.s32 %v1405, 16
        %v1594 = vadd.s32 %v1412, 16
        %v1595 = vadd.s32 %v1419, 16
        %v1596 = vadd.s32 %v1426, 16
        %v1597 = vadd.s32 %v1433, 16
        %v1598 = vadd.s32 %v1440, 16
        %v1599 = vadd.s32 %v1447, 16
        %v1600 = vadd.s32 %v1454, 16
        %v1601 = vadd.s32 %v1461, 16
        %v1602 = vadd.s32 %v1468, 16
        %v1603 = vadd.s32 %v1475, 16
        %v1604 = vsel %vm1540, %v1572, %v1258
        %v1605 = vsel %vm1541, %v1573, %v1265
        %v1606 = vsel %vm1542, %v1574, %v1272
        %v1607 = vsel %vm1543, %v1575, %v1279
        %v1608 = vsel %vm1544, %v1576, %v1286
        %v1609 = vsel %vm1545, %v1577, %v1293
        %v1610 = vsel %vm1546, %v1578, %v1300
        %v1611 = vsel %vm1547, %v1579, %v1307
        %v1612 = vsel %vm1548, %v1580, %v1314
        %v1613 = vsel %vm1549, %v1581, %v1321
        %v1614 = vsel %vm1550, %v1582, %v1328
        %v1615 = vsel %vm1551, %v1583, %v1335
        %v1616 = vsel %vm1552, %v1584, %v1342
        %v1617 = vsel %vm1553, %v1585, %v1349
        %v1618 = vsel %vm1554, %v1586, %v1356
        %v1619 = vsel %vm1555, %v1587, %v1363
        %v1620 = vsel %vm1556, %v1588, %v1370
        %v1621 = vsel %vm1557, %v1589, %v1377
        %v1622 = vsel %vm1558, %v1590, %v1384
        %v1623 = vsel %vm1559, %v1591, %v1391
        %v1624 = vsel %vm1560, %v1592, %v1398
        %v1625 = vsel %vm1561, %v1593, %v1405
        %v1626 = vsel %vm1562, %v1594, %v1412
        %v1627 = vsel %vm1563, %v1595, %v1419
        %v1628 = vsel %vm1564, %v1596, %v1426
        %v1629 = vsel %vm1565, %v1597, %v1433
        %v1630 = vsel %vm1566, %v1598, %v1440
        %v1631 = vsel %vm1567, %v1599, %v1447
        %v1632 = vsel %vm1568, %v1600, %v1454
        %v1633 = vsel %vm1569, %v1601, %v1461
        %v1634 = vsel %vm1570, %v1602, %v1468
        %v1635 = vsel %vm1571, %v1603, %v1475
        %vm1636 = vcmp.ge.s32.totalorder %v1604, 1
        %vm1637 = vcmp.ge.s32.totalorder %v1605, 1
        %vm1638 = vcmp.ge.s32.totalorder %v1606, 1
        %vm1639 = vcmp.ge.s32.totalorder %v1607, 1
        %vm1640 = vcmp.ge.s32.totalorder %v1608, 1
        %vm1641 = vcmp.ge.s32.totalorder %v1609, 1
        %vm1642 = vcmp.ge.s32.totalorder %v1610, 1
        %vm1643 = vcmp.ge.s32.totalorder %v1611, 1
        %vm1644 = vcmp.ge.s32.totalorder %v1612, 1
        %vm1645 = vcmp.ge.s32.totalorder %v1613, 1
        %vm1646 = vcmp.ge.s32.totalorder %v1614, 1
        %vm1647 = vcmp.ge.s32.totalorder %v1615, 1
        %vm1648 = vcmp.ge.s32.totalorder %v1616, 1
        %vm1649 = vcmp.ge.s32.totalorder %v1617, 1
        %vm1650 = vcmp.ge.s32.totalorder %v1618, 1
        %vm1651 = vcmp.ge.s32.totalorder %v1619, 1
        %vm1652 = vcmp.ge.s32.totalorder %v1620, 1
        %vm1653 = vcmp.ge.s32.totalorder %v1621, 1
        %vm1654 = vcmp.ge.s32.totalorder %v1622, 1
        %vm1655 = vcmp.ge.s32.totalorder %v1623, 1
        %vm1656 = vcmp.ge.s32.totalorder %v1624, 1
        %vm1657 = vcmp.ge.s32.totalorder %v1625, 1
        %vm1658 = vcmp.ge.s32.totalorder %v1626, 1
        %vm1659 = vcmp.ge.s32.totalorder %v1627, 1
        %vm1660 = vcmp.ge.s32.totalorder %v1628, 1
        %vm1661 = vcmp.ge.s32.totalorder %v1629, 1
        %vm1662 = vcmp.ge.s32.totalorder %v1630, 1
        %vm1663 = vcmp.ge.s32.totalorder %v1631, 1
        %vm1664 = vcmp.ge.s32.totalorder %v1632, 1
        %vm1665 = vcmp.ge.s32.totalorder %v1633, 1
        %vm1666 = vcmp.ge.s32.totalorder %v1634, 1
        %vm1667 = vcmp.ge.s32.totalorder %v1635, 1
        %vm1668 = vcmp.le.s32.totalorder %v1604, 14
        %vm1669 = vcmp.le.s32.totalorder %v1605, 14
        %vm1670 = vcmp.le.s32.totalorder %v1606, 14
        %vm1671 = vcmp.le.s32.totalorder %v1607, 14
        %vm1672 = vcmp.le.s32.totalorder %v1608, 14
        %vm1673 = vcmp.le.s32.totalorder %v1609, 14
        %vm1674 = vcmp.le.s32.totalorder %v1610, 14
        %vm1675 = vcmp.le.s32.totalorder %v1611, 14
        %vm1676 = vcmp.le.s32.totalorder %v1612, 14
        %vm1677 = vcmp.le.s32.totalorder %v1613, 14
        %vm1678 = vcmp.le.s32.totalorder %v1614, 14
        %vm1679 = vcmp.le.s32.totalorder %v1615, 14
        %vm1680 = vcmp.le.s32.totalorder %v1616, 14
        %vm1681 = vcmp.le.s32.totalorder %v1617, 14
        %vm1682 = vcmp.le.s32.totalorder %v1618, 14
        %vm1683 = vcmp.le.s32.totalorder %v1619, 14
        %vm1684 = vcmp.le.s32.totalorder %v1620, 14
        %vm1685 = vcmp.le.s32.totalorder %v1621, 14
        %vm1686 = vcmp.le.s32.totalorder %v1622, 14
        %vm1687 = vcmp.le.s32.totalorder %v1623, 14
        %vm1688 = vcmp.le.s32.totalorder %v1624, 14
        %vm1689 = vcmp.le.s32.totalorder %v1625, 14
        %vm1690 = vcmp.le.s32.totalorder %v1626, 14
        %vm1691 = vcmp.le.s32.totalorder %v1627, 14
        %vm1692 = vcmp.le.s32.totalorder %v1628, 14
        %vm1693 = vcmp.le.s32.totalorder %v1629, 14
        %vm1694 = vcmp.le.s32.totalorder %v1630, 14
        %vm1695 = vcmp.le.s32.totalorder %v1631, 14
        %vm1696 = vcmp.le.s32.totalorder %v1632, 14
        %vm1697 = vcmp.le.s32.totalorder %v1633, 14
        %vm1698 = vcmp.le.s32.totalorder %v1634, 14
        %vm1699 = vcmp.le.s32.totalorder %v1635, 14
        %v1700 = vld [vmem:[#allocation2 + $0x7] sm:$0xff]
        %v1701 = vld [vmem:[#allocation2 + $0xf] sm:$0xff]
        %v1702 = vld [vmem:[#allocation2 + $0x17] sm:$0xff]
        %v1703 = vld [vmem:[#allocation2 + $0x1f] sm:$0xff]
        %v1704 = vld [vmem:[#allocation2 + $0x27] sm:$0xff]
        %v1705 = vld [vmem:[#allocation2 + $0x2f] sm:$0xff]
        %v1706 = vld [vmem:[#allocation2 + $0x37] sm:$0xff]
        %v1707 = vld [vmem:[#allocation2 + $0x3f] sm:$0xff]
        %v1708 = vld [vmem:[#allocation2 + $0x47] sm:$0xff]
        %v1709 = vld [vmem:[#allocation2 + $0x4f] sm:$0xff]
        %v1710 = vld [vmem:[#allocation2 + $0x57] sm:$0xff]
        %v1711 = vld [vmem:[#allocation2 + $0x5f] sm:$0xff]
        %v1712 = vld [vmem:[#allocation2 + $0x67] sm:$0xff]
        %v1713 = vld [vmem:[#allocation2 + $0x6f] sm:$0xff]
        %v1714 = vld [vmem:[#allocation2 + $0x77] sm:$0xff]
        %v1715 = vld [vmem:[#allocation2 + $0x7f] sm:$0xff]
        %v1716 = vld [vmem:[#allocation2 + $0x87] sm:$0xff]
        %v1717 = vld [vmem:[#allocation2 + $0x8f] sm:$0xff]
        %v1718 = vld [vmem:[#allocation2 + $0x97] sm:$0xff]
        %v1719 = vld [vmem:[#allocation2 + $0x9f] sm:$0xff]
        %v1720 = vld [vmem:[#allocation2 + $0xa7] sm:$0xff]
        %v1721 = vld [vmem:[#allocation2 + $0xaf] sm:$0xff]
        %v1722 = vld [vmem:[#allocation2 + $0xb7] sm:$0xff]
        %v1723 = vld [vmem:[#allocation2 + $0xbf] sm:$0xff]
        %v1724 = vld [vmem:[#allocation2 + $0xc7] sm:$0xff]
        %v1725 = vld [vmem:[#allocation2 + $0xcf] sm:$0xff]
        %v1726 = vld [vmem:[#allocation2 + $0xd7] sm:$0xff]
        %v1727 = vld [vmem:[#allocation2 + $0xdf] sm:$0xff]
        %v1728 = vld [vmem:[#allocation2 + $0xe7] sm:$0xff]
        %v1729 = vld [vmem:[#allocation2 + $0xef] sm:$0xff]
        %v1730 = vld [vmem:[#allocation2 + $0xf7] sm:$0xff]
        %v1731 = vld [vmem:[#allocation2 + $0xff] sm:$0xff]
        %v1732 = vsel %vm1636, 1, 0
        %v1733 = vsel %vm1637, 1, 0
        %v1734 = vsel %vm1638, 1, 0
        %v1735 = vsel %vm1639, 1, 0
        %v1736 = vsel %vm1640, 1, 0
        %v1737 = vsel %vm1641, 1, 0
        %v1738 = vsel %vm1642, 1, 0
        %v1739 = vsel %vm1643, 1, 0
        %v1740 = vsel %vm1644, 1, 0
        %v1741 = vsel %vm1645, 1, 0
        %v1742 = vsel %vm1646, 1, 0
        %v1743 = vsel %vm1647, 1, 0
        %v1744 = vsel %vm1648, 1, 0
        %v1745 = vsel %vm1649, 1, 0
        %v1746 = vsel %vm1650, 1, 0
        %v1747 = vsel %vm1651, 1, 0
        %v1748 = vsel %vm1652, 1, 0
        %v1749 = vsel %vm1653, 1, 0
        %v1750 = vsel %vm1654, 1, 0
        %v1751 = vsel %vm1655, 1, 0
        %v1752 = vsel %vm1656, 1, 0
        %v1753 = vsel %vm1657, 1, 0
        %v1754 = vsel %vm1658, 1, 0
        %v1755 = vsel %vm1659, 1, 0
        %v1756 = vsel %vm1660, 1, 0
        %v1757 = vsel %vm1661, 1, 0
        %v1758 = vsel %vm1662, 1, 0
        %v1759 = vsel %vm1663, 1, 0
        %v1760 = vsel %vm1664, 1, 0
        %v1761 = vsel %vm1665, 1, 0
        %v1762 = vsel %vm1666, 1, 0
        %v1763 = vsel %vm1667, 1, 0
        %vm1764 = vcmp.eq.s32.totalorder %v1732, 1
        %vm1765 = vcmp.eq.s32.totalorder %v1733, 1
        %vm1766 = vcmp.eq.s32.totalorder %v1734, 1
        %vm1767 = vcmp.eq.s32.totalorder %v1735, 1
        %vm1768 = vcmp.eq.s32.totalorder %v1736, 1
        %vm1769 = vcmp.eq.s32.totalorder %v1737, 1
        %vm1770 = vcmp.eq.s32.totalorder %v1738, 1
        %vm1771 = vcmp.eq.s32.totalorder %v1739, 1
        %vm1772 = vcmp.eq.s32.totalorder %v1740, 1
        %vm1773 = vcmp.eq.s32.totalorder %v1741, 1
        %vm1774 = vcmp.eq.s32.totalorder %v1742, 1
        %vm1775 = vcmp.eq.s32.totalorder %v1743, 1
        %vm1776 = vcmp.eq.s32.totalorder %v1744, 1
        %vm1777 = vcmp.eq.s32.totalorder %v1745, 1
        %vm1778 = vcmp.eq.s32.totalorder %v1746, 1
        %vm1779 = vcmp.eq.s32.totalorder %v1747, 1
        %vm1780 = vcmp.eq.s32.totalorder %v1748, 1
        %vm1781 = vcmp.eq.s32.totalorder %v1749, 1
        %vm1782 = vcmp.eq.s32.totalorder %v1750, 1
        %vm1783 = vcmp.eq.s32.totalorder %v1751, 1
        %vm1784 = vcmp.eq.s32.totalorder %v1752, 1
        %vm1785 = vcmp.eq.s32.totalorder %v1753, 1
        %vm1786 = vcmp.eq.s32.totalorder %v1754, 1
        %vm1787 = vcmp.eq.s32.totalorder %v1755, 1
        %vm1788 = vcmp.eq.s32.totalorder %v1756, 1
        %vm1789 = vcmp.eq.s32.totalorder %v1757, 1
        %vm1790 = vcmp.eq.s32.totalorder %v1758, 1
        %vm1791 = vcmp.eq.s32.totalorder %v1759, 1
        %vm1792 = vcmp.eq.s32.totalorder %v1760, 1
        %vm1793 = vcmp.eq.s32.totalorder %v1761, 1
        %vm1794 = vcmp.eq.s32.totalorder %v1762, 1
        %vm1795 = vcmp.eq.s32.totalorder %v1763, 1
        %v1796 = vsel %vm1764, %v1700, 0.0
        %v1797 = vsel %vm1765, %v1701, 0.0
        %v1798 = vsel %vm1766, %v1702, 0.0
        %v1799 = vsel %vm1767, %v1703, 0.0
        %v1800 = vsel %vm1768, %v1704, 0.0
        %v1801 = vsel %vm1769, %v1705, 0.0
        %v1802 = vsel %vm1770, %v1706, 0.0
        %v1803 = vsel %vm1771, %v1707, 0.0
        %v1804 = vsel %vm1772, %v1708, 0.0
        %v1805 = vsel %vm1773, %v1709, 0.0
        %v1806 = vsel %vm1774, %v1710, 0.0
        %v1807 = vsel %vm1775, %v1711, 0.0
        %v1808 = vsel %vm1776, %v1712, 0.0
        %v1809 = vsel %vm1777, %v1713, 0.0
        %v1810 = vsel %vm1778, %v1714, 0.0
        %v1811 = vsel %vm1779, %v1715, 0.0
        %v1812 = vsel %vm1780, %v1716, 0.0
        %v1813 = vsel %vm1781, %v1717, 0.0
        %v1814 = vsel %vm1782, %v1718, 0.0
        %v1815 = vsel %vm1783, %v1719, 0.0
        %v1816 = vsel %vm1784, %v1720, 0.0
        %v1817 = vsel %vm1785, %v1721, 0.0
        %v1818 = vsel %vm1786, %v1722, 0.0
        %v1819 = vsel %vm1787, %v1723, 0.0
        %v1820 = vsel %vm1788, %v1724, 0.0
        %v1821 = vsel %vm1789, %v1725, 0.0
        %v1822 = vsel %vm1790, %v1726, 0.0
        %v1823 = vsel %vm1791, %v1727, 0.0
        %v1824 = vsel %vm1792, %v1728, 0.0
        %v1825 = vsel %vm1793, %v1729, 0.0
        %v1826 = vsel %vm1794, %v1730, 0.0
        %v1827 = vsel %vm1795, %v1731, 0.0
        %v1828 = vpack.c.bf16 %v1797, %v1796
        %v1829 = vpack.c.bf16 %v1799, %v1798
        %v1830 = vpack.c.bf16 %v1801, %v1800
        %v1831 = vpack.c.bf16 %v1803, %v1802
        %v1832 = vpack.c.bf16 %v1805, %v1804
        %v1833 = vpack.c.bf16 %v1807, %v1806
        %v1834 = vpack.c.bf16 %v1809, %v1808
        %v1835 = vpack.c.bf16 %v1811, %v1810
        %v1836 = vpack.c.bf16 %v1813, %v1812
        %v1837 = vpack.c.bf16 %v1815, %v1814
        %v1838 = vpack.c.bf16 %v1817, %v1816
        %v1839 = vpack.c.bf16 %v1819, %v1818
        %v1840 = vpack.c.bf16 %v1821, %v1820
        %v1841 = vpack.c.bf16 %v1823, %v1822
        %v1842 = vpack.c.bf16 %v1825, %v1824
        %v1843 = vpack.c.bf16 %v1827, %v1826
        %1844 = vst.msk [vmem:[#allocation3] sm:$0xff] %vm896, %v1828
        %1845 = vst.msk [vmem:[#allocation3 + $0x18] sm:$0xff] %vm896, %v1829
        %1846 = vst.msk [vmem:[#allocation3 + $0x30] sm:$0xff] %vm896, %v1830
        %1847 = vst.msk [vmem:[#allocation3 + $0x48] sm:$0xff] %vm896, %v1831
        %1848 = vst.msk [vmem:[#allocation3 + $0x60] sm:$0xff] %vm896, %v1832
        %1849 = vst.msk [vmem:[#allocation3 + $0x78] sm:$0xff] %vm896, %v1833
        %1850 = vst.msk [vmem:[#allocation3 + $0x90] sm:$0xff] %vm896, %v1834
        %1851 = vst.msk [vmem:[#allocation3 + $0xa8] sm:$0xff] %vm896, %v1835
        %1852 = vst.msk [vmem:[#allocation3 + $0xc0] sm:$0xff] %vm896, %v1836
        %1853 = vst.msk [vmem:[#allocation3 + $0xd8] sm:$0xff] %vm896, %v1837
        %1854 = vst.msk [vmem:[#allocation3 + $0xf0] sm:$0xff] %vm896, %v1838
        %1855 = vst.msk [vmem:[#allocation3 + $0x108] sm:$0xff] %vm896, %v1839
        %1856 = vst.msk [vmem:[#allocation3 + $0x120] sm:$0xff] %vm896, %v1840
        %1857 = vst.msk [vmem:[#allocation3 + $0x138] sm:$0xff] %vm896, %v1841
        %1858 = vst.msk [vmem:[#allocation3 + $0x150] sm:$0xff] %vm896, %v1842
        %1859 = vst.msk [vmem:[#allocation3 + $0x168] sm:$0xff] %vm896, %v1843
        %v1860 = vld [vmem:[#allocation2 + $0x8] sm:$0xff]
        %v1861 = vld [vmem:[#allocation2 + $0x10] sm:$0xff]
        %v1862 = vld [vmem:[#allocation2 + $0x18] sm:$0xff]
        %v1863 = vld [vmem:[#allocation2 + $0x20] sm:$0xff]
        %v1864 = vld [vmem:[#allocation2 + $0x28] sm:$0xff]
        %v1865 = vld [vmem:[#allocation2 + $0x30] sm:$0xff]
        %v1866 = vld [vmem:[#allocation2 + $0x38] sm:$0xff]
        %v1867 = vld [vmem:[#allocation2 + $0x40] sm:$0xff]
        %v1868 = vld [vmem:[#allocation2 + $0x48] sm:$0xff]
        %v1869 = vld [vmem:[#allocation2 + $0x50] sm:$0xff]
        %v1870 = vld [vmem:[#allocation2 + $0x58] sm:$0xff]
        %v1871 = vld [vmem:[#allocation2 + $0x60] sm:$0xff]
        %v1872 = vld [vmem:[#allocation2 + $0x68] sm:$0xff]
        %v1873 = vld [vmem:[#allocation2 + $0x70] sm:$0xff]
        %v1874 = vld [vmem:[#allocation2 + $0x78] sm:$0xff]
        %v1875 = vld [vmem:[#allocation2 + $0x80] sm:$0xff]
        %v1876 = vld [vmem:[#allocation2 + $0x88] sm:$0xff]
        %v1877 = vld [vmem:[#allocation2 + $0x90] sm:$0xff]
        %v1878 = vld [vmem:[#allocation2 + $0x98] sm:$0xff]
        %v1879 = vld [vmem:[#allocation2 + $0xa0] sm:$0xff]
        %v1880 = vld [vmem:[#allocation2 + $0xa8] sm:$0xff]
        %v1881 = vld [vmem:[#allocation2 + $0xb0] sm:$0xff]
        %v1882 = vld [vmem:[#allocation2 + $0xb8] sm:$0xff]
        %v1883 = vld [vmem:[#allocation2 + $0xc0] sm:$0xff]
        %v1884 = vld [vmem:[#allocation2 + $0xc8] sm:$0xff]
        %v1885 = vld [vmem:[#allocation2 + $0xd0] sm:$0xff]
        %v1886 = vld [vmem:[#allocation2 + $0xd8] sm:$0xff]
        %v1887 = vld [vmem:[#allocation2 + $0xe0] sm:$0xff]
        %v1888 = vld [vmem:[#allocation2 + $0xe8] sm:$0xff]
        %v1889 = vld [vmem:[#allocation2 + $0xf0] sm:$0xff]
        %v1890 = vld [vmem:[#allocation2 + $0xf8] sm:$0xff]
        %v1891 = vld [vmem:[#allocation2 + $0x100] sm:$0xff]
        %v1892 = vpack.c.bf16 %v1861, %v1860
        %v1893 = vpack.c.bf16 %v1863, %v1862
        %v1894 = vpack.c.bf16 %v1865, %v1864
        %v1895 = vpack.c.bf16 %v1867, %v1866
        %v1896 = vpack.c.bf16 %v1869, %v1868
        %v1897 = vpack.c.bf16 %v1871, %v1870
        %v1898 = vpack.c.bf16 %v1873, %v1872
        %v1899 = vpack.c.bf16 %v1875, %v1874
        %v1900 = vpack.c.bf16 %v1877, %v1876
        %v1901 = vpack.c.bf16 %v1879, %v1878
        %v1902 = vpack.c.bf16 %v1881, %v1880
        %v1903 = vpack.c.bf16 %v1883, %v1882
        %v1904 = vpack.c.bf16 %v1885, %v1884
        %v1905 = vpack.c.bf16 %v1887, %v1886
        %v1906 = vpack.c.bf16 %v1889, %v1888
        %v1907 = vpack.c.bf16 %v1891, %v1890
        %1924 = vrot.lane.b32.xlu0 %v1892, 32
        %v1925 = vpop.permute.xlu0 %1924
        %1926 = vrot.lane.b32.xlu0 %v1893, 32
        %v1927 = vpop.permute.xlu0 %1926
        %1928 = vrot.lane.b32.xlu0 %v1894, 32
        %v1929 = vpop.permute.xlu0 %1928
        %1930 = vrot.lane.b32.xlu0 %v1895, 32
        %v1931 = vpop.permute.xlu0 %1930
        %1932 = vrot.lane.b32.xlu0 %v1896, 32
        %v1933 = vpop.permute.xlu0 %1932
        %1934 = vrot.lane.b32.xlu0 %v1897, 32
        %v1935 = vpop.permute.xlu0 %1934
        %1936 = vrot.lane.b32.xlu0 %v1898, 32
        %v1937 = vpop.permute.xlu0 %1936
        %1938 = vrot.lane.b32.xlu0 %v1899, 32
        %v1939 = vpop.permute.xlu0 %1938
        %1940 = vrot.lane.b32.xlu0 %v1900, 32
        %v1941 = vpop.permute.xlu0 %1940
        %1942 = vrot.lane.b32.xlu0 %v1901, 32
        %v1943 = vpop.permute.xlu0 %1942
        %1944 = vrot.lane.b32.xlu0 %v1902, 32
        %v1945 = vpop.permute.xlu0 %1944
        %1946 = vrot.lane.b32.xlu0 %v1903, 32
        %v1947 = vpop.permute.xlu0 %1946
        %1948 = vrot.lane.b32.xlu0 %v1904, 32
        %v1949 = vpop.permute.xlu0 %1948
        %1950 = vrot.lane.b32.xlu0 %v1905, 32
        %v1951 = vpop.permute.xlu0 %1950
        %1952 = vrot.lane.b32.xlu0 %v1906, 32
        %v1953 = vpop.permute.xlu0 %1952
        %1954 = vrot.lane.b32.xlu0 %v1907, 32
        %v1955 = vpop.permute.xlu0 %1954
        %vm1972 = vcmask 523520
        %1973 = vst.msk [vmem:[#allocation3] sm:$0xff] %vm1972, %v1925
        %1974 = vst.msk [vmem:[#allocation3 + $0x18] sm:$0xff] %vm1972, %v1927
        %1975 = vst.msk [vmem:[#allocation3 + $0x30] sm:$0xff] %vm1972, %v1929
        %1976 = vst.msk [vmem:[#allocation3 + $0x48] sm:$0xff] %vm1972, %v1931
        %1977 = vst.msk [vmem:[#allocation3 + $0x60] sm:$0xff] %vm1972, %v1933
        %1978 = vst.msk [vmem:[#allocation3 + $0x78] sm:$0xff] %vm1972, %v1935
        %1979 = vst.msk [vmem:[#allocation3 + $0x90] sm:$0xff] %vm1972, %v1937
        %1980 = vst.msk [vmem:[#allocation3 + $0xa8] sm:$0xff] %vm1972, %v1939
        %1981 = vst.msk [vmem:[#allocation3 + $0xc0] sm:$0xff] %vm1972, %v1941
        %1982 = vst.msk [vmem:[#allocation3 + $0xd8] sm:$0xff] %vm1972, %v1943
        %1983 = vst.msk [vmem:[#allocation3 + $0xf0] sm:$0xff] %vm1972, %v1945
        %1984 = vst.msk [vmem:[#allocation3 + $0x108] sm:$0xff] %vm1972, %v1947
        %1985 = vst.msk [vmem:[#allocation3 + $0x120] sm:$0xff] %vm1972, %v1949
        %1986 = vst.msk [vmem:[#allocation3 + $0x138] sm:$0xff] %vm1972, %v1951
        %1987 = vst.msk [vmem:[#allocation3 + $0x150] sm:$0xff] %vm1972, %v1953
        %1988 = vst.msk [vmem:[#allocation3 + $0x168] sm:$0xff] %vm1972, %v1955
        %v1989 = vld [vmem:[#allocation2 + $0x9] sm:$0xff]
        %v1990 = vld [vmem:[#allocation2 + $0x11] sm:$0xff]
        %v1991 = vld [vmem:[#allocation2 + $0x19] sm:$0xff]
        %v1992 = vld [vmem:[#allocation2 + $0x21] sm:$0xff]
        %v1993 = vld [vmem:[#allocation2 + $0x29] sm:$0xff]
        %v1994 = vld [vmem:[#allocation2 + $0x31] sm:$0xff]
        %v1995 = vld [vmem:[#allocation2 + $0x39] sm:$0xff]
        %v1996 = vld [vmem:[#allocation2 + $0x41] sm:$0xff]
        %v1997 = vld [vmem:[#allocation2 + $0x49] sm:$0xff]
        %v1998 = vld [vmem:[#allocation2 + $0x51] sm:$0xff]
        %v1999 = vld [vmem:[#allocation2 + $0x59] sm:$0xff]
        %v2000 = vld [vmem:[#allocation2 + $0x61] sm:$0xff]
        %v2001 = vld [vmem:[#allocation2 + $0x69] sm:$0xff]
        %v2002 = vld [vmem:[#allocation2 + $0x71] sm:$0xff]
        %v2003 = vld [vmem:[#allocation2 + $0x79] sm:$0xff]
        %v2004 = vld [vmem:[#allocation2 + $0x81] sm:$0xff]
        %v2005 = vld [vmem:[#allocation2 + $0x89] sm:$0xff]
        %v2006 = vld [vmem:[#allocation2 + $0x91] sm:$0xff]
        %v2007 = vld [vmem:[#allocation2 + $0x99] sm:$0xff]
        %v2008 = vld [vmem:[#allocation2 + $0xa1] sm:$0xff]
        %v2009 = vld [vmem:[#allocation2 + $0xa9] sm:$0xff]
        %v2010 = vld [vmem:[#allocation2 + $0xb1] sm:$0xff]
        %v2011 = vld [vmem:[#allocation2 + $0xb9] sm:$0xff]
        %v2012 = vld [vmem:[#allocation2 + $0xc1] sm:$0xff]
        %v2013 = vld [vmem:[#allocation2 + $0xc9] sm:$0xff]
        %v2014 = vld [vmem:[#allocation2 + $0xd1] sm:$0xff]
        %v2015 = vld [vmem:[#allocation2 + $0xd9] sm:$0xff]
        %v2016 = vld [vmem:[#allocation2 + $0xe1] sm:$0xff]
        %v2017 = vld [vmem:[#allocation2 + $0xe9] sm:$0xff]
        %v2018 = vld [vmem:[#allocation2 + $0xf1] sm:$0xff]
        %v2019 = vld [vmem:[#allocation2 + $0xf9] sm:$0xff]
        %v2020 = vld [vmem:[#allocation2 + $0x101] sm:$0xff]
        %v2021 = vsel %vm1668, 1, 0
        %v2022 = vsel %vm1669, 1, 0
        %v2023 = vsel %vm1670, 1, 0
        %v2024 = vsel %vm1671, 1, 0
        %v2025 = vsel %vm1672, 1, 0
        %v2026 = vsel %vm1673, 1, 0
        %v2027 = vsel %vm1674, 1, 0
        %v2028 = vsel %vm1675, 1, 0
        %v2029 = vsel %vm1676, 1, 0
        %v2030 = vsel %vm1677, 1, 0
        %v2031 = vsel %vm1678, 1, 0
        %v2032 = vsel %vm1679, 1, 0
        %v2033 = vsel %vm1680, 1, 0
        %v2034 = vsel %vm1681, 1, 0
        %v2035 = vsel %vm1682, 1, 0
        %v2036 = vsel %vm1683, 1, 0
        %v2037 = vsel %vm1684, 1, 0
        %v2038 = vsel %vm1685, 1, 0
        %v2039 = vsel %vm1686, 1, 0
        %v2040 = vsel %vm1687, 1, 0
        %v2041 = vsel %vm1688, 1, 0
        %v2042 = vsel %vm1689, 1, 0
        %v2043 = vsel %vm1690, 1, 0
        %v2044 = vsel %vm1691, 1, 0
        %v2045 = vsel %vm1692, 1, 0
        %v2046 = vsel %vm1693, 1, 0
        %v2047 = vsel %vm1694, 1, 0
        %v2048 = vsel %vm1695, 1, 0
        %v2049 = vsel %vm1696, 1, 0
        %v2050 = vsel %vm1697, 1, 0
        %v2051 = vsel %vm1698, 1, 0
        %v2052 = vsel %vm1699, 1, 0
        %vm2053 = vcmp.eq.s32.totalorder %v2021, 1
        %vm2054 = vcmp.eq.s32.totalorder %v2022, 1
        %vm2055 = vcmp.eq.s32.totalorder %v2023, 1
        %vm2056 = vcmp.eq.s32.totalorder %v2024, 1
        %vm2057 = vcmp.eq.s32.totalorder %v2025, 1
        %vm2058 = vcmp.eq.s32.totalorder %v2026, 1
        %vm2059 = vcmp.eq.s32.totalorder %v2027, 1
        %vm2060 = vcmp.eq.s32.totalorder %v2028, 1
        %vm2061 = vcmp.eq.s32.totalorder %v2029, 1
        %vm2062 = vcmp.eq.s32.totalorder %v2030, 1
        %vm2063 = vcmp.eq.s32.totalorder %v2031, 1
        %vm2064 = vcmp.eq.s32.totalorder %v2032, 1
        %vm2065 = vcmp.eq.s32.totalorder %v2033, 1
        %vm2066 = vcmp.eq.s32.totalorder %v2034, 1
        %vm2067 = vcmp.eq.s32.totalorder %v2035, 1
        %vm2068 = vcmp.eq.s32.totalorder %v2036, 1
        %vm2069 = vcmp.eq.s32.totalorder %v2037, 1
        %vm2070 = vcmp.eq.s32.totalorder %v2038, 1
        %vm2071 = vcmp.eq.s32.totalorder %v2039, 1
        %vm2072 = vcmp.eq.s32.totalorder %v2040, 1
        %vm2073 = vcmp.eq.s32.totalorder %v2041, 1
        %vm2074 = vcmp.eq.s32.totalorder %v2042, 1
        %vm2075 = vcmp.eq.s32.totalorder %v2043, 1
        %vm2076 = vcmp.eq.s32.totalorder %v2044, 1
        %vm2077 = vcmp.eq.s32.totalorder %v2045, 1
        %vm2078 = vcmp.eq.s32.totalorder %v2046, 1
        %vm2079 = vcmp.eq.s32.totalorder %v2047, 1
        %vm2080 = vcmp.eq.s32.totalorder %v2048, 1
        %vm2081 = vcmp.eq.s32.totalorder %v2049, 1
        %vm2082 = vcmp.eq.s32.totalorder %v2050, 1
        %vm2083 = vcmp.eq.s32.totalorder %v2051, 1
        %vm2084 = vcmp.eq.s32.totalorder %v2052, 1
        %v2085 = vsel %vm2053, %v1989, 0.0
        %v2086 = vsel %vm2054, %v1990, 0.0
        %v2087 = vsel %vm2055, %v1991, 0.0
        %v2088 = vsel %vm2056, %v1992, 0.0
        %v2089 = vsel %vm2057, %v1993, 0.0
        %v2090 = vsel %vm2058, %v1994, 0.0
        %v2091 = vsel %vm2059, %v1995, 0.0
        %v2092 = vsel %vm2060, %v1996, 0.0
        %v2093 = vsel %vm2061, %v1997, 0.0
        %v2094 = vsel %vm2062, %v1998, 0.0
        %v2095 = vsel %vm2063, %v1999, 0.0
        %v2096 = vsel %vm2064, %v2000, 0.0
        %v2097 = vsel %vm2065, %v2001, 0.0
        %v2098 = vsel %vm2066, %v2002, 0.0
        %v2099 = vsel %vm2067, %v2003, 0.0
        %v2100 = vsel %vm2068, %v2004, 0.0
        %v2101 = vsel %vm2069, %v2005, 0.0
        %v2102 = vsel %vm2070, %v2006, 0.0
        %v2103 = vsel %vm2071, %v2007, 0.0
        %v2104 = vsel %vm2072, %v2008, 0.0
        %v2105 = vsel %vm2073, %v2009, 0.0
        %v2106 = vsel %vm2074, %v2010, 0.0
        %v2107 = vsel %vm2075, %v2011, 0.0
        %v2108 = vsel %vm2076, %v2012, 0.0
        %v2109 = vsel %vm2077, %v2013, 0.0
        %v2110 = vsel %vm2078, %v2014, 0.0
        %v2111 = vsel %vm2079, %v2015, 0.0
        %v2112 = vsel %vm2080, %v2016, 0.0
        %v2113 = vsel %vm2081, %v2017, 0.0
        %v2114 = vsel %vm2082, %v2018, 0.0
        %v2115 = vsel %vm2083, %v2019, 0.0
        %v2116 = vsel %vm2084, %v2020, 0.0
        %v2117 = vpack.c.bf16 %v2086, %v2085
        %v2118 = vpack.c.bf16 %v2088, %v2087
        %v2119 = vpack.c.bf16 %v2090, %v2089
        %v2120 = vpack.c.bf16 %v2092, %v2091
        %v2121 = vpack.c.bf16 %v2094, %v2093
        %v2122 = vpack.c.bf16 %v2096, %v2095
        %v2123 = vpack.c.bf16 %v2098, %v2097
        %v2124 = vpack.c.bf16 %v2100, %v2099
        %v2125 = vpack.c.bf16 %v2102, %v2101
        %v2126 = vpack.c.bf16 %v2104, %v2103
        %v2127 = vpack.c.bf16 %v2106, %v2105
        %v2128 = vpack.c.bf16 %v2108, %v2107
        %v2129 = vpack.c.bf16 %v2110, %v2109
        %v2130 = vpack.c.bf16 %v2112, %v2111
        %v2131 = vpack.c.bf16 %v2114, %v2113
        %v2132 = vpack.c.bf16 %v2116, %v2115
        %2149 = vrot.lane.b32.xlu0 %v2117, 64
        %v2150 = vpop.permute.xlu0 %2149
        %2151 = vrot.lane.b32.xlu0 %v2118, 64
        %v2152 = vpop.permute.xlu0 %2151
        %2153 = vrot.lane.b32.xlu0 %v2119, 64
        %v2154 = vpop.permute.xlu0 %2153
        %2155 = vrot.lane.b32.xlu0 %v2120, 64
        %v2156 = vpop.permute.xlu0 %2155
        %2157 = vrot.lane.b32.xlu0 %v2121, 64
        %v2158 = vpop.permute.xlu0 %2157
        %2159 = vrot.lane.b32.xlu0 %v2122, 64
        %v2160 = vpop.permute.xlu0 %2159
        %2161 = vrot.lane.b32.xlu0 %v2123, 64
        %v2162 = vpop.permute.xlu0 %2161
        %2163 = vrot.lane.b32.xlu0 %v2124, 64
        %v2164 = vpop.permute.xlu0 %2163
        %2165 = vrot.lane.b32.xlu0 %v2125, 64
        %v2166 = vpop.permute.xlu0 %2165
        %2167 = vrot.lane.b32.xlu0 %v2126, 64
        %v2168 = vpop.permute.xlu0 %2167
        %2169 = vrot.lane.b32.xlu0 %v2127, 64
        %v2170 = vpop.permute.xlu0 %2169
        %2171 = vrot.lane.b32.xlu0 %v2128, 64
        %v2172 = vpop.permute.xlu0 %2171
        %2173 = vrot.lane.b32.xlu0 %v2129, 64
        %v2174 = vpop.permute.xlu0 %2173
        %2175 = vrot.lane.b32.xlu0 %v2130, 64
        %v2176 = vpop.permute.xlu0 %2175
        %2177 = vrot.lane.b32.xlu0 %v2131, 64
        %v2178 = vpop.permute.xlu0 %2177
        %2179 = vrot.lane.b32.xlu0 %v2132, 64
        %v2180 = vpop.permute.xlu0 %2179
        %vm2197 = vcmask 785920
        %2198 = vst.msk [vmem:[#allocation3] sm:$0xff] %vm2197, %v2150
        %2199 = vst.msk [vmem:[#allocation3 + $0x18] sm:$0xff] %vm2197, %v2152
        %2200 = vst.msk [vmem:[#allocation3 + $0x30] sm:$0xff] %vm2197, %v2154
        %2201 = vst.msk [vmem:[#allocation3 + $0x48] sm:$0xff] %vm2197, %v2156
        %2202 = vst.msk [vmem:[#allocation3 + $0x60] sm:$0xff] %vm2197, %v2158
        %2203 = vst.msk [vmem:[#allocation3 + $0x78] sm:$0xff] %vm2197, %v2160
        %2204 = vst.msk [vmem:[#allocation3 + $0x90] sm:$0xff] %vm2197, %v2162
        %2205 = vst.msk [vmem:[#allocation3 + $0xa8] sm:$0xff] %vm2197, %v2164
        %2206 = vst.msk [vmem:[#allocation3 + $0xc0] sm:$0xff] %vm2197, %v2166
        %2207 = vst.msk [vmem:[#allocation3 + $0xd8] sm:$0xff] %vm2197, %v2168
        %2208 = vst.msk [vmem:[#allocation3 + $0xf0] sm:$0xff] %vm2197, %v2170
        %2209 = vst.msk [vmem:[#allocation3 + $0x108] sm:$0xff] %vm2197, %v2172
        %2210 = vst.msk [vmem:[#allocation3 + $0x120] sm:$0xff] %vm2197, %v2174
        %2211 = vst.msk [vmem:[#allocation3 + $0x138] sm:$0xff] %vm2197, %v2176
        %2212 = vst.msk [vmem:[#allocation3 + $0x150] sm:$0xff] %vm2197, %v2178
        %2213 = vst.msk [vmem:[#allocation3 + $0x168] sm:$0xff] %vm2197, %v2180
        %v2214 = vld [vmem:[#allocation2 + $0x17] sm:$0xff]
        %v2215 = vld [vmem:[#allocation2 + $0x1f] sm:$0xff]
        %v2216 = vld [vmem:[#allocation2 + $0x27] sm:$0xff]
        %v2217 = vld [vmem:[#allocation2 + $0x2f] sm:$0xff]
        %v2218 = vld [vmem:[#allocation2 + $0x37] sm:$0xff]
        %v2219 = vld [vmem:[#allocation2 + $0x3f] sm:$0xff]
        %v2220 = vld [vmem:[#allocation2 + $0x47] sm:$0xff]
        %v2221 = vld [vmem:[#allocation2 + $0x4f] sm:$0xff]
        %v2222 = vld [vmem:[#allocation2 + $0x57] sm:$0xff]
        %v2223 = vld [vmem:[#allocation2 + $0x5f] sm:$0xff]
        %v2224 = vld [vmem:[#allocation2 + $0x67] sm:$0xff]
        %v2225 = vld [vmem:[#allocation2 + $0x6f] sm:$0xff]
        %v2226 = vld [vmem:[#allocation2 + $0x77] sm:$0xff]
        %v2227 = vld [vmem:[#allocation2 + $0x7f] sm:$0xff]
        %v2228 = vld [vmem:[#allocation2 + $0x87] sm:$0xff]
        %v2229 = vld [vmem:[#allocation2 + $0x8f] sm:$0xff]
        %v2230 = vld [vmem:[#allocation2 + $0x97] sm:$0xff]
        %v2231 = vld [vmem:[#allocation2 + $0x9f] sm:$0xff]
        %v2232 = vld [vmem:[#allocation2 + $0xa7] sm:$0xff]
        %v2233 = vld [vmem:[#allocation2 + $0xaf] sm:$0xff]
        %v2234 = vld [vmem:[#allocation2 + $0xb7] sm:$0xff]
        %v2235 = vld [vmem:[#allocation2 + $0xbf] sm:$0xff]
        %v2236 = vld [vmem:[#allocation2 + $0xc7] sm:$0xff]
        %v2237 = vld [vmem:[#allocation2 + $0xcf] sm:$0xff]
        %v2238 = vld [vmem:[#allocation2 + $0xd7] sm:$0xff]
        %v2239 = vld [vmem:[#allocation2 + $0xdf] sm:$0xff]
        %v2240 = vld [vmem:[#allocation2 + $0xe7] sm:$0xff]
        %v2241 = vld [vmem:[#allocation2 + $0xef] sm:$0xff]
        %v2242 = vld [vmem:[#allocation2 + $0xf7] sm:$0xff]
        %v2243 = vld [vmem:[#allocation2 + $0xff] sm:$0xff]
        %v2244 = vld [vmem:[#allocation2 + $0x107] sm:$0xff]
        %v2245 = vld [vmem:[#allocation2 + $0x10f] sm:$0xff]
        %v2246 = vsel %vm1764, %v2214, 0.0
        %v2247 = vsel %vm1765, %v2215, 0.0
        %v2248 = vsel %vm1766, %v2216, 0.0
        %v2249 = vsel %vm1767, %v2217, 0.0
        %v2250 = vsel %vm1768, %v2218, 0.0
        %v2251 = vsel %vm1769, %v2219, 0.0
        %v2252 = vsel %vm1770, %v2220, 0.0
        %v2253 = vsel %vm1771, %v2221, 0.0
        %v2254 = vsel %vm1772, %v2222, 0.0
        %v2255 = vsel %vm1773, %v2223, 0.0
        %v2256 = vsel %vm1774, %v2224, 0.0
        %v2257 = vsel %vm1775, %v2225, 0.0
        %v2258 = vsel %vm1776, %v2226, 0.0
        %v2259 = vsel %vm1777, %v2227, 0.0
        %v2260 = vsel %vm1778, %v2228, 0.0
        %v2261 = vsel %vm1779, %v2229, 0.0
        %v2262 = vsel %vm1780, %v2230, 0.0
        %v2263 = vsel %vm1781, %v2231, 0.0
        %v2264 = vsel %vm1782, %v2232, 0.0
        %v2265 = vsel %vm1783, %v2233, 0.0
        %v2266 = vsel %vm1784, %v2234, 0.0
        %v2267 = vsel %vm1785, %v2235, 0.0
        %v2268 = vsel %vm1786, %v2236, 0.0
        %v2269 = vsel %vm1787, %v2237, 0.0
        %v2270 = vsel %vm1788, %v2238, 0.0
        %v2271 = vsel %vm1789, %v2239, 0.0
        %v2272 = vsel %vm1790, %v2240, 0.0
        %v2273 = vsel %vm1791, %v2241, 0.0
        %v2274 = vsel %vm1792, %v2242, 0.0
        %v2275 = vsel %vm1793, %v2243, 0.0
        %v2276 = vsel %vm1794, %v2244, 0.0
        %v2277 = vsel %vm1795, %v2245, 0.0
        %v2278 = vpack.c.bf16 %v2247, %v2246
        %v2279 = vpack.c.bf16 %v2249, %v2248
        %v2280 = vpack.c.bf16 %v2251, %v2250
        %v2281 = vpack.c.bf16 %v2253, %v2252
        %v2282 = vpack.c.bf16 %v2255, %v2254
        %v2283 = vpack.c.bf16 %v2257, %v2256
        %v2284 = vpack.c.bf16 %v2259, %v2258
        %v2285 = vpack.c.bf16 %v2261, %v2260
        %v2286 = vpack.c.bf16 %v2263, %v2262
        %v2287 = vpack.c.bf16 %v2265, %v2264
        %v2288 = vpack.c.bf16 %v2267, %v2266
        %v2289 = vpack.c.bf16 %v2269, %v2268
        %v2290 = vpack.c.bf16 %v2271, %v2270
        %v2291 = vpack.c.bf16 %v2273, %v2272
        %v2292 = vpack.c.bf16 %v2275, %v2274
        %v2293 = vpack.c.bf16 %v2277, %v2276
        %2310 = vrot.lane.b32.xlu0 %v2278, 96
        %v2311 = vpop.permute.xlu0 %2310
        %2312 = vrot.lane.b32.xlu0 %v2279, 96
        %v2313 = vpop.permute.xlu0 %2312
        %2314 = vrot.lane.b32.xlu0 %v2280, 96
        %v2315 = vpop.permute.xlu0 %2314
        %2316 = vrot.lane.b32.xlu0 %v2281, 96
        %v2317 = vpop.permute.xlu0 %2316
        %2318 = vrot.lane.b32.xlu0 %v2282, 96
        %v2319 = vpop.permute.xlu0 %2318
        %2320 = vrot.lane.b32.xlu0 %v2283, 96
        %v2321 = vpop.permute.xlu0 %2320
        %2322 = vrot.lane.b32.xlu0 %v2284, 96
        %v2323 = vpop.permute.xlu0 %2322
        %2324 = vrot.lane.b32.xlu0 %v2285, 96
        %v2325 = vpop.permute.xlu0 %2324
        %2326 = vrot.lane.b32.xlu0 %v2286, 96
        %v2327 = vpop.permute.xlu0 %2326
        %2328 = vrot.lane.b32.xlu0 %v2287, 96
        %v2329 = vpop.permute.xlu0 %2328
        %2330 = vrot.lane.b32.xlu0 %v2288, 96
        %v2331 = vpop.permute.xlu0 %2330
        %2332 = vrot.lane.b32.xlu0 %v2289, 96
        %v2333 = vpop.permute.xlu0 %2332
        %2334 = vrot.lane.b32.xlu0 %v2290, 96
        %v2335 = vpop.permute.xlu0 %2334
        %2336 = vrot.lane.b32.xlu0 %v2291, 96
        %v2337 = vpop.permute.xlu0 %2336
        %2338 = vrot.lane.b32.xlu0 %v2292, 96
        %v2339 = vpop.permute.xlu0 %2338
        %2340 = vrot.lane.b32.xlu0 %v2293, 96
        %v2341 = vpop.permute.xlu0 %2340
        %vm2358 = vcmask 1048320
        %2359 = vst.msk [vmem:[#allocation3] sm:$0xff] %vm2358, %v2311
        %2360 = vst.msk [vmem:[#allocation3 + $0x18] sm:$0xff] %vm2358, %v2313
        %2361 = vst.msk [vmem:[#allocation3 + $0x30] sm:$0xff] %vm2358, %v2315
        %2362 = vst.msk [vmem:[#allocation3 + $0x48] sm:$0xff] %vm2358, %v2317
        %2363 = vst.msk [vmem:[#allocation3 + $0x60] sm:$0xff] %vm2358, %v2319
        %2364 = vst.msk [vmem:[#allocation3 + $0x78] sm:$0xff] %vm2358, %v2321
        %2365 = vst.msk [vmem:[#allocation3 + $0x90] sm:$0xff] %vm2358, %v2323
        %2366 = vst.msk [vmem:[#allocation3 + $0xa8] sm:$0xff] %vm2358, %v2325
        %2367 = vst.msk [vmem:[#allocation3 + $0xc0] sm:$0xff] %vm2358, %v2327
        %2368 = vst.msk [vmem:[#allocation3 + $0xd8] sm:$0xff] %vm2358, %v2329
        %2369 = vst.msk [vmem:[#allocation3 + $0xf0] sm:$0xff] %vm2358, %v2331
        %2370 = vst.msk [vmem:[#allocation3 + $0x108] sm:$0xff] %vm2358, %v2333
        %2371 = vst.msk [vmem:[#allocation3 + $0x120] sm:$0xff] %vm2358, %v2335
        %2372 = vst.msk [vmem:[#allocation3 + $0x138] sm:$0xff] %vm2358, %v2337
        %2373 = vst.msk [vmem:[#allocation3 + $0x150] sm:$0xff] %vm2358, %v2339
        %2374 = vst.msk [vmem:[#allocation3 + $0x168] sm:$0xff] %vm2358, %v2341
        %v2375 = vld [vmem:[#allocation2 + $0x18] sm:$0xff]
        %v2376 = vld [vmem:[#allocation2 + $0x20] sm:$0xff]
        %v2377 = vld [vmem:[#allocation2 + $0x28] sm:$0xff]
        %v2378 = vld [vmem:[#allocation2 + $0x30] sm:$0xff]
        %v2379 = vld [vmem:[#allocation2 + $0x38] sm:$0xff]
        %v2380 = vld [vmem:[#allocation2 + $0x40] sm:$0xff]
        %v2381 = vld [vmem:[#allocation2 + $0x48] sm:$0xff]
        %v2382 = vld [vmem:[#allocation2 + $0x50] sm:$0xff]
        %v2383 = vld [vmem:[#allocation2 + $0x58] sm:$0xff]
        %v2384 = vld [vmem:[#allocation2 + $0x60] sm:$0xff]
        %v2385 = vld [vmem:[#allocation2 + $0x68] sm:$0xff]
        %v2386 = vld [vmem:[#allocation2 + $0x70] sm:$0xff]
        %v2387 = vld [vmem:[#allocation2 + $0x78] sm:$0xff]
        %v2388 = vld [vmem:[#allocation2 + $0x80] sm:$0xff]
        %v2389 = vld [vmem:[#allocation2 + $0x88] sm:$0xff]
        %v2390 = vld [vmem:[#allocation2 + $0x90] sm:$0xff]
        %v2391 = vld [vmem:[#allocation2 + $0x98] sm:$0xff]
        %v2392 = vld [vmem:[#allocation2 + $0xa0] sm:$0xff]
        %v2393 = vld [vmem:[#allocation2 + $0xa8] sm:$0xff]
        %v2394 = vld [vmem:[#allocation2 + $0xb0] sm:$0xff]
        %v2395 = vld [vmem:[#allocation2 + $0xb8] sm:$0xff]
        %v2396 = vld [vmem:[#allocation2 + $0xc0] sm:$0xff]
        %v2397 = vld [vmem:[#allocation2 + $0xc8] sm:$0xff]
        %v2398 = vld [vmem:[#allocation2 + $0xd0] sm:$0xff]
        %v2399 = vld [vmem:[#allocation2 + $0xd8] sm:$0xff]
        %v2400 = vld [vmem:[#allocation2 + $0xe0] sm:$0xff]
        %v2401 = vld [vmem:[#allocation2 + $0xe8] sm:$0xff]
        %v2402 = vld [vmem:[#allocation2 + $0xf0] sm:$0xff]
        %v2403 = vld [vmem:[#allocation2 + $0xf8] sm:$0xff]
        %v2404 = vld [vmem:[#allocation2 + $0x100] sm:$0xff]
        %v2405 = vld [vmem:[#allocation2 + $0x108] sm:$0xff]
        %v2406 = vld [vmem:[#allocation2 + $0x110] sm:$0xff]
        %v2407 = vpack.c.bf16 %v2376, %v2375
        %v2408 = vpack.c.bf16 %v2378, %v2377
        %v2409 = vpack.c.bf16 %v2380, %v2379
        %v2410 = vpack.c.bf16 %v2382, %v2381
        %v2411 = vpack.c.bf16 %v2384, %v2383
        %v2412 = vpack.c.bf16 %v2386, %v2385
        %v2413 = vpack.c.bf16 %v2388, %v2387
        %v2414 = vpack.c.bf16 %v2390, %v2389
        %v2415 = vpack.c.bf16 %v2392, %v2391
        %v2416 = vpack.c.bf16 %v2394, %v2393
        %v2417 = vpack.c.bf16 %v2396, %v2395
        %v2418 = vpack.c.bf16 %v2398, %v2397
        %v2419 = vpack.c.bf16 %v2400, %v2399
        %v2420 = vpack.c.bf16 %v2402, %v2401
        %v2421 = vpack.c.bf16 %v2404, %v2403
        %v2422 = vpack.c.bf16 %v2406, %v2405
        %2423 = vst.msk [vmem:[#allocation3 + $0x8] sm:$0xff] %vm896, %v2407
        %2424 = vst.msk [vmem:[#allocation3 + $0x20] sm:$0xff] %vm896, %v2408
        %2425 = vst.msk [vmem:[#allocation3 + $0x38] sm:$0xff] %vm896, %v2409
        %2426 = vst.msk [vmem:[#allocation3 + $0x50] sm:$0xff] %vm896, %v2410
        %2427 = vst.msk [vmem:[#allocation3 + $0x68] sm:$0xff] %vm896, %v2411
        %2428 = vst.msk [vmem:[#allocation3 + $0x80] sm:$0xff] %vm896, %v2412
        %2429 = vst.msk [vmem:[#allocation3 + $0x98] sm:$0xff] %vm896, %v2413
        %2430 = vst.msk [vmem:[#allocation3 + $0xb0] sm:$0xff] %vm896, %v2414
        %2431 = vst.msk [vmem:[#allocation3 + $0xc8] sm:$0xff] %vm896, %v2415
        %2432 = vst.msk [vmem:[#allocation3 + $0xe0] sm:$0xff] %vm896, %v2416
        %2433 = vst.msk [vmem:[#allocation3 + $0xf8] sm:$0xff] %vm896, %v2417
        %2434 = vst.msk [vmem:[#allocation3 + $0x110] sm:$0xff] %vm896, %v2418
        %2435 = vst.msk [vmem:[#allocation3 + $0x128] sm:$0xff] %vm896, %v2419
        %2436 = vst.msk [vmem:[#allocation3 + $0x140] sm:$0xff] %vm896, %v2420
        %2437 = vst.msk [vmem:[#allocation3 + $0x158] sm:$0xff] %vm896, %v2421
        %2438 = vst.msk [vmem:[#allocation3 + $0x170] sm:$0xff] %vm896, %v2422
        %v2439 = vld [vmem:[#allocation2 + $0x19] sm:$0xff]
        %v2440 = vld [vmem:[#allocation2 + $0x21] sm:$0xff]
        %v2441 = vld [vmem:[#allocation2 + $0x29] sm:$0xff]
        %v2442 = vld [vmem:[#allocation2 + $0x31] sm:$0xff]
        %v2443 = vld [vmem:[#allocation2 + $0x39] sm:$0xff]
        %v2444 = vld [vmem:[#allocation2 + $0x41] sm:$0xff]
        %v2445 = vld [vmem:[#allocation2 + $0x49] sm:$0xff]
        %v2446 = vld [vmem:[#allocation2 + $0x51] sm:$0xff]
        %v2447 = vld [vmem:[#allocation2 + $0x59] sm:$0xff]
        %v2448 = vld [vmem:[#allocation2 + $0x61] sm:$0xff]
        %v2449 = vld [vmem:[#allocation2 + $0x69] sm:$0xff]
        %v2450 = vld [vmem:[#allocation2 + $0x71] sm:$0xff]
        %v2451 = vld [vmem:[#allocation2 + $0x79] sm:$0xff]
        %v2452 = vld [vmem:[#allocation2 + $0x81] sm:$0xff]
        %v2453 = vld [vmem:[#allocation2 + $0x89] sm:$0xff]
        %v2454 = vld [vmem:[#allocation2 + $0x91] sm:$0xff]
        %v2455 = vld [vmem:[#allocation2 + $0x99] sm:$0xff]
        %v2456 = vld [vmem:[#allocation2 + $0xa1] sm:$0xff]
        %v2457 = vld [vmem:[#allocation2 + $0xa9] sm:$0xff]
        %v2458 = vld [vmem:[#allocation2 + $0xb1] sm:$0xff]
        %v2459 = vld [vmem:[#allocation2 + $0xb9] sm:$0xff]
        %v2460 = vld [vmem:[#allocation2 + $0xc1] sm:$0xff]
        %v2461 = vld [vmem:[#allocation2 + $0xc9] sm:$0xff]
        %v2462 = vld [vmem:[#allocation2 + $0xd1] sm:$0xff]
        %v2463 = vld [vmem:[#allocation2 + $0xd9] sm:$0xff]
        %v2464 = vld [vmem:[#allocation2 + $0xe1] sm:$0xff]
        %v2465 = vld [vmem:[#allocation2 + $0xe9] sm:$0xff]
        %v2466 = vld [vmem:[#allocation2 + $0xf1] sm:$0xff]
        %v2467 = vld [vmem:[#allocation2 + $0xf9] sm:$0xff]
        %v2468 = vld [vmem:[#allocation2 + $0x101] sm:$0xff]
        %v2469 = vld [vmem:[#allocation2 + $0x109] sm:$0xff]
        %v2470 = vld [vmem:[#allocation2 + $0x111] sm:$0xff]
        %v2471 = vsel %vm2053, %v2439, 0.0
        %v2472 = vsel %vm2054, %v2440, 0.0
        %v2473 = vsel %vm2055, %v2441, 0.0
        %v2474 = vsel %vm2056, %v2442, 0.0
        %v2475 = vsel %vm2057, %v2443, 0.0
        %v2476 = vsel %vm2058, %v2444, 0.0
        %v2477 = vsel %vm2059, %v2445, 0.0
        %v2478 = vsel %vm2060, %v2446, 0.0
        %v2479 = vsel %vm2061, %v2447, 0.0
        %v2480 = vsel %vm2062, %v2448, 0.0
        %v2481 = vsel %vm2063, %v2449, 0.0
        %v2482 = vsel %vm2064, %v2450, 0.0
        %v2483 = vsel %vm2065, %v2451, 0.0
        %v2484 = vsel %vm2066, %v2452, 0.0
        %v2485 = vsel %vm2067, %v2453, 0.0
        %v2486 = vsel %vm2068, %v2454, 0.0
        %v2487 = vsel %vm2069, %v2455, 0.0
        %v2488 = vsel %vm2070, %v2456, 0.0
        %v2489 = vsel %vm2071, %v2457, 0.0
        %v2490 = vsel %vm2072, %v2458, 0.0
        %v2491 = vsel %vm2073, %v2459, 0.0
        %v2492 = vsel %vm2074, %v2460, 0.0
        %v2493 = vsel %vm2075, %v2461, 0.0
        %v2494 = vsel %vm2076, %v2462, 0.0
        %v2495 = vsel %vm2077, %v2463, 0.0
        %v2496 = vsel %vm2078, %v2464, 0.0
        %v2497 = vsel %vm2079, %v2465, 0.0
        %v2498 = vsel %vm2080, %v2466, 0.0
        %v2499 = vsel %vm2081, %v2467, 0.0
        %v2500 = vsel %vm2082, %v2468, 0.0
        %v2501 = vsel %vm2083, %v2469, 0.0
        %v2502 = vsel %vm2084, %v2470, 0.0
        %v2503 = vpack.c.bf16 %v2472, %v2471
        %v2504 = vpack.c.bf16 %v2474, %v2473
        %v2505 = vpack.c.bf16 %v2476, %v2475
        %v2506 = vpack.c.bf16 %v2478, %v2477
        %v2507 = vpack.c.bf16 %v2480, %v2479
        %v2508 = vpack.c.bf16 %v2482, %v2481
        %v2509 = vpack.c.bf16 %v2484, %v2483
        %v2510 = vpack.c.bf16 %v2486, %v2485
        %v2511 = vpack.c.bf16 %v2488, %v2487
        %v2512 = vpack.c.bf16 %v2490, %v2489
        %v2513 = vpack.c.bf16 %v2492, %v2491
        %v2514 = vpack.c.bf16 %v2494, %v2493
        %v2515 = vpack.c.bf16 %v2496, %v2495
        %v2516 = vpack.c.bf16 %v2498, %v2497
        %v2517 = vpack.c.bf16 %v2500, %v2499
        %v2518 = vpack.c.bf16 %v2502, %v2501
        %2535 = vrot.lane.b32.xlu0 %v2503, 32
        %v2536 = vpop.permute.xlu0 %2535
        %2537 = vrot.lane.b32.xlu0 %v2504, 32
        %v2538 = vpop.permute.xlu0 %2537
        %2539 = vrot.lane.b32.xlu0 %v2505, 32
        %v2540 = vpop.permute.xlu0 %2539
        %2541 = vrot.lane.b32.xlu0 %v2506, 32
        %v2542 = vpop.permute.xlu0 %2541
        %2543 = vrot.lane.b32.xlu0 %v2507, 32
        %v2544 = vpop.permute.xlu0 %2543
        %2545 = vrot.lane.b32.xlu0 %v2508, 32
        %v2546 = vpop.permute.xlu0 %2545
        %2547 = vrot.lane.b32.xlu0 %v2509, 32
        %v2548 = vpop.permute.xlu0 %2547
        %2549 = vrot.lane.b32.xlu0 %v2510, 32
        %v2550 = vpop.permute.xlu0 %2549
        %2551 = vrot.lane.b32.xlu0 %v2511, 32
        %v2552 = vpop.permute.xlu0 %2551
        %2553 = vrot.lane.b32.xlu0 %v2512, 32
        %v2554 = vpop.permute.xlu0 %2553
        %2555 = vrot.lane.b32.xlu0 %v2513, 32
        %v2556 = vpop.permute.xlu0 %2555
        %2557 = vrot.lane.b32.xlu0 %v2514, 32
        %v2558 = vpop.permute.xlu0 %2557
        %2559 = vrot.lane.b32.xlu0 %v2515, 32
        %v2560 = vpop.permute.xlu0 %2559
        %2561 = vrot.lane.b32.xlu0 %v2516, 32
        %v2562 = vpop.permute.xlu0 %2561
        %2563 = vrot.lane.b32.xlu0 %v2517, 32
        %v2564 = vpop.permute.xlu0 %2563
        %2565 = vrot.lane.b32.xlu0 %v2518, 32
        %v2566 = vpop.permute.xlu0 %2565
        %2583 = vst.msk [vmem:[#allocation3 + $0x8] sm:$0xff] %vm1972, %v2536
        %2584 = vst.msk [vmem:[#allocation3 + $0x20] sm:$0xff] %vm1972, %v2538
        %2585 = vst.msk [vmem:[#allocation3 + $0x38] sm:$0xff] %vm1972, %v2540
        %2586 = vst.msk [vmem:[#allocation3 + $0x50] sm:$0xff] %vm1972, %v2542
        %2587 = vst.msk [vmem:[#allocation3 + $0x68] sm:$0xff] %vm1972, %v2544
        %2588 = vst.msk [vmem:[#allocation3 + $0x80] sm:$0xff] %vm1972, %v2546
        %2589 = vst.msk [vmem:[#allocation3 + $0x98] sm:$0xff] %vm1972, %v2548
        %2590 = vst.msk [vmem:[#allocation3 + $0xb0] sm:$0xff] %vm1972, %v2550
        %2591 = vst.msk [vmem:[#allocation3 + $0xc8] sm:$0xff] %vm1972, %v2552
        %2592 = vst.msk [vmem:[#allocation3 + $0xe0] sm:$0xff] %vm1972, %v2554
        %2593 = vst.msk [vmem:[#allocation3 + $0xf8] sm:$0xff] %vm1972, %v2556
        %2594 = vst.msk [vmem:[#allocation3 + $0x110] sm:$0xff] %vm1972, %v2558
        %2595 = vst.msk [vmem:[#allocation3 + $0x128] sm:$0xff] %vm1972, %v2560
        %2596 = vst.msk [vmem:[#allocation3 + $0x140] sm:$0xff] %vm1972, %v2562
        %2597 = vst.msk [vmem:[#allocation3 + $0x158] sm:$0xff] %vm1972, %v2564
        %2598 = vst.msk [vmem:[#allocation3 + $0x170] sm:$0xff] %vm1972, %v2566
        %v2599 = vld [vmem:[#allocation2 + $0x27] sm:$0xff]
        %v2600 = vld [vmem:[#allocation2 + $0x2f] sm:$0xff]
        %v2601 = vld [vmem:[#allocation2 + $0x37] sm:$0xff]
        %v2602 = vld [vmem:[#allocation2 + $0x3f] sm:$0xff]
        %v2603 = vld [vmem:[#allocation2 + $0x47] sm:$0xff]
        %v2604 = vld [vmem:[#allocation2 + $0x4f] sm:$0xff]
        %v2605 = vld [vmem:[#allocation2 + $0x57] sm:$0xff]
        %v2606 = vld [vmem:[#allocation2 + $0x5f] sm:$0xff]
        %v2607 = vld [vmem:[#allocation2 + $0x67] sm:$0xff]
        %v2608 = vld [vmem:[#allocation2 + $0x6f] sm:$0xff]
        %v2609 = vld [vmem:[#allocation2 + $0x77] sm:$0xff]
        %v2610 = vld [vmem:[#allocation2 + $0x7f] sm:$0xff]
        %v2611 = vld [vmem:[#allocation2 + $0x87] sm:$0xff]
        %v2612 = vld [vmem:[#allocation2 + $0x8f] sm:$0xff]
        %v2613 = vld [vmem:[#allocation2 + $0x97] sm:$0xff]
        %v2614 = vld [vmem:[#allocation2 + $0x9f] sm:$0xff]
        %v2615 = vld [vmem:[#allocation2 + $0xa7] sm:$0xff]
        %v2616 = vld [vmem:[#allocation2 + $0xaf] sm:$0xff]
        %v2617 = vld [vmem:[#allocation2 + $0xb7] sm:$0xff]
        %v2618 = vld [vmem:[#allocation2 + $0xbf] sm:$0xff]
        %v2619 = vld [vmem:[#allocation2 + $0xc7] sm:$0xff]
        %v2620 = vld [vmem:[#allocation2 + $0xcf] sm:$0xff]
        %v2621 = vld [vmem:[#allocation2 + $0xd7] sm:$0xff]
        %v2622 = vld [vmem:[#allocation2 + $0xdf] sm:$0xff]
        %v2623 = vld [vmem:[#allocation2 + $0xe7] sm:$0xff]
        %v2624 = vld [vmem:[#allocation2 + $0xef] sm:$0xff]
        %v2625 = vld [vmem:[#allocation2 + $0xf7] sm:$0xff]
        %v2626 = vld [vmem:[#allocation2 + $0xff] sm:$0xff]
        %v2627 = vld [vmem:[#allocation2 + $0x107] sm:$0xff]
        %v2628 = vld [vmem:[#allocation2 + $0x10f] sm:$0xff]
        %v2629 = vld [vmem:[#allocation2 + $0x117] sm:$0xff]
        %v2630 = vld [vmem:[#allocation2 + $0x11f] sm:$0xff]
        %v2631 = vsel %vm1764, %v2599, 0.0
        %v2632 = vsel %vm1765, %v2600, 0.0
        %v2633 = vsel %vm1766, %v2601, 0.0
        %v2634 = vsel %vm1767, %v2602, 0.0
        %v2635 = vsel %vm1768, %v2603, 0.0
        %v2636 = vsel %vm1769, %v2604, 0.0
        %v2637 = vsel %vm1770, %v2605, 0.0
        %v2638 = vsel %vm1771, %v2606, 0.0
        %v2639 = vsel %vm1772, %v2607, 0.0
        %v2640 = vsel %vm1773, %v2608, 0.0
        %v2641 = vsel %vm1774, %v2609, 0.0
        %v2642 = vsel %vm1775, %v2610, 0.0
        %v2643 = vsel %vm1776, %v2611, 0.0
        %v2644 = vsel %vm1777, %v2612, 0.0
        %v2645 = vsel %vm1778, %v2613, 0.0
        %v2646 = vsel %vm1779, %v2614, 0.0
        %v2647 = vsel %vm1780, %v2615, 0.0
        %v2648 = vsel %vm1781, %v2616, 0.0
        %v2649 = vsel %vm1782, %v2617, 0.0
        %v2650 = vsel %vm1783, %v2618, 0.0
        %v2651 = vsel %vm1784, %v2619, 0.0
        %v2652 = vsel %vm1785, %v2620, 0.0
        %v2653 = vsel %vm1786, %v2621, 0.0
        %v2654 = vsel %vm1787, %v2622, 0.0
        %v2655 = vsel %vm1788, %v2623, 0.0
        %v2656 = vsel %vm1789, %v2624, 0.0
        %v2657 = vsel %vm1790, %v2625, 0.0
        %v2658 = vsel %vm1791, %v2626, 0.0
        %v2659 = vsel %vm1792, %v2627, 0.0
        %v2660 = vsel %vm1793, %v2628, 0.0
        %v2661 = vsel %vm1794, %v2629, 0.0
        %v2662 = vsel %vm1795, %v2630, 0.0
        %v2663 = vpack.c.bf16 %v2632, %v2631
        %v2664 = vpack.c.bf16 %v2634, %v2633
        %v2665 = vpack.c.bf16 %v2636, %v2635
        %v2666 = vpack.c.bf16 %v2638, %v2637
        %v2667 = vpack.c.bf16 %v2640, %v2639
        %v2668 = vpack.c.bf16 %v2642, %v2641
        %v2669 = vpack.c.bf16 %v2644, %v2643
        %v2670 = vpack.c.bf16 %v2646, %v2645
        %v2671 = vpack.c.bf16 %v2648, %v2647
        %v2672 = vpack.c.bf16 %v2650, %v2649
        %v2673 = vpack.c.bf16 %v2652, %v2651
        %v2674 = vpack.c.bf16 %v2654, %v2653
        %v2675 = vpack.c.bf16 %v2656, %v2655
        %v2676 = vpack.c.bf16 %v2658, %v2657
        %v2677 = vpack.c.bf16 %v2660, %v2659
        %v2678 = vpack.c.bf16 %v2662, %v2661
        %2695 = vrot.lane.b32.xlu0 %v2663, 64
        %v2696 = vpop.permute.xlu0 %2695
        %2697 = vrot.lane.b32.xlu0 %v2664, 64
        %v2698 = vpop.permute.xlu0 %2697
        %2699 = vrot.lane.b32.xlu0 %v2665, 64
        %v2700 = vpop.permute.xlu0 %2699
        %2701 = vrot.lane.b32.xlu0 %v2666, 64
        %v2702 = vpop.permute.xlu0 %2701
        %2703 = vrot.lane.b32.xlu0 %v2667, 64
        %v2704 = vpop.permute.xlu0 %2703
        %2705 = vrot.lane.b32.xlu0 %v2668, 64
        %v2706 = vpop.permute.xlu0 %2705
        %2707 = vrot.lane.b32.xlu0 %v2669, 64
        %v2708 = vpop.permute.xlu0 %2707
        %2709 = vrot.lane.b32.xlu0 %v2670, 64
        %v2710 = vpop.permute.xlu0 %2709
        %2711 = vrot.lane.b32.xlu0 %v2671, 64
        %v2712 = vpop.permute.xlu0 %2711
        %2713 = vrot.lane.b32.xlu0 %v2672, 64
        %v2714 = vpop.permute.xlu0 %2713
        %2715 = vrot.lane.b32.xlu0 %v2673, 64
        %v2716 = vpop.permute.xlu0 %2715
        %2717 = vrot.lane.b32.xlu0 %v2674, 64
        %v2718 = vpop.permute.xlu0 %2717
        %2719 = vrot.lane.b32.xlu0 %v2675, 64
        %v2720 = vpop.permute.xlu0 %2719
        %2721 = vrot.lane.b32.xlu0 %v2676, 64
        %v2722 = vpop.permute.xlu0 %2721
        %2723 = vrot.lane.b32.xlu0 %v2677, 64
        %v2724 = vpop.permute.xlu0 %2723
        %2725 = vrot.lane.b32.xlu0 %v2678, 64
        %v2726 = vpop.permute.xlu0 %2725
        %2743 = vst.msk [vmem:[#allocation3 + $0x8] sm:$0xff] %vm2197, %v2696
        %2744 = vst.msk [vmem:[#allocation3 + $0x20] sm:$0xff] %vm2197, %v2698
        %2745 = vst.msk [vmem:[#allocation3 + $0x38] sm:$0xff] %vm2197, %v2700
        %2746 = vst.msk [vmem:[#allocation3 + $0x50] sm:$0xff] %vm2197, %v2702
        %2747 = vst.msk [vmem:[#allocation3 + $0x68] sm:$0xff] %vm2197, %v2704
        %2748 = vst.msk [vmem:[#allocation3 + $0x80] sm:$0xff] %vm2197, %v2706
        %2749 = vst.msk [vmem:[#allocation3 + $0x98] sm:$0xff] %vm2197, %v2708
        %2750 = vst.msk [vmem:[#allocation3 + $0xb0] sm:$0xff] %vm2197, %v2710
        %2751 = vst.msk [vmem:[#allocation3 + $0xc8] sm:$0xff] %vm2197, %v2712
        %2752 = vst.msk [vmem:[#allocation3 + $0xe0] sm:$0xff] %vm2197, %v2714
        %2753 = vst.msk [vmem:[#allocation3 + $0xf8] sm:$0xff] %vm2197, %v2716
        %2754 = vst.msk [vmem:[#allocation3 + $0x110] sm:$0xff] %vm2197, %v2718
        %2755 = vst.msk [vmem:[#allocation3 + $0x128] sm:$0xff] %vm2197, %v2720
        %2756 = vst.msk [vmem:[#allocation3 + $0x140] sm:$0xff] %vm2197, %v2722
        %2757 = vst.msk [vmem:[#allocation3 + $0x158] sm:$0xff] %vm2197, %v2724
        %2758 = vst.msk [vmem:[#allocation3 + $0x170] sm:$0xff] %vm2197, %v2726
        %v2759 = vld [vmem:[#allocation2 + $0x28] sm:$0xff]
        %v2760 = vld [vmem:[#allocation2 + $0x30] sm:$0xff]
        %v2761 = vld [vmem:[#allocation2 + $0x38] sm:$0xff]
        %v2762 = vld [vmem:[#allocation2 + $0x40] sm:$0xff]
        %v2763 = vld [vmem:[#allocation2 + $0x48] sm:$0xff]
        %v2764 = vld [vmem:[#allocation2 + $0x50] sm:$0xff]
        %v2765 = vld [vmem:[#allocation2 + $0x58] sm:$0xff]
        %v2766 = vld [vmem:[#allocation2 + $0x60] sm:$0xff]
        %v2767 = vld [vmem:[#allocation2 + $0x68] sm:$0xff]
        %v2768 = vld [vmem:[#allocation2 + $0x70] sm:$0xff]
        %v2769 = vld [vmem:[#allocation2 + $0x78] sm:$0xff]
        %v2770 = vld [vmem:[#allocation2 + $0x80] sm:$0xff]
        %v2771 = vld [vmem:[#allocation2 + $0x88] sm:$0xff]
        %v2772 = vld [vmem:[#allocation2 + $0x90] sm:$0xff]
        %v2773 = vld [vmem:[#allocation2 + $0x98] sm:$0xff]
        %v2774 = vld [vmem:[#allocation2 + $0xa0] sm:$0xff]
        %v2775 = vld [vmem:[#allocation2 + $0xa8] sm:$0xff]
        %v2776 = vld [vmem:[#allocation2 + $0xb0] sm:$0xff]
        %v2777 = vld [vmem:[#allocation2 + $0xb8] sm:$0xff]
        %v2778 = vld [vmem:[#allocation2 + $0xc0] sm:$0xff]
        %v2779 = vld [vmem:[#allocation2 + $0xc8] sm:$0xff]
        %v2780 = vld [vmem:[#allocation2 + $0xd0] sm:$0xff]
        %v2781 = vld [vmem:[#allocation2 + $0xd8] sm:$0xff]
        %v2782 = vld [vmem:[#allocation2 + $0xe0] sm:$0xff]
        %v2783 = vld [vmem:[#allocation2 + $0xe8] sm:$0xff]
        %v2784 = vld [vmem:[#allocation2 + $0xf0] sm:$0xff]
        %v2785 = vld [vmem:[#allocation2 + $0xf8] sm:$0xff]
        %v2786 = vld [vmem:[#allocation2 + $0x100] sm:$0xff]
        %v2787 = vld [vmem:[#allocation2 + $0x108] sm:$0xff]
        %v2788 = vld [vmem:[#allocation2 + $0x110] sm:$0xff]
        %v2789 = vld [vmem:[#allocation2 + $0x118] sm:$0xff]
        %v2790 = vld [vmem:[#allocation2 + $0x120] sm:$0xff]
        %v2791 = vpack.c.bf16 %v2760, %v2759
        %v2792 = vpack.c.bf16 %v2762, %v2761
        %v2793 = vpack.c.bf16 %v2764, %v2763
        %v2794 = vpack.c.bf16 %v2766, %v2765
        %v2795 = vpack.c.bf16 %v2768, %v2767
        %v2796 = vpack.c.bf16 %v2770, %v2769
        %v2797 = vpack.c.bf16 %v2772, %v2771
        %v2798 = vpack.c.bf16 %v2774, %v2773
        %v2799 = vpack.c.bf16 %v2776, %v2775
        %v2800 = vpack.c.bf16 %v2778, %v2777
        %v2801 = vpack.c.bf16 %v2780, %v2779
        %v2802 = vpack.c.bf16 %v2782, %v2781
        %v2803 = vpack.c.bf16 %v2784, %v2783
        %v2804 = vpack.c.bf16 %v2786, %v2785
        %v2805 = vpack.c.bf16 %v2788, %v2787
        %v2806 = vpack.c.bf16 %v2790, %v2789
        %2823 = vrot.lane.b32.xlu0 %v2791, 96
        %v2824 = vpop.permute.xlu0 %2823
        %2825 = vrot.lane.b32.xlu0 %v2792, 96
        %v2826 = vpop.permute.xlu0 %2825
        %2827 = vrot.lane.b32.xlu0 %v2793, 96
        %v2828 = vpop.permute.xlu0 %2827
        %2829 = vrot.lane.b32.xlu0 %v2794, 96
        %v2830 = vpop.permute.xlu0 %2829
        %2831 = vrot.lane.b32.xlu0 %v2795, 96
        %v2832 = vpop.permute.xlu0 %2831
        %2833 = vrot.lane.b32.xlu0 %v2796, 96
        %v2834 = vpop.permute.xlu0 %2833
        %2835 = vrot.lane.b32.xlu0 %v2797, 96
        %v2836 = vpop.permute.xlu0 %2835
        %2837 = vrot.lane.b32.xlu0 %v2798, 96
        %v2838 = vpop.permute.xlu0 %2837
        %2839 = vrot.lane.b32.xlu0 %v2799, 96
        %v2840 = vpop.permute.xlu0 %2839
        %2841 = vrot.lane.b32.xlu0 %v2800, 96
        %v2842 = vpop.permute.xlu0 %2841
        %2843 = vrot.lane.b32.xlu0 %v2801, 96
        %v2844 = vpop.permute.xlu0 %2843
        %2845 = vrot.lane.b32.xlu0 %v2802, 96
        %v2846 = vpop.permute.xlu0 %2845
        %2847 = vrot.lane.b32.xlu0 %v2803, 96
        %v2848 = vpop.permute.xlu0 %2847
        %2849 = vrot.lane.b32.xlu0 %v2804, 96
        %v2850 = vpop.permute.xlu0 %2849
        %2851 = vrot.lane.b32.xlu0 %v2805, 96
        %v2852 = vpop.permute.xlu0 %2851
        %2853 = vrot.lane.b32.xlu0 %v2806, 96
        %v2854 = vpop.permute.xlu0 %2853
        %2871 = vst.msk [vmem:[#allocation3 + $0x8] sm:$0xff] %vm2358, %v2824
        %2872 = vst.msk [vmem:[#allocation3 + $0x20] sm:$0xff] %vm2358, %v2826
        %2873 = vst.msk [vmem:[#allocation3 + $0x38] sm:$0xff] %vm2358, %v2828
        %2874 = vst.msk [vmem:[#allocation3 + $0x50] sm:$0xff] %vm2358, %v2830
        %2875 = vst.msk [vmem:[#allocation3 + $0x68] sm:$0xff] %vm2358, %v2832
        %2876 = vst.msk [vmem:[#allocation3 + $0x80] sm:$0xff] %vm2358, %v2834
        %2877 = vst.msk [vmem:[#allocation3 + $0x98] sm:$0xff] %vm2358, %v2836
        %2878 = vst.msk [vmem:[#allocation3 + $0xb0] sm:$0xff] %vm2358, %v2838
        %2879 = vst.msk [vmem:[#allocation3 + $0xc8] sm:$0xff] %vm2358, %v2840
        %2880 = vst.msk [vmem:[#allocation3 + $0xe0] sm:$0xff] %vm2358, %v2842
        %2881 = vst.msk [vmem:[#allocation3 + $0xf8] sm:$0xff] %vm2358, %v2844
        %2882 = vst.msk [vmem:[#allocation3 + $0x110] sm:$0xff] %vm2358, %v2846
        %2883 = vst.msk [vmem:[#allocation3 + $0x128] sm:$0xff] %vm2358, %v2848
        %2884 = vst.msk [vmem:[#allocation3 + $0x140] sm:$0xff] %vm2358, %v2850
        %2885 = vst.msk [vmem:[#allocation3 + $0x158] sm:$0xff] %vm2358, %v2852
        %2886 = vst.msk [vmem:[#allocation3 + $0x170] sm:$0xff] %vm2358, %v2854
        %v2887 = vld [vmem:[#allocation2 + $0x29] sm:$0xff]
        %v2888 = vld [vmem:[#allocation2 + $0x31] sm:$0xff]
        %v2889 = vld [vmem:[#allocation2 + $0x39] sm:$0xff]
        %v2890 = vld [vmem:[#allocation2 + $0x41] sm:$0xff]
        %v2891 = vld [vmem:[#allocation2 + $0x49] sm:$0xff]
        %v2892 = vld [vmem:[#allocation2 + $0x51] sm:$0xff]
        %v2893 = vld [vmem:[#allocation2 + $0x59] sm:$0xff]
        %v2894 = vld [vmem:[#allocation2 + $0x61] sm:$0xff]
        %v2895 = vld [vmem:[#allocation2 + $0x69] sm:$0xff]
        %v2896 = vld [vmem:[#allocation2 + $0x71] sm:$0xff]
        %v2897 = vld [vmem:[#allocation2 + $0x79] sm:$0xff]
        %v2898 = vld [vmem:[#allocation2 + $0x81] sm:$0xff]
        %v2899 = vld [vmem:[#allocation2 + $0x89] sm:$0xff]
        %v2900 = vld [vmem:[#allocation2 + $0x91] sm:$0xff]
        %v2901 = vld [vmem:[#allocation2 + $0x99] sm:$0xff]
        %v2902 = vld [vmem:[#allocation2 + $0xa1] sm:$0xff]
        %v2903 = vld [vmem:[#allocation2 + $0xa9] sm:$0xff]
        %v2904 = vld [vmem:[#allocation2 + $0xb1] sm:$0xff]
        %v2905 = vld [vmem:[#allocation2 + $0xb9] sm:$0xff]
        %v2906 = vld [vmem:[#allocation2 + $0xc1] sm:$0xff]
        %v2907 = vld [vmem:[#allocation2 + $0xc9] sm:$0xff]
        %v2908 = vld [vmem:[#allocation2 + $0xd1] sm:$0xff]
        %v2909 = vld [vmem:[#allocation2 + $0xd9] sm:$0xff]
        %v2910 = vld [vmem:[#allocation2 + $0xe1] sm:$0xff]
        %v2911 = vld [vmem:[#allocation2 + $0xe9] sm:$0xff]
        %v2912 = vld [vmem:[#allocation2 + $0xf1] sm:$0xff]
        %v2913 = vld [vmem:[#allocation2 + $0xf9] sm:$0xff]
        %v2914 = vld [vmem:[#allocation2 + $0x101] sm:$0xff]
        %v2915 = vld [vmem:[#allocation2 + $0x109] sm:$0xff]
        %v2916 = vld [vmem:[#allocation2 + $0x111] sm:$0xff]
        %v2917 = vld [vmem:[#allocation2 + $0x119] sm:$0xff]
        %v2918 = vld [vmem:[#allocation2 + $0x121] sm:$0xff]
        %v2919 = vsel %vm2053, %v2887, 0.0
        %v2920 = vsel %vm2054, %v2888, 0.0
        %v2921 = vsel %vm2055, %v2889, 0.0
        %v2922 = vsel %vm2056, %v2890, 0.0
        %v2923 = vsel %vm2057, %v2891, 0.0
        %v2924 = vsel %vm2058, %v2892, 0.0
        %v2925 = vsel %vm2059, %v2893, 0.0
        %v2926 = vsel %vm2060, %v2894, 0.0
        %v2927 = vsel %vm2061, %v2895, 0.0
        %v2928 = vsel %vm2062, %v2896, 0.0
        %v2929 = vsel %vm2063, %v2897, 0.0
        %v2930 = vsel %vm2064, %v2898, 0.0
        %v2931 = vsel %vm2065, %v2899, 0.0
        %v2932 = vsel %vm2066, %v2900, 0.0
        %v2933 = vsel %vm2067, %v2901, 0.0
        %v2934 = vsel %vm2068, %v2902, 0.0
        %v2935 = vsel %vm2069, %v2903, 0.0
        %v2936 = vsel %vm2070, %v2904, 0.0
        %v2937 = vsel %vm2071, %v2905, 0.0
        %v2938 = vsel %vm2072, %v2906, 0.0
        %v2939 = vsel %vm2073, %v2907, 0.0
        %v2940 = vsel %vm2074, %v2908, 0.0
        %v2941 = vsel %vm2075, %v2909, 0.0
        %v2942 = vsel %vm2076, %v2910, 0.0
        %v2943 = vsel %vm2077, %v2911, 0.0
        %v2944 = vsel %vm2078, %v2912, 0.0
        %v2945 = vsel %vm2079, %v2913, 0.0
        %v2946 = vsel %vm2080, %v2914, 0.0
        %v2947 = vsel %vm2081, %v2915, 0.0
        %v2948 = vsel %vm2082, %v2916, 0.0
        %v2949 = vsel %vm2083, %v2917, 0.0
        %v2950 = vsel %vm2084, %v2918, 0.0
        %v2951 = vpack.c.bf16 %v2920, %v2919
        %v2952 = vpack.c.bf16 %v2922, %v2921
        %v2953 = vpack.c.bf16 %v2924, %v2923
        %v2954 = vpack.c.bf16 %v2926, %v2925
        %v2955 = vpack.c.bf16 %v2928, %v2927
        %v2956 = vpack.c.bf16 %v2930, %v2929
        %v2957 = vpack.c.bf16 %v2932, %v2931
        %v2958 = vpack.c.bf16 %v2934, %v2933
        %v2959 = vpack.c.bf16 %v2936, %v2935
        %v2960 = vpack.c.bf16 %v2938, %v2937
        %v2961 = vpack.c.bf16 %v2940, %v2939
        %v2962 = vpack.c.bf16 %v2942, %v2941
        %v2963 = vpack.c.bf16 %v2944, %v2943
        %v2964 = vpack.c.bf16 %v2946, %v2945
        %v2965 = vpack.c.bf16 %v2948, %v2947
        %v2966 = vpack.c.bf16 %v2950, %v2949
        %2967 = vst.msk [vmem:[#allocation3 + $0x10] sm:$0xff] %vm896, %v2951
        %2968 = vst.msk [vmem:[#allocation3 + $0x28] sm:$0xff] %vm896, %v2952
        %2969 = vst.msk [vmem:[#allocation3 + $0x40] sm:$0xff] %vm896, %v2953
        %2970 = vst.msk [vmem:[#allocation3 + $0x58] sm:$0xff] %vm896, %v2954
        %2971 = vst.msk [vmem:[#allocation3 + $0x70] sm:$0xff] %vm896, %v2955
        %2972 = vst.msk [vmem:[#allocation3 + $0x88] sm:$0xff] %vm896, %v2956
        %2973 = vst.msk [vmem:[#allocation3 + $0xa0] sm:$0xff] %vm896, %v2957
        %2974 = vst.msk [vmem:[#allocation3 + $0xb8] sm:$0xff] %vm896, %v2958
        %2975 = vst.msk [vmem:[#allocation3 + $0xd0] sm:$0xff] %vm896, %v2959
        %2976 = vst.msk [vmem:[#allocation3 + $0xe8] sm:$0xff] %vm896, %v2960
        %2977 = vst.msk [vmem:[#allocation3 + $0x100] sm:$0xff] %vm896, %v2961
        %2978 = vst.msk [vmem:[#allocation3 + $0x118] sm:$0xff] %vm896, %v2962
        %2979 = vst.msk [vmem:[#allocation3 + $0x130] sm:$0xff] %vm896, %v2963
        %2980 = vst.msk [vmem:[#allocation3 + $0x148] sm:$0xff] %vm896, %v2964
        %2981 = vst.msk [vmem:[#allocation3 + $0x160] sm:$0xff] %vm896, %v2965
        %2982 = vst.msk [vmem:[#allocation3 + $0x178] sm:$0xff] %vm896, %v2966
        %v2983 = vld [vmem:[#allocation3] sm:$0xff]
        %v2984 = vld [vmem:[#allocation3 + $0x8] sm:$0xff]
        %v2985 = vld [vmem:[#allocation3 + $0x10] sm:$0xff]
        %v2986 = vld [vmem:[#allocation3 + $0x18] sm:$0xff]
        %v2987 = vld [vmem:[#allocation3 + $0x20] sm:$0xff]
        %v2988 = vld [vmem:[#allocation3 + $0x28] sm:$0xff]
        %v2989 = vld [vmem:[#allocation3 + $0x30] sm:$0xff]
        %v2990 = vld [vmem:[#allocation3 + $0x38] sm:$0xff]
        %v2991 = vld [vmem:[#allocation3 + $0x40] sm:$0xff]
        %v2992 = vld [vmem:[#allocation3 + $0x48] sm:$0xff]
        %v2993 = vld [vmem:[#allocation3 + $0x50] sm:$0xff]
        %v2994 = vld [vmem:[#allocation3 + $0x58] sm:$0xff]
        %v2995 = vld [vmem:[#allocation3 + $0x60] sm:$0xff]
        %v2996 = vld [vmem:[#allocation3 + $0x68] sm:$0xff]
        %v2997 = vld [vmem:[#allocation3 + $0x70] sm:$0xff]
        %v2998 = vld [vmem:[#allocation3 + $0x78] sm:$0xff]
        %v2999 = vld [vmem:[#allocation3 + $0x80] sm:$0xff]
        %v3000 = vld [vmem:[#allocation3 + $0x88] sm:$0xff]
        %v3001 = vld [vmem:[#allocation3 + $0x90] sm:$0xff]
        %v3002 = vld [vmem:[#allocation3 + $0x98] sm:$0xff]
        %v3003 = vld [vmem:[#allocation3 + $0xa0] sm:$0xff]
        %v3004 = vld [vmem:[#allocation3 + $0xa8] sm:$0xff]
        %v3005 = vld [vmem:[#allocation3 + $0xb0] sm:$0xff]
        %v3006 = vld [vmem:[#allocation3 + $0xb8] sm:$0xff]
        %v3007 = vld [vmem:[#allocation3 + $0xc0] sm:$0xff]
        %v3008 = vld [vmem:[#allocation3 + $0xc8] sm:$0xff]
        %v3009 = vld [vmem:[#allocation3 + $0xd0] sm:$0xff]
        %v3010 = vld [vmem:[#allocation3 + $0xd8] sm:$0xff]
        %v3011 = vld [vmem:[#allocation3 + $0xe0] sm:$0xff]
        %v3012 = vld [vmem:[#allocation3 + $0xe8] sm:$0xff]
        %v3013 = vld [vmem:[#allocation3 + $0xf0] sm:$0xff]
        %v3014 = vld [vmem:[#allocation3 + $0xf8] sm:$0xff]
        %v3015 = vld [vmem:[#allocation3 + $0x100] sm:$0xff]
        %v3016 = vld [vmem:[#allocation3 + $0x108] sm:$0xff]
        %v3017 = vld [vmem:[#allocation3 + $0x110] sm:$0xff]
        %v3018 = vld [vmem:[#allocation3 + $0x118] sm:$0xff]
        %v3019 = vld [vmem:[#allocation3 + $0x120] sm:$0xff]
        %v3020 = vld [vmem:[#allocation3 + $0x128] sm:$0xff]
        %v3021 = vld [vmem:[#allocation3 + $0x130] sm:$0xff]
        %v3022 = vld [vmem:[#allocation3 + $0x138] sm:$0xff]
        %v3023 = vld [vmem:[#allocation3 + $0x140] sm:$0xff]
        %v3024 = vld [vmem:[#allocation3 + $0x148] sm:$0xff]
        %v3025 = vld [vmem:[#allocation3 + $0x150] sm:$0xff]
        %v3026 = vld [vmem:[#allocation3 + $0x158] sm:$0xff]
        %v3027 = vld [vmem:[#allocation3 + $0x160] sm:$0xff]
        %v3028 = vld [vmem:[#allocation3 + $0x168] sm:$0xff]
        %v3029 = vld [vmem:[#allocation3 + $0x170] sm:$0xff]
        %v3030 = vld [vmem:[#allocation3 + $0x178] sm:$0xff]
        %v3031 = vld [vmem:[%s2] sm:$0xf]
        %v3032 = vld [vmem:[%s2 + $0x4] sm:$0xf]
        %v3033 = vld [vmem:[%s2 + $0x8] sm:$0xf]
        %v3034 = vld [vmem:[%s2 + $0xc] sm:$0xf]
        %v3035 = vld [vmem:[%s2 + $0x10] sm:$0xf]
        %v3036 = vld [vmem:[%s2 + $0x14] sm:$0xf]
        %v3037 = vld [vmem:[%s2 + $0x18] sm:$0xf]
        %v3038 = vld [vmem:[%s2 + $0x1c] sm:$0xf]
        %v3039 = vld [vmem:[%s2 + $0x20] sm:$0xf]
        %v3040 = vld [vmem:[%s2 + $0x24] sm:$0xf]
        %v3041 = vld [vmem:[%s2 + $0x28] sm:$0xf]
        %v3042 = vld [vmem:[%s2 + $0x2c] sm:$0xf]
        %v3043 = vld [vmem:[%s2 + $0x30] sm:$0xf]
        %v3044 = vld [vmem:[%s2 + $0x34] sm:$0xf]
        %v3045 = vld [vmem:[%s2 + $0x38] sm:$0xf]
        %v3046 = vld [vmem:[%s2 + $0x3c] sm:$0xf]
        %v3047 = vld [vmem:[%s2 + $0x40] sm:$0xf]
        %v3048 = vld [vmem:[%s2 + $0x44] sm:$0xf]
        %v3049 = vld [vmem:[%s2 + $0x48] sm:$0xf]
        %v3050 = vld [vmem:[%s2 + $0x4c] sm:$0xf]
        %v3051 = vld [vmem:[%s2 + $0x50] sm:$0xf]
        %v3052 = vld [vmem:[%s2 + $0x54] sm:$0xf]
        %v3053 = vld [vmem:[%s2 + $0x58] sm:$0xf]
        %v3054 = vld [vmem:[%s2 + $0x5c] sm:$0xf]
        %v3055 = vld [vmem:[%s2 + $0x60] sm:$0xf]
        %v3056 = vld [vmem:[%s2 + $0x64] sm:$0xf]
        %v3057 = vld [vmem:[%s2 + $0x68] sm:$0xf]
        %v3058 = vld [vmem:[%s2 + $0x6c] sm:$0xf]
        %v3059 = vld [vmem:[%s2 + $0x70] sm:$0xf]
        %v3060 = vld [vmem:[%s2 + $0x74] sm:$0xf]
        %v3061 = vld [vmem:[%s2 + $0x78] sm:$0xf]
        %v3062 = vld [vmem:[%s2 + $0x7c] sm:$0xf]
        %v3063 = vld [vmem:[%s2 + $0x80] sm:$0xf]
        %v3064 = vld [vmem:[%s2 + $0x84] sm:$0xf]
        %v3065 = vld [vmem:[%s2 + $0x88] sm:$0xf]
        %v3066 = vld [vmem:[%s2 + $0x8c] sm:$0xf]
        %v3103 = vunpack.c.l.b16 %v3031
        %v3104 = vunpack.c.l.b16 %v3032
        %v3105 = vunpack.c.l.b16 %v3033
        %v3106 = vunpack.c.l.b16 %v3034
        %v3107 = vunpack.c.l.b16 %v3035
        %v3108 = vunpack.c.l.b16 %v3036
        %v3109 = vunpack.c.l.b16 %v3037
        %v3110 = vunpack.c.l.b16 %v3038
        %v3111 = vunpack.c.l.b16 %v3039
        %v3112 = vunpack.c.l.b16 %v3040
        %v3113 = vunpack.c.l.b16 %v3041
        %v3114 = vunpack.c.l.b16 %v3042
        %v3115 = vunpack.c.l.b16 %v3043
        %v3116 = vunpack.c.l.b16 %v3044
        %v3117 = vunpack.c.l.b16 %v3045
        %v3118 = vunpack.c.l.b16 %v3046
        %v3119 = vunpack.c.l.b16 %v3047
        %v3120 = vunpack.c.l.b16 %v3048
        %v3121 = vunpack.c.l.b16 %v3049
        %v3122 = vunpack.c.l.b16 %v3050
        %v3123 = vunpack.c.l.b16 %v3051
        %v3124 = vunpack.c.l.b16 %v3052
        %v3125 = vunpack.c.l.b16 %v3053
        %v3126 = vunpack.c.l.b16 %v3054
        %v3127 = vunpack.c.l.b16 %v3055
        %v3128 = vunpack.c.l.b16 %v3056
        %v3129 = vunpack.c.l.b16 %v3057
        %v3130 = vunpack.c.l.b16 %v3058
        %v3131 = vunpack.c.l.b16 %v3059
        %v3132 = vunpack.c.l.b16 %v3060
        %v3133 = vunpack.c.l.b16 %v3061
        %v3134 = vunpack.c.l.b16 %v3062
        %v3135 = vunpack.c.l.b16 %v3063
        %v3136 = vunpack.c.l.b16 %v3064
        %v3137 = vunpack.c.l.b16 %v3065
        %v3138 = vunpack.c.l.b16 %v3066
        %v3139 = vpack.c.b16 %v3104, %v3103
        %v3140 = vpack.c.b16 %v3106, %v3105
        %v3141 = vpack.c.b16 %v3108, %v3107
        %v3142 = vpack.c.b16 %v3110, %v3109
        %v3143 = vpack.c.b16 %v3112, %v3111
        %v3144 = vpack.c.b16 %v3114, %v3113
        %v3145 = vpack.c.b16 %v3116, %v3115
        %v3146 = vpack.c.b16 %v3118, %v3117
        %v3147 = vpack.c.b16 %v3120, %v3119
        %v3148 = vpack.c.b16 %v3122, %v3121
        %v3149 = vpack.c.b16 %v3124, %v3123
        %v3150 = vpack.c.b16 %v3126, %v3125
        %v3151 = vpack.c.b16 %v3128, %v3127
        %v3152 = vpack.c.b16 %v3130, %v3129
        %v3153 = vpack.c.b16 %v3132, %v3131
        %v3154 = vpack.c.b16 %v3134, %v3133
        %v3155 = vpack.c.b16 %v3136, %v3135
        %v3156 = vpack.c.b16 %v3138, %v3137
        %v3176 = vsel %vm896, %v2985, 0
        %v3179 = vsel %vm896, %v2988, 0
        %v3182 = vsel %vm896, %v2991, 0
        %v3185 = vsel %vm896, %v2994, 0
        %v3188 = vsel %vm896, %v2997, 0
        %v3191 = vsel %vm896, %v3000, 0
        %v3194 = vsel %vm896, %v3003, 0
        %v3197 = vsel %vm896, %v3006, 0
        %v3200 = vsel %vm896, %v3009, 0
        %v3203 = vsel %vm896, %v3012, 0
        %v3206 = vsel %vm896, %v3015, 0
        %v3209 = vsel %vm896, %v3018, 0
        %v3212 = vsel %vm896, %v3021, 0
        %v3215 = vsel %vm896, %v3024, 0
        %v3218 = vsel %vm896, %v3027, 0
        %v3221 = vsel %vm896, %v3030, 0
        %3223 = vmatprep.subr.bf16.mxu0 0
        %3224 = vmatpush1.bf16.msra.mxu0 %v3139
        %3225 = vmatprep.subr.bf16.mxu0 0
        %3226 = vmatpush1.bf16.msra.mxu0 %v3140
        %3227 = vmatprep.subr.bf16.mxu0 0
        %3228 = vmatpush1.bf16.msra.mxu0 %v3141
        %3229 = vmatprep.subr.bf16.mxu0 0
        %3230 = vmatpush1.bf16.msra.mxu0 %v3142
        %3231 = vmatprep.subr.bf16.mxu0 0
        %3232 = vmatpush1.bf16.msra.mxu0 %v3143
        %3233 = vmatprep.subr.bf16.mxu0 0
        %3234 = vmatpush1.bf16.msra.mxu0 %v3144
        %3235 = vmatprep.subr.bf16.mxu0 0
        %3236 = vmatpush1.bf16.msra.mxu0 %v3145
        %3237 = vmatprep.subr.bf16.mxu0 0
        %3238 = vmatpush1.bf16.msra.mxu0 %v3146
        %3239 = vmatprep.subr.bf16.mxu0 0
        %3240 = vmatpush1.bf16.msra.mxu0 %v3147
        %3241 = vmatprep.subr.bf16.mxu0 0
        %3242 = vmatpush1.bf16.msra.mxu0 %v3148
        %3243 = vmatprep.subr.bf16.mxu0 0
        %3244 = vmatpush1.bf16.msra.mxu0 %v3149
        %3245 = vmatprep.subr.bf16.mxu0 0
        %3246 = vmatpush1.bf16.msra.mxu0 %v3150
        %3247 = vmatprep.subr.bf16.mxu0 0
        %3248 = vmatpush1.bf16.msra.mxu0 %v3151
        %3249 = vmatprep.subr.bf16.mxu0 0
        %3250 = vmatpush1.bf16.msra.mxu0 %v3152
        %3251 = vmatprep.subr.bf16.mxu0 0
        %3252 = vmatpush1.bf16.msra.mxu0 %v3153
        %3253 = vmatprep.subr.bf16.mxu0 0
        %3254 = vmatpush1.bf16.msra.mxu0 %v3154
        %3255 = vmatprep.mubr.bf16.mxu0 %v2984
        %3256 = vmatmul.mubr.bf16.gmra.mrb[0].mxu0 %v2983
        %v3257 = vpop.f32.mrb[0].mxu0
        %v3258 = vadd.f32 0.0, %v3257
        %v3259 = vpop.f32.mrb[0].mxu0
        %v3260 = vpop.f32.mrb[0].mxu0
        %v3261 = vadd.f32 0.0, %v3260
        %v3262 = vpop.f32.mrb[0].mxu0
        %3263 = vmatprep.mubr.bf16.mxu0 %v2987
        %3264 = vmatmul.mubr.bf16.gmra.mrb[0].mxu0 %v2986
        %v3265 = vpop.f32.mrb[0].mxu0
        %v3266 = vadd.f32 0.0, %v3265
        %v3267 = vpop.f32.mrb[0].mxu0
        %v3268 = vpop.f32.mrb[0].mxu0
        %v3269 = vadd.f32 0.0, %v3268
        %v3270 = vpop.f32.mrb[0].mxu0
        %3271 = vmatprep.mubr.bf16.mxu0 %v2990
        %3272 = vmatmul.mubr.bf16.gmra.mrb[0].mxu0 %v2989
        %v3273 = vpop.f32.mrb[0].mxu0
        %v3274 = vadd.f32 0.0, %v3273
        %v3275 = vpop.f32.mrb[0].mxu0
        %v3276 = vpop.f32.mrb[0].mxu0
        %v3277 = vadd.f32 0.0, %v3276
        %v3278 = vpop.f32.mrb[0].mxu0
        %3279 = vmatprep.mubr.bf16.mxu0 %v2993
        %3280 = vmatmul.mubr.bf16.gmra.mrb[0].mxu0 %v2992
        %v3281 = vpop.f32.mrb[0].mxu0
        %v3282 = vadd.f32 0.0, %v3281
        %v3283 = vpop.f32.mrb[0].mxu0
        %v3284 = vpop.f32.mrb[0].mxu0
        %v3285 = vadd.f32 0.0, %v3284
        %v3286 = vpop.f32.mrb[0].mxu0
        %3287 = vmatprep.mubr.bf16.mxu0 %v2996
        %3288 = vmatmul.mubr.bf16.gmra.mrb[0].mxu0 %v2995
        %v3289 = vpop.f32.mrb[0].mxu0
        %v3290 = vadd.f32 0.0, %v3289
        %v3291 = vpop.f32.mrb[0].mxu0
        %v3292 = vpop.f32.mrb[0].mxu0
        %v3293 = vadd.f32 0.0, %v3292
        %v3294 = vpop.f32.mrb[0].mxu0
        %3295 = vmatprep.mubr.bf16.mxu0 %v2999
        %3296 = vmatmul.mubr.bf16.gmra.mrb[0].mxu0 %v2998
        %v3297 = vpop.f32.mrb[0].mxu0
        %v3298 = vadd.f32 0.0, %v3297
        %v3299 = vpop.f32.mrb[0].mxu0
        %v3300 = vpop.f32.mrb[0].mxu0
        %v3301 = vadd.f32 0.0, %v3300
        %v3302 = vpop.f32.mrb[0].mxu0
        %3303 = vmatprep.mubr.bf16.mxu0 %v3002
        %3304 = vmatmul.mubr.bf16.gmra.mrb[0].mxu0 %v3001
        %v3305 = vpop.f32.mrb[0].mxu0
        %v3306 = vadd.f32 0.0, %v3305
        %v3307 = vpop.f32.mrb[0].mxu0
        %v3308 = vpop.f32.mrb[0].mxu0
        %v3309 = vadd.f32 0.0, %v3308
        %v3310 = vpop.f32.mrb[0].mxu0
        %3311 = vmatprep.mubr.bf16.mxu0 %v3005
        %3312 = vmatmul.mubr.bf16.gmra.mrb[0].mxu0 %v3004
        %v3313 = vpop.f32.mrb[0].mxu0
        %v3314 = vadd.f32 0.0, %v3313
        %v3315 = vpop.f32.mrb[0].mxu0
        %v3316 = vpop.f32.mrb[0].mxu0
        %v3317 = vadd.f32 0.0, %v3316
        %v3318 = vpop.f32.mrb[0].mxu0
        %3319 = vmatprep.mubr.bf16.mxu0 %v3008
        %3320 = vmatmul.mubr.bf16.gmra.mrb[0].mxu0 %v3007
        %v3321 = vpop.f32.mrb[0].mxu0
        %v3322 = vadd.f32 0.0, %v3321
        %v3323 = vpop.f32.mrb[0].mxu0
        %v3324 = vpop.f32.mrb[0].mxu0
        %v3325 = vadd.f32 0.0, %v3324
        %v3326 = vpop.f32.mrb[0].mxu0
        %3327 = vmatprep.mubr.bf16.mxu0 %v3011
        %3328 = vmatmul.mubr.bf16.gmra.mrb[0].mxu0 %v3010
        %v3329 = vpop.f32.mrb[0].mxu0
        %v3330 = vadd.f32 0.0, %v3329
        %v3331 = vpop.f32.mrb[0].mxu0
        %v3332 = vpop.f32.mrb[0].mxu0
        %v3333 = vadd.f32 0.0, %v3332
        %v3334 = vpop.f32.mrb[0].mxu0
        %3335 = vmatprep.mubr.bf16.mxu0 %v3014
        %3336 = vmatmul.mubr.bf16.gmra.mrb[0].mxu0 %v3013
        %v3337 = vpop.f32.mrb[0].mxu0
        %v3338 = vadd.f32 0.0, %v3337
        %v3339 = vpop.f32.mrb[0].mxu0
        %v3340 = vpop.f32.mrb[0].mxu0
        %v3341 = vadd.f32 0.0, %v3340
        %v3342 = vpop.f32.mrb[0].mxu0
        %3343 = vmatprep.mubr.bf16.mxu0 %v3017
        %3344 = vmatmul.mubr.bf16.gmra.mrb[0].mxu0 %v3016
        %v3345 = vpop.f32.mrb[0].mxu0
        %v3346 = vadd.f32 0.0, %v3345
        %v3347 = vpop.f32.mrb[0].mxu0
        %v3348 = vpop.f32.mrb[0].mxu0
        %v3349 = vadd.f32 0.0, %v3348
        %v3350 = vpop.f32.mrb[0].mxu0
        %3351 = vmatprep.mubr.bf16.mxu0 %v3020
        %3352 = vmatmul.mubr.bf16.gmra.mrb[0].mxu0 %v3019
        %v3353 = vpop.f32.mrb[0].mxu0
        %v3354 = vadd.f32 0.0, %v3353
        %v3355 = vpop.f32.mrb[0].mxu0
        %v3356 = vpop.f32.mrb[0].mxu0
        %v3357 = vadd.f32 0.0, %v3356
        %v3358 = vpop.f32.mrb[0].mxu0
        %3359 = vmatprep.mubr.bf16.mxu0 %v3023
        %3360 = vmatmul.mubr.bf16.gmra.mrb[0].mxu0 %v3022
        %v3361 = vpop.f32.mrb[0].mxu0
        %v3362 = vadd.f32 0.0, %v3361
        %v3363 = vpop.f32.mrb[0].mxu0
        %v3364 = vpop.f32.mrb[0].mxu0
        %v3365 = vadd.f32 0.0, %v3364
        %v3366 = vpop.f32.mrb[0].mxu0
        %3367 = vmatprep.mubr.bf16.mxu0 %v3026
        %3368 = vmatmul.mubr.bf16.gmra.mrb[0].mxu0 %v3025
        %v3369 = vpop.f32.mrb[0].mxu0
        %v3370 = vadd.f32 0.0, %v3369
        %v3371 = vpop.f32.mrb[0].mxu0
        %v3372 = vpop.f32.mrb[0].mxu0
        %v3373 = vadd.f32 0.0, %v3372
        %v3374 = vpop.f32.mrb[0].mxu0
        %3375 = vmatprep.mubr.bf16.mxu0 %v3029
        %3376 = vmatmul.mubr.bf16.gmra.mrb[0].mxu0 %v3028
        %v3377 = vpop.f32.mrb[0].mxu0
        %v3378 = vadd.f32 0.0, %v3377
        %v3379 = vpop.f32.mrb[0].mxu0
        %v3380 = vpop.f32.mrb[0].mxu0
        %v3381 = vadd.f32 0.0, %v3380
        %v3382 = vpop.f32.mrb[0].mxu0
        %3383 = vdwg.mxu0
        %3384 = vmatprep.subr.bf16.mxu0 0
        %3385 = vmatpush1.bf16.msra.mxu0 %v3155
        %3386 = vmatprep.subr.bf16.mxu0 0
        %3387 = vmatpush1.bf16.msra.mxu0 %v3156
        %3388 = vmatprep.subr.bf16.mxu0 0
        %3389 = vmatpush1.bf16.msra.mxu0 0
        %3390 = vmatprep.subr.bf16.mxu0 0
        %3391 = vmatpush1.bf16.msra.mxu0 0
        %3392 = vmatprep.subr.bf16.mxu0 0
        %3393 = vmatpush1.bf16.msra.mxu0 0
        %3394 = vmatprep.subr.bf16.mxu0 0
        %3395 = vmatpush1.bf16.msra.mxu0 0
        %3396 = vmatprep.subr.bf16.mxu0 0
        %3397 = vmatpush1.bf16.msra.mxu0 0
        %3398 = vmatprep.subr.bf16.mxu0 0
        %3399 = vmatpush1.bf16.msra.mxu0 0
        %3400 = vmatprep.subr.bf16.mxu0 0
        %3401 = vmatpush1.bf16.msra.mxu0 0
        %3402 = vmatprep.subr.bf16.mxu0 0
        %3403 = vmatpush1.bf16.msra.mxu0 0
        %3404 = vmatprep.subr.bf16.mxu0 0
        %3405 = vmatpush1.bf16.msra.mxu0 0
        %3406 = vmatprep.subr.bf16.mxu0 0
        %3407 = vmatpush1.bf16.msra.mxu0 0
        %3408 = vmatprep.subr.bf16.mxu0 0
        %3409 = vmatpush1.bf16.msra.mxu0 0
        %3410 = vmatprep.subr.bf16.mxu0 0
        %3411 = vmatpush1.bf16.msra.mxu0 0
        %3412 = vmatprep.subr.bf16.mxu0 0
        %3413 = vmatpush1.bf16.msra.mxu0 0
        %3414 = vmatprep.subr.bf16.mxu0 0
        %3415 = vmatpush1.bf16.msra.mxu0 0
        %3416 = vmatprep.mubr.bf16.mxu0 0
        %3417 = vmatmul.mubr.bf16.gmra.mrb[0].mxu0 %v3176
        %v3418 = vpop.f32.mrb[0].mxu0
        %v3419 = vadd.f32 %v3258, %v3418
        %v3420 = vpop.f32.mrb[0].mxu0
        %v3421 = vpop.f32.mrb[0].mxu0
        %v3422 = vadd.f32 %v3261, %v3421
        %v3423 = vpop.f32.mrb[0].mxu0
        %3424 = vmatprep.mubr.bf16.mxu0 0
        %3425 = vmatmul.mubr.bf16.gmra.mrb[0].mxu0 %v3179
        %v3426 = vpop.f32.mrb[0].mxu0
        %v3427 = vadd.f32 %v3266, %v3426
        %v3428 = vpop.f32.mrb[0].mxu0
        %v3429 = vpop.f32.mrb[0].mxu0
        %v3430 = vadd.f32 %v3269, %v3429
        %v3431 = vpop.f32.mrb[0].mxu0
        %3432 = vmatprep.mubr.bf16.mxu0 0
        %3433 = vmatmul.mubr.bf16.gmra.mrb[0].mxu0 %v3182
        %v3434 = vpop.f32.mrb[0].mxu0
        %v3435 = vadd.f32 %v3274, %v3434
        %v3436 = vpop.f32.mrb[0].mxu0
        %v3437 = vpop.f32.mrb[0].mxu0
        %v3438 = vadd.f32 %v3277, %v3437
        %v3439 = vpop.f32.mrb[0].mxu0
        %3440 = vmatprep.mubr.bf16.mxu0 0
        %3441 = vmatmul.mubr.bf16.gmra.mrb[0].mxu0 %v3185
        %v3442 = vpop.f32.mrb[0].mxu0
        %v3443 = vadd.f32 %v3282, %v3442
        %v3444 = vpop.f32.mrb[0].mxu0
        %v3445 = vpop.f32.mrb[0].mxu0
        %v3446 = vadd.f32 %v3285, %v3445
        %v3447 = vpop.f32.mrb[0].mxu0
        %3448 = vmatprep.mubr.bf16.mxu0 0
        %3449 = vmatmul.mubr.bf16.gmra.mrb[0].mxu0 %v3188
        %v3450 = vpop.f32.mrb[0].mxu0
        %v3451 = vadd.f32 %v3290, %v3450
        %v3452 = vpop.f32.mrb[0].mxu0
        %v3453 = vpop.f32.mrb[0].mxu0
        %v3454 = vadd.f32 %v3293, %v3453
        %v3455 = vpop.f32.mrb[0].mxu0
        %3456 = vmatprep.mubr.bf16.mxu0 0
        %3457 = vmatmul.mubr.bf16.gmra.mrb[0].mxu0 %v3191
        %v3458 = vpop.f32.mrb[0].mxu0
        %v3459 = vadd.f32 %v3298, %v3458
        %v3460 = vpop.f32.mrb[0].mxu0
        %v3461 = vpop.f32.mrb[0].mxu0
        %v3462 = vadd.f32 %v3301, %v3461
        %v3463 = vpop.f32.mrb[0].mxu0
        %3464 = vmatprep.mubr.bf16.mxu0 0
        %3465 = vmatmul.mubr.bf16.gmra.mrb[0].mxu0 %v3194
        %v3466 = vpop.f32.mrb[0].mxu0
        %v3467 = vadd.f32 %v3306, %v3466
        %v3468 = vpop.f32.mrb[0].mxu0
        %v3469 = vpop.f32.mrb[0].mxu0
        %v3470 = vadd.f32 %v3309, %v3469
        %v3471 = vpop.f32.mrb[0].mxu0
        %3472 = vmatprep.mubr.bf16.mxu0 0
        %3473 = vmatmul.mubr.bf16.gmra.mrb[0].mxu0 %v3197
        %v3474 = vpop.f32.mrb[0].mxu0
        %v3475 = vadd.f32 %v3314, %v3474
        %v3476 = vpop.f32.mrb[0].mxu0
        %v3477 = vpop.f32.mrb[0].mxu0
        %v3478 = vadd.f32 %v3317, %v3477
        %v3479 = vpop.f32.mrb[0].mxu0
        %3480 = vmatprep.mubr.bf16.mxu0 0
        %3481 = vmatmul.mubr.bf16.gmra.mrb[0].mxu0 %v3200
        %v3482 = vpop.f32.mrb[0].mxu0
        %v3483 = vadd.f32 %v3322, %v3482
        %v3484 = vpop.f32.mrb[0].mxu0
        %v3485 = vpop.f32.mrb[0].mxu0
        %v3486 = vadd.f32 %v3325, %v3485
        %v3487 = vpop.f32.mrb[0].mxu0
        %3488 = vmatprep.mubr.bf16.mxu0 0
        %3489 = vmatmul.mubr.bf16.gmra.mrb[0].mxu0 %v3203
        %v3490 = vpop.f32.mrb[0].mxu0
        %v3491 = vadd.f32 %v3330, %v3490
        %v3492 = vpop.f32.mrb[0].mxu0
        %v3493 = vpop.f32.mrb[0].mxu0
        %v3494 = vadd.f32 %v3333, %v3493
        %v3495 = vpop.f32.mrb[0].mxu0
        %3496 = vmatprep.mubr.bf16.mxu0 0
        %3497 = vmatmul.mubr.bf16.gmra.mrb[0].mxu0 %v3206
        %v3498 = vpop.f32.mrb[0].mxu0
        %v3499 = vadd.f32 %v3338, %v3498
        %v3500 = vpop.f32.mrb[0].mxu0
        %v3501 = vpop.f32.mrb[0].mxu0
        %v3502 = vadd.f32 %v3341, %v3501
        %v3503 = vpop.f32.mrb[0].mxu0
        %3504 = vmatprep.mubr.bf16.mxu0 0
        %3505 = vmatmul.mubr.bf16.gmra.mrb[0].mxu0 %v3209
        %v3506 = vpop.f32.mrb[0].mxu0
        %v3507 = vadd.f32 %v3346, %v3506
        %v3508 = vpop.f32.mrb[0].mxu0
        %v3509 = vpop.f32.mrb[0].mxu0
        %v3510 = vadd.f32 %v3349, %v3509
        %v3511 = vpop.f32.mrb[0].mxu0
        %3512 = vmatprep.mubr.bf16.mxu0 0
        %3513 = vmatmul.mubr.bf16.gmra.mrb[0].mxu0 %v3212
        %v3514 = vpop.f32.mrb[0].mxu0
        %v3515 = vadd.f32 %v3354, %v3514
        %v3516 = vpop.f32.mrb[0].mxu0
        %v3517 = vpop.f32.mrb[0].mxu0
        %v3518 = vadd.f32 %v3357, %v3517
        %v3519 = vpop.f32.mrb[0].mxu0
        %3520 = vmatprep.mubr.bf16.mxu0 0
        %3521 = vmatmul.mubr.bf16.gmra.mrb[0].mxu0 %v3215
        %v3522 = vpop.f32.mrb[0].mxu0
        %v3523 = vadd.f32 %v3362, %v3522
        %v3524 = vpop.f32.mrb[0].mxu0
        %v3525 = vpop.f32.mrb[0].mxu0
        %v3526 = vadd.f32 %v3365, %v3525
        %v3527 = vpop.f32.mrb[0].mxu0
        %3528 = vmatprep.mubr.bf16.mxu0 0
        %3529 = vmatmul.mubr.bf16.gmra.mrb[0].mxu0 %v3218
        %v3530 = vpop.f32.mrb[0].mxu0
        %v3531 = vadd.f32 %v3370, %v3530
        %v3532 = vpop.f32.mrb[0].mxu0
        %v3533 = vpop.f32.mrb[0].mxu0
        %v3534 = vadd.f32 %v3373, %v3533
        %v3535 = vpop.f32.mrb[0].mxu0
        %3536 = vmatprep.mubr.bf16.mxu0 0
        %3537 = vmatmul.mubr.bf16.gmra.mrb[0].mxu0 %v3221
        %v3538 = vpop.f32.mrb[0].mxu0
        %v3539 = vadd.f32 %v3378, %v3538
        %v3540 = vpop.f32.mrb[0].mxu0
        %v3541 = vpop.f32.mrb[0].mxu0
        %v3542 = vadd.f32 %v3381, %v3541
        %v3543 = vpop.f32.mrb[0].mxu0
        %3544 = vdwg.mxu0
        %v3545 = vsel %vm896, %v3419, 0.0
        %v3546 = vsel %vm896, %v3422, 0.0
        %v3547 = vadd.f32 %v3545, %v3546
        %v3548 = vsel %vm896, %v3427, 0.0
        %v3549 = vadd.f32 %v3547, %v3548
        %v3550 = vsel %vm896, %v3430, 0.0
        %v3551 = vadd.f32 %v3549, %v3550
        %v3552 = vsel %vm896, %v3435, 0.0
        %v3553 = vadd.f32 %v3551, %v3552
        %v3554 = vsel %vm896, %v3438, 0.0
        %v3555 = vadd.f32 %v3553, %v3554
        %v3556 = vsel %vm896, %v3443, 0.0
        %v3557 = vadd.f32 %v3555, %v3556
        %v3558 = vsel %vm896, %v3446, 0.0
        %v3559 = vadd.f32 %v3557, %v3558
        %v3560 = vsel %vm896, %v3451, 0.0
        %v3561 = vadd.f32 %v3559, %v3560
        %v3562 = vsel %vm896, %v3454, 0.0
        %v3563 = vadd.f32 %v3561, %v3562
        %v3564 = vsel %vm896, %v3459, 0.0
        %v3565 = vadd.f32 %v3563, %v3564
        %v3566 = vsel %vm896, %v3462, 0.0
        %v3567 = vadd.f32 %v3565, %v3566
        %v3568 = vsel %vm896, %v3467, 0.0
        %v3569 = vadd.f32 %v3567, %v3568
        %v3570 = vsel %vm896, %v3470, 0.0
        %v3571 = vadd.f32 %v3569, %v3570
        %v3572 = vsel %vm896, %v3475, 0.0
        %v3573 = vadd.f32 %v3571, %v3572
        %v3574 = vsel %vm896, %v3478, 0.0
        %v3575 = vadd.f32 %v3573, %v3574
        %v3576 = vsel %vm896, %v3483, 0.0
        %v3577 = vadd.f32 %v3575, %v3576
        %v3578 = vsel %vm896, %v3486, 0.0
        %v3579 = vadd.f32 %v3577, %v3578
        %v3580 = vsel %vm896, %v3491, 0.0
        %v3581 = vadd.f32 %v3579, %v3580
        %v3582 = vsel %vm896, %v3494, 0.0
        %v3583 = vadd.f32 %v3581, %v3582
        %v3584 = vsel %vm896, %v3499, 0.0
        %v3585 = vadd.f32 %v3583, %v3584
        %v3586 = vsel %vm896, %v3502, 0.0
        %v3587 = vadd.f32 %v3585, %v3586
        %v3588 = vsel %vm896, %v3507, 0.0
        %v3589 = vadd.f32 %v3587, %v3588
        %v3590 = vsel %vm896, %v3510, 0.0
        %v3591 = vadd.f32 %v3589, %v3590
        %v3592 = vsel %vm896, %v3515, 0.0
        %v3593 = vadd.f32 %v3591, %v3592
        %v3594 = vsel %vm896, %v3518, 0.0
        %v3595 = vadd.f32 %v3593, %v3594
        %v3596 = vsel %vm896, %v3523, 0.0
        %v3597 = vadd.f32 %v3595, %v3596
        %v3598 = vsel %vm896, %v3526, 0.0
        %v3599 = vadd.f32 %v3597, %v3598
        %v3600 = vsel %vm896, %v3531, 0.0
        %v3601 = vadd.f32 %v3599, %v3600
        %v3602 = vsel %vm896, %v3534, 0.0
        %v3603 = vadd.f32 %v3601, %v3602
        %v3604 = vsel %vm896, %v3539, 0.0
        %v3605 = vadd.f32 %v3603, %v3604
        %v3606 = vsel %vm896, %v3542, 0.0
        %v3607 = vadd.f32 %v3605, %v3606
        %v3608 = vrot.slane %v3607, 4
        %v3609 = vadd.f32 %v3607, %v3608
        %v3610 = vrot.slane %v3609, 2
        %v3611 = vadd.f32 %v3609, %v3610
        %v3612 = vrot.slane %v3611, 1
        %v3613 = vadd.f32 %v3611, %v3612
        %v3614 = vmul.f32 %v3419, %v3419
        %v3615 = vmul.f32 %v3422, %v3422
        %v3616 = vmul.f32 %v3427, %v3427
        %v3617 = vmul.f32 %v3430, %v3430
        %v3618 = vmul.f32 %v3435, %v3435
        %v3619 = vmul.f32 %v3438, %v3438
        %v3620 = vmul.f32 %v3443, %v3443
        %v3621 = vmul.f32 %v3446, %v3446
        %v3622 = vmul.f32 %v3451, %v3451
        %v3623 = vmul.f32 %v3454, %v3454
        %v3624 = vmul.f32 %v3459, %v3459
        %v3625 = vmul.f32 %v3462, %v3462
        %v3626 = vmul.f32 %v3467, %v3467
        %v3627 = vmul.f32 %v3470, %v3470
        %v3628 = vmul.f32 %v3475, %v3475
        %v3629 = vmul.f32 %v3478, %v3478
        %v3630 = vmul.f32 %v3483, %v3483
        %v3631 = vmul.f32 %v3486, %v3486
        %v3632 = vmul.f32 %v3491, %v3491
        %v3633 = vmul.f32 %v3494, %v3494
        %v3634 = vmul.f32 %v3499, %v3499
        %v3635 = vmul.f32 %v3502, %v3502
        %v3636 = vmul.f32 %v3507, %v3507
        %v3637 = vmul.f32 %v3510, %v3510
        %v3638 = vmul.f32 %v3515, %v3515
        %v3639 = vmul.f32 %v3518, %v3518
        %v3640 = vmul.f32 %v3523, %v3523
        %v3641 = vmul.f32 %v3526, %v3526
        %v3642 = vmul.f32 %v3531, %v3531
        %v3643 = vmul.f32 %v3534, %v3534
        %v3644 = vmul.f32 %v3539, %v3539
        %v3645 = vmul.f32 %v3542, %v3542
        %v3646 = vsel %vm896, %v3614, 0.0
        %v3647 = vsel %vm896, %v3615, 0.0
        %v3648 = vadd.f32 %v3646, %v3647
        %v3649 = vsel %vm896, %v3616, 0.0
        %v3650 = vadd.f32 %v3648, %v3649
        %v3651 = vsel %vm896, %v3617, 0.0
        %v3652 = vadd.f32 %v3650, %v3651
        %v3653 = vsel %vm896, %v3618, 0.0
        %v3654 = vadd.f32 %v3652, %v3653
        %v3655 = vsel %vm896, %v3619, 0.0
        %v3656 = vadd.f32 %v3654, %v3655
        %v3657 = vsel %vm896, %v3620, 0.0
        %v3658 = vadd.f32 %v3656, %v3657
        %v3659 = vsel %vm896, %v3621, 0.0
        %v3660 = vadd.f32 %v3658, %v3659
        %v3661 = vsel %vm896, %v3622, 0.0
        %v3662 = vadd.f32 %v3660, %v3661
        %v3663 = vsel %vm896, %v3623, 0.0
        %v3664 = vadd.f32 %v3662, %v3663
        %v3665 = vsel %vm896, %v3624, 0.0
        %v3666 = vadd.f32 %v3664, %v3665
        %v3667 = vsel %vm896, %v3625, 0.0
        %v3668 = vadd.f32 %v3666, %v3667
        %v3669 = vsel %vm896, %v3626, 0.0
        %v3670 = vadd.f32 %v3668, %v3669
        %v3671 = vsel %vm896, %v3627, 0.0
        %v3672 = vadd.f32 %v3670, %v3671
        %v3673 = vsel %vm896, %v3628, 0.0
        %v3674 = vadd.f32 %v3672, %v3673
        %v3675 = vsel %vm896, %v3629, 0.0
        %v3676 = vadd.f32 %v3674, %v3675
        %v3677 = vsel %vm896, %v3630, 0.0
        %v3678 = vadd.f32 %v3676, %v3677
        %v3679 = vsel %vm896, %v3631, 0.0
        %v3680 = vadd.f32 %v3678, %v3679
        %v3681 = vsel %vm896, %v3632, 0.0
        %v3682 = vadd.f32 %v3680, %v3681
        %v3683 = vsel %vm896, %v3633, 0.0
        %v3684 = vadd.f32 %v3682, %v3683
        %v3685 = vsel %vm896, %v3634, 0.0
        %v3686 = vadd.f32 %v3684, %v3685
        %v3687 = vsel %vm896, %v3635, 0.0
        %v3688 = vadd.f32 %v3686, %v3687
        %v3689 = vsel %vm896, %v3636, 0.0
        %v3690 = vadd.f32 %v3688, %v3689
        %v3691 = vsel %vm896, %v3637, 0.0
        %v3692 = vadd.f32 %v3690, %v3691
        %v3693 = vsel %vm896, %v3638, 0.0
        %v3694 = vadd.f32 %v3692, %v3693
        %v3695 = vsel %vm896, %v3639, 0.0
        %v3696 = vadd.f32 %v3694, %v3695
        %v3697 = vsel %vm896, %v3640, 0.0
        %v3698 = vadd.f32 %v3696, %v3697
        %v3699 = vsel %vm896, %v3641, 0.0
        %v3700 = vadd.f32 %v3698, %v3699
        %v3701 = vsel %vm896, %v3642, 0.0
        %v3702 = vadd.f32 %v3700, %v3701
        %v3703 = vsel %vm896, %v3643, 0.0
        %v3704 = vadd.f32 %v3702, %v3703
        %v3705 = vsel %vm896, %v3644, 0.0
        %v3706 = vadd.f32 %v3704, %v3705
        %v3707 = vsel %vm896, %v3645, 0.0
        %v3708 = vadd.f32 %v3706, %v3707
        %v3709 = vrot.slane %v3708, 4
        %v3710 = vadd.f32 %v3708, %v3709
        %v3711 = vrot.slane %v3710, 2
        %v3712 = vadd.f32 %v3710, %v3711
        %v3713 = vrot.slane %v3712, 1
        %v3714 = vadd.f32 %v3712, %v3713
        %v3715 = vmul.f32 %v3613, %v814
        %v3716 = vmul.f32 %v3714, %v814
        %v3717 = vmul.f32 %v3715, %v3715
        %v3718 = vsub.f32 %v3716, %v3717
        %v3719 = vadd.f32 %v3718, 1e-06
        %v3720 = vrsqrt.pop %v3719
        %v3721 = vmul.f32 %v3720, %v300
        %v3722 = vmul.f32 %v3715, %v3721
        %v3723 = vsub.f32 %v301, %v3722
        %v3724 = vlaneseq
        %v3725 = vshrl.u32 %v3724, 7
        %v3726 = vsub.s32 0, %v3725
        %v3727 = vrot.slane %v3721, %v3726
        %v3728 = vmul.f32 %v3419, %v3727
        %v3729 = vmul.f32 %v3422, %v3727
        %v3730 = vmul.f32 %v3427, %v3727
        %v3731 = vmul.f32 %v3430, %v3727
        %v3732 = vmul.f32 %v3435, %v3727
        %v3733 = vmul.f32 %v3438, %v3727
        %v3734 = vmul.f32 %v3443, %v3727
        %v3735 = vmul.f32 %v3446, %v3727
        %v3736 = vmul.f32 %v3451, %v3727
        %v3737 = vmul.f32 %v3454, %v3727
        %v3738 = vmul.f32 %v3459, %v3727
        %v3739 = vmul.f32 %v3462, %v3727
        %v3740 = vmul.f32 %v3467, %v3727
        %v3741 = vmul.f32 %v3470, %v3727
        %v3742 = vmul.f32 %v3475, %v3727
        %v3743 = vmul.f32 %v3478, %v3727
        %v3744 = vmul.f32 %v3483, %v3727
        %v3745 = vmul.f32 %v3486, %v3727
        %v3746 = vmul.f32 %v3491, %v3727
        %v3747 = vmul.f32 %v3494, %v3727
        %v3748 = vmul.f32 %v3499, %v3727
        %v3749 = vmul.f32 %v3502, %v3727
        %v3750 = vmul.f32 %v3507, %v3727
        %v3751 = vmul.f32 %v3510, %v3727
        %v3752 = vmul.f32 %v3515, %v3727
        %v3753 = vmul.f32 %v3518, %v3727
        %v3754 = vmul.f32 %v3523, %v3727
        %v3755 = vmul.f32 %v3526, %v3727
        %v3756 = vmul.f32 %v3531, %v3727
        %v3757 = vmul.f32 %v3534, %v3727
        %v3758 = vmul.f32 %v3539, %v3727
        %v3759 = vmul.f32 %v3542, %v3727
        %v3760 = vlaneseq
        %v3761 = vshrl.u32 %v3760, 7
        %v3762 = vsub.s32 0, %v3761
        %v3763 = vrot.slane %v3723, %v3762
        %v3764 = vadd.f32 %v3728, %v3763
        %v3765 = vadd.f32 %v3729, %v3763
        %v3766 = vadd.f32 %v3730, %v3763
        %v3767 = vadd.f32 %v3731, %v3763
        %v3768 = vadd.f32 %v3732, %v3763
        %v3769 = vadd.f32 %v3733, %v3763
        %v3770 = vadd.f32 %v3734, %v3763
        %v3771 = vadd.f32 %v3735, %v3763
        %v3772 = vadd.f32 %v3736, %v3763
        %v3773 = vadd.f32 %v3737, %v3763
        %v3774 = vadd.f32 %v3738, %v3763
        %v3775 = vadd.f32 %v3739, %v3763
        %v3776 = vadd.f32 %v3740, %v3763
        %v3777 = vadd.f32 %v3741, %v3763
        %v3778 = vadd.f32 %v3742, %v3763
        %v3779 = vadd.f32 %v3743, %v3763
        %v3780 = vadd.f32 %v3744, %v3763
        %v3781 = vadd.f32 %v3745, %v3763
        %v3782 = vadd.f32 %v3746, %v3763
        %v3783 = vadd.f32 %v3747, %v3763
        %v3784 = vadd.f32 %v3748, %v3763
        %v3785 = vadd.f32 %v3749, %v3763
        %v3786 = vadd.f32 %v3750, %v3763
        %v3787 = vadd.f32 %v3751, %v3763
        %v3788 = vadd.f32 %v3752, %v3763
        %v3789 = vadd.f32 %v3753, %v3763
        %v3790 = vadd.f32 %v3754, %v3763
        %v3791 = vadd.f32 %v3755, %v3763
        %v3792 = vadd.f32 %v3756, %v3763
        %v3793 = vadd.f32 %v3757, %v3763
        %v3794 = vadd.f32 %v3758, %v3763
        %v3795 = vadd.f32 %v3759, %v3763
        %v3796 = vmax.f32 %v3764, 0.0
        %v3797 = vmax.f32 %v3765, 0.0
        %v3798 = vmax.f32 %v3766, 0.0
        %v3799 = vmax.f32 %v3767, 0.0
        %v3800 = vmax.f32 %v3768, 0.0
        %v3801 = vmax.f32 %v3769, 0.0
        %v3802 = vmax.f32 %v3770, 0.0
        %v3803 = vmax.f32 %v3771, 0.0
        %v3804 = vmax.f32 %v3772, 0.0
        %v3805 = vmax.f32 %v3773, 0.0
        %v3806 = vmax.f32 %v3774, 0.0
        %v3807 = vmax.f32 %v3775, 0.0
        %v3808 = vmax.f32 %v3776, 0.0
        %v3809 = vmax.f32 %v3777, 0.0
        %v3810 = vmax.f32 %v3778, 0.0
        %v3811 = vmax.f32 %v3779, 0.0
        %v3812 = vmax.f32 %v3780, 0.0
        %v3813 = vmax.f32 %v3781, 0.0
        %v3814 = vmax.f32 %v3782, 0.0
        %v3815 = vmax.f32 %v3783, 0.0
        %v3816 = vmax.f32 %v3784, 0.0
        %v3817 = vmax.f32 %v3785, 0.0
        %v3818 = vmax.f32 %v3786, 0.0
        %v3819 = vmax.f32 %v3787, 0.0
        %v3820 = vmax.f32 %v3788, 0.0
        %v3821 = vmax.f32 %v3789, 0.0
        %v3822 = vmax.f32 %v3790, 0.0
        %v3823 = vmax.f32 %v3791, 0.0
        %v3824 = vmax.f32 %v3792, 0.0
        %v3825 = vmax.f32 %v3793, 0.0
        %v3826 = vmax.f32 %v3794, 0.0
        %v3827 = vmax.f32 %v3795, 0.0
        %v3828 = vpack.c.bf16 %v3797, %v3796
        %v3829 = vpack.c.bf16 %v3799, %v3798
        %v3830 = vpack.c.bf16 %v3801, %v3800
        %v3831 = vpack.c.bf16 %v3803, %v3802
        %v3832 = vpack.c.bf16 %v3805, %v3804
        %v3833 = vpack.c.bf16 %v3807, %v3806
        %v3834 = vpack.c.bf16 %v3809, %v3808
        %v3835 = vpack.c.bf16 %v3811, %v3810
        %v3836 = vpack.c.bf16 %v3813, %v3812
        %v3837 = vpack.c.bf16 %v3815, %v3814
        %v3838 = vpack.c.bf16 %v3817, %v3816
        %v3839 = vpack.c.bf16 %v3819, %v3818
        %v3840 = vpack.c.bf16 %v3821, %v3820
        %v3841 = vpack.c.bf16 %v3823, %v3822
        %v3842 = vpack.c.bf16 %v3825, %v3824
        %v3843 = vpack.c.bf16 %v3827, %v3826
        %v3844 = vld [vmem:[%s3] sm:$0xf]
        %v3845 = vld [vmem:[%s3 + $0x4] sm:$0xf]
        %v3846 = vld [vmem:[%s3 + $0x8] sm:$0xf]
        %v3847 = vld [vmem:[%s3 + $0xc] sm:$0xf]
        %v3852 = vunpack.c.l.b16 %v3844
        %v3853 = vunpack.c.l.b16 %v3845
        %v3854 = vunpack.c.l.b16 %v3846
        %v3855 = vunpack.c.l.b16 %v3847
        %v3856 = vpack.c.b16 %v3853, %v3852
        %v3857 = vpack.c.b16 %v3855, %v3854
        %v3861 = vsel %vm896, %v3828, 0
        %v3864 = vsel %vm896, %v3829, 0
        %v3867 = vsel %vm896, %v3830, 0
        %v3870 = vsel %vm896, %v3831, 0
        %v3873 = vsel %vm896, %v3832, 0
        %v3876 = vsel %vm896, %v3833, 0
        %v3879 = vsel %vm896, %v3834, 0
        %v3882 = vsel %vm896, %v3835, 0
        %v3885 = vsel %vm896, %v3836, 0
        %v3888 = vsel %vm896, %v3837, 0
        %v3891 = vsel %vm896, %v3838, 0
        %v3894 = vsel %vm896, %v3839, 0
        %v3897 = vsel %vm896, %v3840, 0
        %v3900 = vsel %vm896, %v3841, 0
        %v3903 = vsel %vm896, %v3842, 0
        %v3906 = vsel %vm896, %v3843, 0
        %3908 = vmatprep.subr.bf16.mxu0 0
        %3909 = vmatpush1.bf16.msra.mxu0 %v3856
        %3910 = vmatprep.subr.bf16.mxu0 0
        %3911 = vmatpush1.bf16.msra.mxu0 %v3857
        %3912 = vmatprep.subr.bf16.mxu0 0
        %3913 = vmatpush1.bf16.msra.mxu0 0
        %3914 = vmatprep.subr.bf16.mxu0 0
        %3915 = vmatpush1.bf16.msra.mxu0 0
        %3916 = vmatprep.subr.bf16.mxu0 0
        %3917 = vmatpush1.bf16.msra.mxu0 0
        %3918 = vmatprep.subr.bf16.mxu0 0
        %3919 = vmatpush1.bf16.msra.mxu0 0
        %3920 = vmatprep.subr.bf16.mxu0 0
        %3921 = vmatpush1.bf16.msra.mxu0 0
        %3922 = vmatprep.subr.bf16.mxu0 0
        %3923 = vmatpush1.bf16.msra.mxu0 0
        %3924 = vmatprep.subr.bf16.mxu0 0
        %3925 = vmatpush1.bf16.msra.mxu0 0
        %3926 = vmatprep.subr.bf16.mxu0 0
        %3927 = vmatpush1.bf16.msra.mxu0 0
        %3928 = vmatprep.subr.bf16.mxu0 0
        %3929 = vmatpush1.bf16.msra.mxu0 0
        %3930 = vmatprep.subr.bf16.mxu0 0
        %3931 = vmatpush1.bf16.msra.mxu0 0
        %3932 = vmatprep.subr.bf16.mxu0 0
        %3933 = vmatpush1.bf16.msra.mxu0 0
        %3934 = vmatprep.subr.bf16.mxu0 0
        %3935 = vmatpush1.bf16.msra.mxu0 0
        %3936 = vmatprep.subr.bf16.mxu0 0
        %3937 = vmatpush1.bf16.msra.mxu0 0
        %3938 = vmatprep.subr.bf16.mxu0 0
        %3939 = vmatpush1.bf16.msra.mxu0 0
        %3940 = vmatprep.mubr.bf16.mxu0 0
        %3941 = vmatmul.mubr.bf16.gmra.mrb[0].mxu0 %v3861
        %v3942 = vpop.f32.mrb[0].mxu0
        %v3943 = vadd.f32 0.0, %v3942
        %v3944 = vpop.f32.mrb[0].mxu0
        %v3945 = vpop.f32.mrb[0].mxu0
        %v3946 = vadd.f32 0.0, %v3945
        %v3947 = vpop.f32.mrb[0].mxu0
        %3948 = vmatprep.mubr.bf16.mxu0 0
        %3949 = vmatmul.mubr.bf16.gmra.mrb[0].mxu0 %v3864
        %v3950 = vpop.f32.mrb[0].mxu0
        %v3951 = vadd.f32 0.0, %v3950
        %v3952 = vpop.f32.mrb[0].mxu0
        %v3953 = vpop.f32.mrb[0].mxu0
        %v3954 = vadd.f32 0.0, %v3953
        %v3955 = vpop.f32.mrb[0].mxu0
        %3956 = vmatprep.mubr.bf16.mxu0 0
        %3957 = vmatmul.mubr.bf16.gmra.mrb[0].mxu0 %v3867
        %v3958 = vpop.f32.mrb[0].mxu0
        %v3959 = vadd.f32 0.0, %v3958
        %v3960 = vpop.f32.mrb[0].mxu0
        %v3961 = vpop.f32.mrb[0].mxu0
        %v3962 = vadd.f32 0.0, %v3961
        %v3963 = vpop.f32.mrb[0].mxu0
        %3964 = vmatprep.mubr.bf16.mxu0 0
        %3965 = vmatmul.mubr.bf16.gmra.mrb[0].mxu0 %v3870
        %v3966 = vpop.f32.mrb[0].mxu0
        %v3967 = vadd.f32 0.0, %v3966
        %v3968 = vpop.f32.mrb[0].mxu0
        %v3969 = vpop.f32.mrb[0].mxu0
        %v3970 = vadd.f32 0.0, %v3969
        %v3971 = vpop.f32.mrb[0].mxu0
        %3972 = vmatprep.mubr.bf16.mxu0 0
        %3973 = vmatmul.mubr.bf16.gmra.mrb[0].mxu0 %v3873
        %v3974 = vpop.f32.mrb[0].mxu0
        %v3975 = vadd.f32 0.0, %v3974
        %v3976 = vpop.f32.mrb[0].mxu0
        %v3977 = vpop.f32.mrb[0].mxu0
        %v3978 = vadd.f32 0.0, %v3977
        %v3979 = vpop.f32.mrb[0].mxu0
        %3980 = vmatprep.mubr.bf16.mxu0 0
        %3981 = vmatmul.mubr.bf16.gmra.mrb[0].mxu0 %v3876
        %v3982 = vpop.f32.mrb[0].mxu0
        %v3983 = vadd.f32 0.0, %v3982
        %v3984 = vpop.f32.mrb[0].mxu0
        %v3985 = vpop.f32.mrb[0].mxu0
        %v3986 = vadd.f32 0.0, %v3985
        %v3987 = vpop.f32.mrb[0].mxu0
        %3988 = vmatprep.mubr.bf16.mxu0 0
        %3989 = vmatmul.mubr.bf16.gmra.mrb[0].mxu0 %v3879
        %v3990 = vpop.f32.mrb[0].mxu0
        %v3991 = vadd.f32 0.0, %v3990
        %v3992 = vpop.f32.mrb[0].mxu0
        %v3993 = vpop.f32.mrb[0].mxu0
        %v3994 = vadd.f32 0.0, %v3993
        %v3995 = vpop.f32.mrb[0].mxu0
        %3996 = vmatprep.mubr.bf16.mxu0 0
        %3997 = vmatmul.mubr.bf16.gmra.mrb[0].mxu0 %v3882
        %v3998 = vpop.f32.mrb[0].mxu0
        %v3999 = vadd.f32 0.0, %v3998
        %v4000 = vpop.f32.mrb[0].mxu0
        %v4001 = vpop.f32.mrb[0].mxu0
        %v4002 = vadd.f32 0.0, %v4001
        %v4003 = vpop.f32.mrb[0].mxu0
        %4004 = vmatprep.mubr.bf16.mxu0 0
        %4005 = vmatmul.mubr.bf16.gmra.mrb[0].mxu0 %v3885
        %v4006 = vpop.f32.mrb[0].mxu0
        %v4007 = vadd.f32 0.0, %v4006
        %v4008 = vpop.f32.mrb[0].mxu0
        %v4009 = vpop.f32.mrb[0].mxu0
        %v4010 = vadd.f32 0.0, %v4009
        %v4011 = vpop.f32.mrb[0].mxu0
        %4012 = vmatprep.mubr.bf16.mxu0 0
        %4013 = vmatmul.mubr.bf16.gmra.mrb[0].mxu0 %v3888
        %v4014 = vpop.f32.mrb[0].mxu0
        %v4015 = vadd.f32 0.0, %v4014
        %v4016 = vpop.f32.mrb[0].mxu0
        %v4017 = vpop.f32.mrb[0].mxu0
        %v4018 = vadd.f32 0.0, %v4017
        %v4019 = vpop.f32.mrb[0].mxu0
        %4020 = vmatprep.mubr.bf16.mxu0 0
        %4021 = vmatmul.mubr.bf16.gmra.mrb[0].mxu0 %v3891
        %v4022 = vpop.f32.mrb[0].mxu0
        %v4023 = vadd.f32 0.0, %v4022
        %v4024 = vpop.f32.mrb[0].mxu0
        %v4025 = vpop.f32.mrb[0].mxu0
        %v4026 = vadd.f32 0.0, %v4025
        %v4027 = vpop.f32.mrb[0].mxu0
        %4028 = vmatprep.mubr.bf16.mxu0 0
        %4029 = vmatmul.mubr.bf16.gmra.mrb[0].mxu0 %v3894
        %v4030 = vpop.f32.mrb[0].mxu0
        %v4031 = vadd.f32 0.0, %v4030
        %v4032 = vpop.f32.mrb[0].mxu0
        %v4033 = vpop.f32.mrb[0].mxu0
        %v4034 = vadd.f32 0.0, %v4033
        %v4035 = vpop.f32.mrb[0].mxu0
        %4036 = vmatprep.mubr.bf16.mxu0 0
        %4037 = vmatmul.mubr.bf16.gmra.mrb[0].mxu0 %v3897
        %v4038 = vpop.f32.mrb[0].mxu0
        %v4039 = vadd.f32 0.0, %v4038
        %v4040 = vpop.f32.mrb[0].mxu0
        %v4041 = vpop.f32.mrb[0].mxu0
        %v4042 = vadd.f32 0.0, %v4041
        %v4043 = vpop.f32.mrb[0].mxu0
        %4044 = vmatprep.mubr.bf16.mxu0 0
        %4045 = vmatmul.mubr.bf16.gmra.mrb[0].mxu0 %v3900
        %v4046 = vpop.f32.mrb[0].mxu0
        %v4047 = vadd.f32 0.0, %v4046
        %v4048 = vpop.f32.mrb[0].mxu0
        %v4049 = vpop.f32.mrb[0].mxu0
        %v4050 = vadd.f32 0.0, %v4049
        %v4051 = vpop.f32.mrb[0].mxu0
        %4052 = vmatprep.mubr.bf16.mxu0 0
        %4053 = vmatmul.mubr.bf16.gmra.mrb[0].mxu0 %v3903
        %v4054 = vpop.f32.mrb[0].mxu0
        %v4055 = vadd.f32 0.0, %v4054
        %v4056 = vpop.f32.mrb[0].mxu0
        %v4057 = vpop.f32.mrb[0].mxu0
        %v4058 = vadd.f32 0.0, %v4057
        %v4059 = vpop.f32.mrb[0].mxu0
        %4060 = vmatprep.mubr.bf16.mxu0 0
        %4061 = vmatmul.mubr.bf16.gmra.mrb[0].mxu0 %v3906
        %v4062 = vpop.f32.mrb[0].mxu0
        %v4063 = vadd.f32 0.0, %v4062
        %v4064 = vpop.f32.mrb[0].mxu0
        %v4065 = vpop.f32.mrb[0].mxu0
        %v4066 = vadd.f32 0.0, %v4065
        %v4067 = vpop.f32.mrb[0].mxu0
        %4068 = vdwg.mxu0
        %v4069 = vadd.f32 %v3943, %v3946
        %v4070 = vadd.f32 %v4069, %v3951
        %v4071 = vadd.f32 %v4070, %v3954
        %v4072 = vadd.f32 %v4071, %v3959
        %v4073 = vadd.f32 %v4072, %v3962
        %v4074 = vadd.f32 %v4073, %v3967
        %v4075 = vadd.f32 %v4074, %v3970
        %v4076 = vadd.f32 %v4075, %v3975
        %v4077 = vadd.f32 %v4076, %v3978
        %v4078 = vadd.f32 %v4077, %v3983
        %v4079 = vadd.f32 %v4078, %v3986
        %v4080 = vadd.f32 %v4079, %v3991
        %v4081 = vadd.f32 %v4080, %v3994
        %v4082 = vadd.f32 %v4081, %v3999
        %v4083 = vadd.f32 %v4082, %v4002
        %v4084 = vadd.f32 %v4083, %v4007
        %v4085 = vadd.f32 %v4084, %v4010
        %v4086 = vadd.f32 %v4085, %v4015
        %v4087 = vadd.f32 %v4086, %v4018
        %v4088 = vadd.f32 %v4087, %v4023
        %v4089 = vadd.f32 %v4088, %v4026
        %v4090 = vadd.f32 %v4089, %v4031
        %v4091 = vadd.f32 %v4090, %v4034
        %v4092 = vadd.f32 %v4091, %v4039
        %v4093 = vadd.f32 %v4092, %v4042
        %v4094 = vadd.f32 %v4093, %v4047
        %v4095 = vadd.f32 %v4094, %v4050
        %v4096 = vadd.f32 %v4095, %v4055
        %v4097 = vadd.f32 %v4096, %v4058
        %v4098 = vadd.f32 %v4097, %v4063
        %v4099 = vadd.f32 %v4098, %v4066
        %v4100 = vrot.slane %v4099, 4
        %v4101 = vadd.f32 %v4099, %v4100
        %v4102 = vrot.slane %v4101, 2
        %v4103 = vadd.f32 %v4101, %v4102
        %v4104 = vrot.slane %v4103, 1
        %v4105 = vadd.f32 %v4103, %v4104
        %v4106 = vmul.f32 %v3943, %v3943
        %v4107 = vmul.f32 %v3946, %v3946
        %v4108 = vmul.f32 %v3951, %v3951
        %v4109 = vmul.f32 %v3954, %v3954
        %v4110 = vmul.f32 %v3959, %v3959
        %v4111 = vmul.f32 %v3962, %v3962
        %v4112 = vmul.f32 %v3967, %v3967
        %v4113 = vmul.f32 %v3970, %v3970
        %v4114 = vmul.f32 %v3975, %v3975
        %v4115 = vmul.f32 %v3978, %v3978
        %v4116 = vmul.f32 %v3983, %v3983
        %v4117 = vmul.f32 %v3986, %v3986
        %v4118 = vmul.f32 %v3991, %v3991
        %v4119 = vmul.f32 %v3994, %v3994
        %v4120 = vmul.f32 %v3999, %v3999
        %v4121 = vmul.f32 %v4002, %v4002
        %v4122 = vmul.f32 %v4007, %v4007
        %v4123 = vmul.f32 %v4010, %v4010
        %v4124 = vmul.f32 %v4015, %v4015
        %v4125 = vmul.f32 %v4018, %v4018
        %v4126 = vmul.f32 %v4023, %v4023
        %v4127 = vmul.f32 %v4026, %v4026
        %v4128 = vmul.f32 %v4031, %v4031
        %v4129 = vmul.f32 %v4034, %v4034
        %v4130 = vmul.f32 %v4039, %v4039
        %v4131 = vmul.f32 %v4042, %v4042
        %v4132 = vmul.f32 %v4047, %v4047
        %v4133 = vmul.f32 %v4050, %v4050
        %v4134 = vmul.f32 %v4055, %v4055
        %v4135 = vmul.f32 %v4058, %v4058
        %v4136 = vmul.f32 %v4063, %v4063
        %v4137 = vmul.f32 %v4066, %v4066
        %v4138 = vadd.f32 %v4106, %v4107
        %v4139 = vadd.f32 %v4138, %v4108
        %v4140 = vadd.f32 %v4139, %v4109
        %v4141 = vadd.f32 %v4140, %v4110
        %v4142 = vadd.f32 %v4141, %v4111
        %v4143 = vadd.f32 %v4142, %v4112
        %v4144 = vadd.f32 %v4143, %v4113
        %v4145 = vadd.f32 %v4144, %v4114
        %v4146 = vadd.f32 %v4145, %v4115
        %v4147 = vadd.f32 %v4146, %v4116
        %v4148 = vadd.f32 %v4147, %v4117
        %v4149 = vadd.f32 %v4148, %v4118
        %v4150 = vadd.f32 %v4149, %v4119
        %v4151 = vadd.f32 %v4150, %v4120
        %v4152 = vadd.f32 %v4151, %v4121
        %v4153 = vadd.f32 %v4152, %v4122
        %v4154 = vadd.f32 %v4153, %v4123
        %v4155 = vadd.f32 %v4154, %v4124
        %v4156 = vadd.f32 %v4155, %v4125
        %v4157 = vadd.f32 %v4156, %v4126
        %v4158 = vadd.f32 %v4157, %v4127
        %v4159 = vadd.f32 %v4158, %v4128
        %v4160 = vadd.f32 %v4159, %v4129
        %v4161 = vadd.f32 %v4160, %v4130
        %v4162 = vadd.f32 %v4161, %v4131
        %v4163 = vadd.f32 %v4162, %v4132
        %v4164 = vadd.f32 %v4163, %v4133
        %v4165 = vadd.f32 %v4164, %v4134
        %v4166 = vadd.f32 %v4165, %v4135
        %v4167 = vadd.f32 %v4166, %v4136
        %v4168 = vadd.f32 %v4167, %v4137
        %v4169 = vrot.slane %v4168, 4
        %v4170 = vadd.f32 %v4168, %v4169
        %v4171 = vrot.slane %v4170, 2
        %v4172 = vadd.f32 %v4170, %v4171
        %v4173 = vrot.slane %v4172, 1
        %v4174 = vadd.f32 %v4172, %v4173
        %4175 = vmatprep.subr.mxu0 0.0
        %4176 = vmatpush1.msra.mxu0 %v278
        %4177 = vmatprep.subr.mxu0 0.0
        %4178 = vmatpush1.msra.mxu0 %v279
        %4179 = vmatprep.subr.mxu0 0.0
        %4180 = vmatpush1.msra.mxu0 %v280
        %4181 = vmatprep.subr.mxu0 0.0
        %4182 = vmatpush1.msra.mxu0 %v281
        %4183 = vmatprep.subr.mxu0 0.0
        %4184 = vmatpush1.msra.mxu0 %v282
        %4185 = vmatprep.subr.mxu0 0.0
        %4186 = vmatpush1.msra.mxu0 %v283
        %4187 = vmatprep.subr.mxu0 0.0
        %4188 = vmatpush1.msra.mxu0 %v284
        %4189 = vmatprep.subr.mxu0 0.0
        %4190 = vmatpush1.msra.mxu0 %v285
        %4191 = vmatprep.subr.mxu0 0.0
        %4192 = vmatpush1.msra.mxu0 %v286
        %4193 = vmatprep.subr.mxu0 0.0
        %4194 = vmatpush1.msra.mxu0 %v287
        %4195 = vmatprep.subr.mxu0 0.0
        %4196 = vmatpush1.msra.mxu0 %v288
        %4197 = vmatprep.subr.mxu0 0.0
        %4198 = vmatpush1.msra.mxu0 %v289
        %4199 = vmatprep.subr.mxu0 0.0
        %4200 = vmatpush1.msra.mxu0 %v290
        %4201 = vmatprep.subr.mxu0 0.0
        %4202 = vmatpush1.msra.mxu0 %v291
        %4203 = vmatprep.subr.mxu0 0.0
        %4204 = vmatpush1.msra.mxu0 %v292
        %4205 = vmatprep.subr.mxu0 0.0
        %4206 = vmatpush1.msra.mxu0 %v293
        %4207 = vmatprep.subr.mxu0 0.0
        %4208 = vmatpush1.msra.mxu0 0.0
        %4209 = vmatprep.subr.mxu0 0.0
        %4210 = vmatpush1.msra.mxu0 0.0
        %4211 = vmatprep.subr.mxu0 0.0
        %4212 = vmatpush1.msra.mxu0 0.0
        %4213 = vmatprep.subr.mxu0 0.0
        %4214 = vmatpush1.msra.mxu0 0.0
        %4215 = vmatprep.subr.mxu0 0.0
        %4216 = vmatpush1.msra.mxu0 0.0
        %4217 = vmatprep.subr.mxu0 0.0
        %4218 = vmatpush1.msra.mxu0 0.0
        %4219 = vmatprep.subr.mxu0 0.0
        %4220 = vmatpush1.msra.mxu0 0.0
        %4221 = vmatprep.subr.mxu0 0.0
        %4222 = vmatpush1.msra.mxu0 0.0
        %4223 = vmatprep.subr.mxu0 0.0
        %4224 = vmatpush1.msra.mxu0 0.0
        %4225 = vmatprep.subr.mxu0 0.0
        %4226 = vmatpush1.msra.mxu0 0.0
        %4227 = vmatprep.subr.mxu0 0.0
        %4228 = vmatpush1.msra.mxu0 0.0
        %4229 = vmatprep.subr.mxu0 0.0
        %4230 = vmatpush1.msra.mxu0 0.0
        %4231 = vmatprep.subr.mxu0 0.0
        %4232 = vmatpush1.msra.mxu0 0.0
        %4233 = vmatprep.subr.mxu0 0.0
        %4234 = vmatpush1.msra.mxu0 0.0
        %4235 = vmatprep.subr.mxu0 0.0
        %4236 = vmatpush1.msra.mxu0 0.0
        %4237 = vmatprep.subr.mxu0 0.0
        %4238 = vmatpush1.msra.mxu0 0.0
        %4239 = vmatprep.mubr.f32.mxu0 0.0
        %4240 = vmatmul.mubr.f32.gmra.mrb[0].mxu0 %v4105
        %v4241 = vpop.f32.mrb[0].mxu0
        %v4242 = vadd.f32 0.0, %v4241
        %v4243 = vpop.f32.mrb[0].mxu0
        %4244 = vdwg.mxu0
        %v4245 = vrcp.pop 1024.0
        %v4246 = vmul.f32 %v4242, %v4245
        %4247 = vmatprep.subr.mxu0 0.0
        %4248 = vmatpush1.msra.mxu0 %v278
        %4249 = vmatprep.subr.mxu0 0.0
        %4250 = vmatpush1.msra.mxu0 %v279
        %4251 = vmatprep.subr.mxu0 0.0
        %4252 = vmatpush1.msra.mxu0 %v280
        %4253 = vmatprep.subr.mxu0 0.0
        %4254 = vmatpush1.msra.mxu0 %v281
        %4255 = vmatprep.subr.mxu0 0.0
        %4256 = vmatpush1.msra.mxu0 %v282
        %4257 = vmatprep.subr.mxu0 0.0
        %4258 = vmatpush1.msra.mxu0 %v283
        %4259 = vmatprep.subr.mxu0 0.0
        %4260 = vmatpush1.msra.mxu0 %v284
        %4261 = vmatprep.subr.mxu0 0.0
        %4262 = vmatpush1.msra.mxu0 %v285
        %4263 = vmatprep.subr.mxu0 0.0
        %4264 = vmatpush1.msra.mxu0 %v286
        %4265 = vmatprep.subr.mxu0 0.0
        %4266 = vmatpush1.msra.mxu0 %v287
        %4267 = vmatprep.subr.mxu0 0.0
        %4268 = vmatpush1.msra.mxu0 %v288
        %4269 = vmatprep.subr.mxu0 0.0
        %4270 = vmatpush1.msra.mxu0 %v289
        %4271 = vmatprep.subr.mxu0 0.0
        %4272 = vmatpush1.msra.mxu0 %v290
        %4273 = vmatprep.subr.mxu0 0.0
        %4274 = vmatpush1.msra.mxu0 %v291
        %4275 = vmatprep.subr.mxu0 0.0
        %4276 = vmatpush1.msra.mxu0 %v292
        %4277 = vmatprep.subr.mxu0 0.0
        %4278 = vmatpush1.msra.mxu0 %v293
        %4279 = vmatprep.subr.mxu0 0.0
        %4280 = vmatpush1.msra.mxu0 0.0
        %4281 = vmatprep.subr.mxu0 0.0
        %4282 = vmatpush1.msra.mxu0 0.0
        %4283 = vmatprep.subr.mxu0 0.0
        %4284 = vmatpush1.msra.mxu0 0.0
        %4285 = vmatprep.subr.mxu0 0.0
        %4286 = vmatpush1.msra.mxu0 0.0
        %4287 = vmatprep.subr.mxu0 0.0
        %4288 = vmatpush1.msra.mxu0 0.0
        %4289 = vmatprep.subr.mxu0 0.0
        %4290 = vmatpush1.msra.mxu0 0.0
        %4291 = vmatprep.subr.mxu0 0.0
        %4292 = vmatpush1.msra.mxu0 0.0
        %4293 = vmatprep.subr.mxu0 0.0
        %4294 = vmatpush1.msra.mxu0 0.0
        %4295 = vmatprep.subr.mxu0 0.0
        %4296 = vmatpush1.msra.mxu0 0.0
        %4297 = vmatprep.subr.mxu0 0.0
        %4298 = vmatpush1.msra.mxu0 0.0
        %4299 = vmatprep.subr.mxu0 0.0
        %4300 = vmatpush1.msra.mxu0 0.0
        %4301 = vmatprep.subr.mxu0 0.0
        %4302 = vmatpush1.msra.mxu0 0.0
        %4303 = vmatprep.subr.mxu0 0.0
        %4304 = vmatpush1.msra.mxu0 0.0
        %4305 = vmatprep.subr.mxu0 0.0
        %4306 = vmatpush1.msra.mxu0 0.0
        %4307 = vmatprep.subr.mxu0 0.0
        %4308 = vmatpush1.msra.mxu0 0.0
        %4309 = vmatprep.subr.mxu0 0.0
        %4310 = vmatpush1.msra.mxu0 0.0
        %4311 = vmatprep.mubr.f32.mxu0 0.0
        %4312 = vmatmul.mubr.f32.gmra.mrb[0].mxu0 %v4174
        %v4313 = vpop.f32.mrb[0].mxu0
        %v4314 = vadd.f32 0.0, %v4313
        %v4315 = vpop.f32.mrb[0].mxu0
        %4316 = vdwg.mxu0
        %v4317 = vmul.f32 %v4314, %v4245
        %v4318 = vmul.f32 %v4246, %v4246
        %v4319 = vsub.f32 %v4317, %v4318
        %v4320 = vadd.f32 %v4319, 1e-06
        %v4321 = vrsqrt.pop %v4320
        %v4323 = vsel %vm896, %v4246, 0
        %4325 = vmatprep.subr.mxu0 0.0
        %4326 = vmatpush1.msra.mxu0 %v294
        %4327 = vmatprep.subr.mxu0 0.0
        %4328 = vmatpush1.msra.mxu0 %v295
        %4329 = vmatprep.subr.mxu0 0.0
        %4330 = vmatpush1.msra.mxu0 %v296
        %4331 = vmatprep.subr.mxu0 0.0
        %4332 = vmatpush1.msra.mxu0 %v297
        %4333 = vmatprep.subr.mxu0 0.0
        %4334 = vmatpush1.msra.mxu0 0.0
        %4335 = vmatprep.subr.mxu0 0.0
        %4336 = vmatpush1.msra.mxu0 0.0
        %4337 = vmatprep.subr.mxu0 0.0
        %4338 = vmatpush1.msra.mxu0 0.0
        %4339 = vmatprep.subr.mxu0 0.0
        %4340 = vmatpush1.msra.mxu0 0.0
        %4341 = vmatprep.subr.mxu0 0.0
        %4342 = vmatpush1.msra.mxu0 0.0
        %4343 = vmatprep.subr.mxu0 0.0
        %4344 = vmatpush1.msra.mxu0 0.0
        %4345 = vmatprep.subr.mxu0 0.0
        %4346 = vmatpush1.msra.mxu0 0.0
        %4347 = vmatprep.subr.mxu0 0.0
        %4348 = vmatpush1.msra.mxu0 0.0
        %4349 = vmatprep.subr.mxu0 0.0
        %4350 = vmatpush1.msra.mxu0 0.0
        %4351 = vmatprep.subr.mxu0 0.0
        %4352 = vmatpush1.msra.mxu0 0.0
        %4353 = vmatprep.subr.mxu0 0.0
        %4354 = vmatpush1.msra.mxu0 0.0
        %4355 = vmatprep.subr.mxu0 0.0
        %4356 = vmatpush1.msra.mxu0 0.0
        %4357 = vmatprep.subr.mxu0 0.0
        %4358 = vmatpush1.msra.mxu0 0.0
        %4359 = vmatprep.subr.mxu0 0.0
        %4360 = vmatpush1.msra.mxu0 0.0
        %4361 = vmatprep.subr.mxu0 0.0
        %4362 = vmatpush1.msra.mxu0 0.0
        %4363 = vmatprep.subr.mxu0 0.0
        %4364 = vmatpush1.msra.mxu0 0.0
        %4365 = vmatprep.subr.mxu0 0.0
        %4366 = vmatpush1.msra.mxu0 0.0
        %4367 = vmatprep.subr.mxu0 0.0
        %4368 = vmatpush1.msra.mxu0 0.0
        %4369 = vmatprep.subr.mxu0 0.0
        %4370 = vmatpush1.msra.mxu0 0.0
        %4371 = vmatprep.subr.mxu0 0.0
        %4372 = vmatpush1.msra.mxu0 0.0
        %4373 = vmatprep.subr.mxu0 0.0
        %4374 = vmatpush1.msra.mxu0 0.0
        %4375 = vmatprep.subr.mxu0 0.0
        %4376 = vmatpush1.msra.mxu0 0.0
        %4377 = vmatprep.subr.mxu0 0.0
        %4378 = vmatpush1.msra.mxu0 0.0
        %4379 = vmatprep.subr.mxu0 0.0
        %4380 = vmatpush1.msra.mxu0 0.0
        %4381 = vmatprep.subr.mxu0 0.0
        %4382 = vmatpush1.msra.mxu0 0.0
        %4383 = vmatprep.subr.mxu0 0.0
        %4384 = vmatpush1.msra.mxu0 0.0
        %4385 = vmatprep.subr.mxu0 0.0
        %4386 = vmatpush1.msra.mxu0 0.0
        %4387 = vmatprep.subr.mxu0 0.0
        %4388 = vmatpush1.msra.mxu0 0.0
        %4389 = vmatprep.mubr.f32.mxu0 0.0
        %4390 = vmatmul.mubr.f32.gmra.mrb[0].mxu0 %v4323
        %v4391 = vpop.f32.mrb[0].mxu0
        %v4392 = vadd.f32 0.0, %v4391
        %v4393 = vpop.f32.mrb[0].mxu0
        %4394 = vdwg.mxu0
        %v4396 = vsel %vm896, %v4321, 0
        %4398 = vmatprep.subr.mxu0 0.0
        %4399 = vmatpush1.msra.mxu0 %v294
        %4400 = vmatprep.subr.mxu0 0.0
        %4401 = vmatpush1.msra.mxu0 %v295
        %4402 = vmatprep.subr.mxu0 0.0
        %4403 = vmatpush1.msra.mxu0 %v296
        %4404 = vmatprep.subr.mxu0 0.0
        %4405 = vmatpush1.msra.mxu0 %v297
        %4406 = vmatprep.subr.mxu0 0.0
        %4407 = vmatpush1.msra.mxu0 0.0
        %4408 = vmatprep.subr.mxu0 0.0
        %4409 = vmatpush1.msra.mxu0 0.0
        %4410 = vmatprep.subr.mxu0 0.0
        %4411 = vmatpush1.msra.mxu0 0.0
        %4412 = vmatprep.subr.mxu0 0.0
        %4413 = vmatpush1.msra.mxu0 0.0
        %4414 = vmatprep.subr.mxu0 0.0
        %4415 = vmatpush1.msra.mxu0 0.0
        %4416 = vmatprep.subr.mxu0 0.0
        %4417 = vmatpush1.msra.mxu0 0.0
        %4418 = vmatprep.subr.mxu0 0.0
        %4419 = vmatpush1.msra.mxu0 0.0
        %4420 = vmatprep.subr.mxu0 0.0
        %4421 = vmatpush1.msra.mxu0 0.0
        %4422 = vmatprep.subr.mxu0 0.0
        %4423 = vmatpush1.msra.mxu0 0.0
        %4424 = vmatprep.subr.mxu0 0.0
        %4425 = vmatpush1.msra.mxu0 0.0
        %4426 = vmatprep.subr.mxu0 0.0
        %4427 = vmatpush1.msra.mxu0 0.0
        %4428 = vmatprep.subr.mxu0 0.0
        %4429 = vmatpush1.msra.mxu0 0.0
        %4430 = vmatprep.subr.mxu0 0.0
        %4431 = vmatpush1.msra.mxu0 0.0
        %4432 = vmatprep.subr.mxu0 0.0
        %4433 = vmatpush1.msra.mxu0 0.0
        %4434 = vmatprep.subr.mxu0 0.0
        %4435 = vmatpush1.msra.mxu0 0.0
        %4436 = vmatprep.subr.mxu0 0.0
        %4437 = vmatpush1.msra.mxu0 0.0
        %4438 = vmatprep.subr.mxu0 0.0
        %4439 = vmatpush1.msra.mxu0 0.0
        %4440 = vmatprep.subr.mxu0 0.0
        %4441 = vmatpush1.msra.mxu0 0.0
        %4442 = vmatprep.subr.mxu0 0.0
        %4443 = vmatpush1.msra.mxu0 0.0
        %4444 = vmatprep.subr.mxu0 0.0
        %4445 = vmatpush1.msra.mxu0 0.0
        %4446 = vmatprep.subr.mxu0 0.0
        %4447 = vmatpush1.msra.mxu0 0.0
        %4448 = vmatprep.subr.mxu0 0.0
        %4449 = vmatpush1.msra.mxu0 0.0
        %4450 = vmatprep.subr.mxu0 0.0
        %4451 = vmatpush1.msra.mxu0 0.0
        %4452 = vmatprep.subr.mxu0 0.0
        %4453 = vmatpush1.msra.mxu0 0.0
        %4454 = vmatprep.subr.mxu0 0.0
        %4455 = vmatpush1.msra.mxu0 0.0
        %4456 = vmatprep.subr.mxu0 0.0
        %4457 = vmatpush1.msra.mxu0 0.0
        %4458 = vmatprep.subr.mxu0 0.0
        %4459 = vmatpush1.msra.mxu0 0.0
        %4460 = vmatprep.subr.mxu0 0.0
        %4461 = vmatpush1.msra.mxu0 0.0
        %4462 = vmatprep.mubr.f32.mxu0 0.0
        %4463 = vmatmul.mubr.f32.gmra.mrb[0].mxu0 %v4396
        %v4464 = vpop.f32.mrb[0].mxu0
        %v4465 = vadd.f32 0.0, %v4464
        %v4466 = vpop.f32.mrb[0].mxu0
        %4467 = vdwg.mxu0
        %v4468 = vmul.f32 %v4465, %v302
        %v4469 = vmul.f32 %v4392, %v4468
        %v4470 = vsub.f32 %v303, %v4469
        %v4471 = vlaneseq
        %v4472 = vshrl.u32 %v4471, 7
        %v4473 = vsub.s32 0, %v4472
        %v4474 = vrot.slane %v4468, %v4473
        %v4475 = vmul.f32 %v3943, %v4474
        %v4476 = vmul.f32 %v3946, %v4474
        %v4477 = vmul.f32 %v3951, %v4474
        %v4478 = vmul.f32 %v3954, %v4474
        %v4479 = vmul.f32 %v3959, %v4474
        %v4480 = vmul.f32 %v3962, %v4474
        %v4481 = vmul.f32 %v3967, %v4474
        %v4482 = vmul.f32 %v3970, %v4474
        %v4483 = vmul.f32 %v3975, %v4474
        %v4484 = vmul.f32 %v3978, %v4474
        %v4485 = vmul.f32 %v3983, %v4474
        %v4486 = vmul.f32 %v3986, %v4474
        %v4487 = vmul.f32 %v3991, %v4474
        %v4488 = vmul.f32 %v3994, %v4474
        %v4489 = vmul.f32 %v3999, %v4474
        %v4490 = vmul.f32 %v4002, %v4474
        %v4491 = vmul.f32 %v4007, %v4474
        %v4492 = vmul.f32 %v4010, %v4474
        %v4493 = vmul.f32 %v4015, %v4474
        %v4494 = vmul.f32 %v4018, %v4474
        %v4495 = vmul.f32 %v4023, %v4474
        %v4496 = vmul.f32 %v4026, %v4474
        %v4497 = vmul.f32 %v4031, %v4474
        %v4498 = vmul.f32 %v4034, %v4474
        %v4499 = vmul.f32 %v4039, %v4474
        %v4500 = vmul.f32 %v4042, %v4474
        %v4501 = vmul.f32 %v4047, %v4474
        %v4502 = vmul.f32 %v4050, %v4474
        %v4503 = vmul.f32 %v4055, %v4474
        %v4504 = vmul.f32 %v4058, %v4474
        %v4505 = vmul.f32 %v4063, %v4474
        %v4506 = vmul.f32 %v4066, %v4474
        %v4507 = vlaneseq
        %v4508 = vshrl.u32 %v4507, 7
        %v4509 = vsub.s32 0, %v4508
        %v4510 = vrot.slane %v4470, %v4509
        %v4511 = vadd.f32 %v4475, %v4510
        %v4512 = vadd.f32 %v4476, %v4510
        %v4513 = vadd.f32 %v4477, %v4510
        %v4514 = vadd.f32 %v4478, %v4510
        %v4515 = vadd.f32 %v4479, %v4510
        %v4516 = vadd.f32 %v4480, %v4510
        %v4517 = vadd.f32 %v4481, %v4510
        %v4518 = vadd.f32 %v4482, %v4510
        %v4519 = vadd.f32 %v4483, %v4510
        %v4520 = vadd.f32 %v4484, %v4510
        %v4521 = vadd.f32 %v4485, %v4510
        %v4522 = vadd.f32 %v4486, %v4510
        %v4523 = vadd.f32 %v4487, %v4510
        %v4524 = vadd.f32 %v4488, %v4510
        %v4525 = vadd.f32 %v4489, %v4510
        %v4526 = vadd.f32 %v4490, %v4510
        %v4527 = vadd.f32 %v4491, %v4510
        %v4528 = vadd.f32 %v4492, %v4510
        %v4529 = vadd.f32 %v4493, %v4510
        %v4530 = vadd.f32 %v4494, %v4510
        %v4531 = vadd.f32 %v4495, %v4510
        %v4532 = vadd.f32 %v4496, %v4510
        %v4533 = vadd.f32 %v4497, %v4510
        %v4534 = vadd.f32 %v4498, %v4510
        %v4535 = vadd.f32 %v4499, %v4510
        %v4536 = vadd.f32 %v4500, %v4510
        %v4537 = vadd.f32 %v4501, %v4510
        %v4538 = vadd.f32 %v4502, %v4510
        %v4539 = vadd.f32 %v4503, %v4510
        %v4540 = vadd.f32 %v4504, %v4510
        %v4541 = vadd.f32 %v4505, %v4510
        %v4542 = vadd.f32 %v4506, %v4510
        %v4543 = vadd.f32 %v864, %v4511
        %v4544 = vadd.f32 %v865, %v4512
        %v4545 = vadd.f32 %v866, %v4513
        %v4546 = vadd.f32 %v867, %v4514
        %v4547 = vadd.f32 %v868, %v4515
        %v4548 = vadd.f32 %v869, %v4516
        %v4549 = vadd.f32 %v870, %v4517
        %v4550 = vadd.f32 %v871, %v4518
        %v4551 = vadd.f32 %v872, %v4519
        %v4552 = vadd.f32 %v873, %v4520
        %v4553 = vadd.f32 %v874, %v4521
        %v4554 = vadd.f32 %v875, %v4522
        %v4555 = vadd.f32 %v876, %v4523
        %v4556 = vadd.f32 %v877, %v4524
        %v4557 = vadd.f32 %v878, %v4525
        %v4558 = vadd.f32 %v879, %v4526
        %v4559 = vadd.f32 %v880, %v4527
        %v4560 = vadd.f32 %v881, %v4528
        %v4561 = vadd.f32 %v882, %v4529
        %v4562 = vadd.f32 %v883, %v4530
        %v4563 = vadd.f32 %v884, %v4531
        %v4564 = vadd.f32 %v885, %v4532
        %v4565 = vadd.f32 %v886, %v4533
        %v4566 = vadd.f32 %v887, %v4534
        %v4567 = vadd.f32 %v888, %v4535
        %v4568 = vadd.f32 %v889, %v4536
        %v4569 = vadd.f32 %v890, %v4537
        %v4570 = vadd.f32 %v891, %v4538
        %v4571 = vadd.f32 %v892, %v4539
        %v4572 = vadd.f32 %v893, %v4540
        %v4573 = vadd.f32 %v894, %v4541
        %v4574 = vadd.f32 %v895, %v4542
        %v4575 = vmax.f32 %v4543, 0.0
        %v4576 = vmax.f32 %v4544, 0.0
        %v4577 = vmax.f32 %v4545, 0.0
        %v4578 = vmax.f32 %v4546, 0.0
        %v4579 = vmax.f32 %v4547, 0.0
        %v4580 = vmax.f32 %v4548, 0.0
        %v4581 = vmax.f32 %v4549, 0.0
        %v4582 = vmax.f32 %v4550, 0.0
        %v4583 = vmax.f32 %v4551, 0.0
        %v4584 = vmax.f32 %v4552, 0.0
        %v4585 = vmax.f32 %v4553, 0.0
        %v4586 = vmax.f32 %v4554, 0.0
        %v4587 = vmax.f32 %v4555, 0.0
        %v4588 = vmax.f32 %v4556, 0.0
        %v4589 = vmax.f32 %v4557, 0.0
        %v4590 = vmax.f32 %v4558, 0.0
        %v4591 = vmax.f32 %v4559, 0.0
        %v4592 = vmax.f32 %v4560, 0.0
        %v4593 = vmax.f32 %v4561, 0.0
        %v4594 = vmax.f32 %v4562, 0.0
        %v4595 = vmax.f32 %v4563, 0.0
        %v4596 = vmax.f32 %v4564, 0.0
        %v4597 = vmax.f32 %v4565, 0.0
        %v4598 = vmax.f32 %v4566, 0.0
        %v4599 = vmax.f32 %v4567, 0.0
        %v4600 = vmax.f32 %v4568, 0.0
        %v4601 = vmax.f32 %v4569, 0.0
        %v4602 = vmax.f32 %v4570, 0.0
        %v4603 = vmax.f32 %v4571, 0.0
        %v4604 = vmax.f32 %v4572, 0.0
        %v4605 = vmax.f32 %v4573, 0.0
        %v4606 = vmax.f32 %v4574, 0.0
        %4607 = vst [vmem:[%s271] sm:$0xff] %v4575
        %4608 = vst [vmem:[%s271 + $0x8] sm:$0xff] %v4576
        %4609 = vst [vmem:[%s271 + $0x10] sm:$0xff] %v4577
        %4610 = vst [vmem:[%s271 + $0x18] sm:$0xff] %v4578
        %4611 = vst [vmem:[%s271 + $0x20] sm:$0xff] %v4579
        %4612 = vst [vmem:[%s271 + $0x28] sm:$0xff] %v4580
        %4613 = vst [vmem:[%s271 + $0x30] sm:$0xff] %v4581
        %4614 = vst [vmem:[%s271 + $0x38] sm:$0xff] %v4582
        %4615 = vst [vmem:[%s271 + $0x40] sm:$0xff] %v4583
        %4616 = vst [vmem:[%s271 + $0x48] sm:$0xff] %v4584
        %4617 = vst [vmem:[%s271 + $0x50] sm:$0xff] %v4585
        %4618 = vst [vmem:[%s271 + $0x58] sm:$0xff] %v4586
        %4619 = vst [vmem:[%s271 + $0x60] sm:$0xff] %v4587
        %4620 = vst [vmem:[%s271 + $0x68] sm:$0xff] %v4588
        %4621 = vst [vmem:[%s271 + $0x70] sm:$0xff] %v4589
        %4622 = vst [vmem:[%s271 + $0x78] sm:$0xff] %v4590
        %4623 = vst [vmem:[%s271 + $0x80] sm:$0xff] %v4591
        %4624 = vst [vmem:[%s271 + $0x88] sm:$0xff] %v4592
        %4625 = vst [vmem:[%s271 + $0x90] sm:$0xff] %v4593
        %4626 = vst [vmem:[%s271 + $0x98] sm:$0xff] %v4594
        %4627 = vst [vmem:[%s271 + $0xa0] sm:$0xff] %v4595
        %4628 = vst [vmem:[%s271 + $0xa8] sm:$0xff] %v4596
        %4629 = vst [vmem:[%s271 + $0xb0] sm:$0xff] %v4597
        %4630 = vst [vmem:[%s271 + $0xb8] sm:$0xff] %v4598
        %4631 = vst [vmem:[%s271 + $0xc0] sm:$0xff] %v4599
        %4632 = vst [vmem:[%s271 + $0xc8] sm:$0xff] %v4600
        %4633 = vst [vmem:[%s271 + $0xd0] sm:$0xff] %v4601
        %4634 = vst [vmem:[%s271 + $0xd8] sm:$0xff] %v4602
        %4635 = vst [vmem:[%s271 + $0xe0] sm:$0xff] %v4603
        %4636 = vst [vmem:[%s271 + $0xe8] sm:$0xff] %v4604
        %4637 = vst [vmem:[%s271 + $0xf0] sm:$0xff] %v4605
        %4638 = vst [vmem:[%s271 + $0xf8] sm:$0xff] %v4606
        %s4639 = sand.u32 %s181, 1
        %s4640 = scalar_lea.sflag [#allocation5], %s4639
        %s4641 = sand.u32 %s181, 1
        %s4642 = smul.addr %s4641, 256
        %s4643 = scalar_lea.vmem [#allocation4], %s4642
        // Predicated region
        $region49: #{tpu_custom_call.1} parent=47 // pred_check
          %p4644 = pneg %p191
        $region50: #{tpu_custom_call.1} parent=47 // pred_check_branch
          %4646 = sbr.rel (%p4644) target = $region52
        $region51: #{tpu_custom_call.1} parent=47 // pred_region
          %s4648 = ssub.s32 4096, 4096
          %4649 = vsyncadd %s4640, %s4648
          %s4650 = smul.addr %s21, 32
          %s4651 = smul.addr %s4650, 128
          %s4652 = scalar_lea.hbm %s7, %s4651
          %s4653 = sshll.u32 %s4643, 4
          %s4654 = int_to_ptr.vmem [resolvable:$true] %s4653
          %4659 = dma.vmem_to_hbm [thread:$0]  %s4654, 4096, %s4652, %s4640, 128, 128, 8
        $region52: #{tpu_custom_call.1} parent=47 // pred_fallthru
          _
      $region48: #{tpu_custom_call.1} parent=5 // pred_fallthru
        _
      %p4660 = scmp.le.s32.totalorder 2, %s16
      // Predicated region
      $region53: #{tpu_custom_call.1} parent=5 // pred_check
        %p4661 = pneg %p4660
      $region54: #{tpu_custom_call.1} parent=5 // pred_check_branch
        %4663 = sbr.rel (%p4661) target = $region56
      $region55: #{tpu_custom_call.1} parent=5 // pred_region
        %s4664 = ssub.s32 %s16, 2
        // Predicated region
        $region57: #{tpu_custom_call.1} parent=55 // pred_check
          %p4665 = pneg %p197
        $region58: #{tpu_custom_call.1} parent=55 // pred_check_branch
          %4667 = sbr.rel (%p4665) target = $region60
        $region59: #{tpu_custom_call.1} parent=55 // pred_region
          %s4668 = sand.u32 %s182, 1
          %s4669 = scalar_lea.sflag [#allocation5], %s4668
          %s4670 = sand.u32 %s182, 1
          %s4671 = smul.addr %s4670, 256
          %s4672 = scalar_lea.vmem [#allocation4], %s4671
          %4673 = dma.done %s4669, 4096
        $region60: #{tpu_custom_call.1} parent=55 // pred_fallthru
          _
      $region56: #{tpu_custom_call.1} parent=5 // pred_fallthru
        _
    $region6: #{tpu_custom_call.1} parent=1 // loop_footer
      %s20 = sadd.s32 1, %s16
    $region7: #{tpu_custom_call.1} parent=1 // loop_footer_branch
      %15 = sbr.rel target = $region3
    $region8: #{tpu_custom_call.1} parent=1 // loop_exit
      _
    %4674 = vsyncpa [#allocation5], 1
    %s4675 = scalar_lea.sflag [#allocation5], 1
    %4676 = vsyncpa %s4675, 1

</llo_original>
